<compile_context>
chip_gen: v7x
topology: tpu7x:2x2x1
jax: 0.10.0
libtpu: 0.0.40
codegen_flags: <defaults>
</compile_context>

<pallas_src>
import jax
import jax.numpy as jnp
import numpy as np
from jax.experimental import pallas as pl
from jax.experimental.pallas import tpu as pltpu


def _round_up(n, m):
    return ((n + m - 1) // m) * m


def make_rnn_kernel(num_layers, T, Bt, Hp, C, Cp, proj_chunk_rows):
    """Builds the Pallas kernel body (closure over static sizes / layer count)."""
    Bh = Bt // 2                                     # two interleaved batch sub-tiles
    unroll = True if T <= 32 else 8
    bf16 = jnp.bfloat16
    f32 = jnp.float32
    rows = T * Bt

    def kernel(*refs):
        # ---- unpack positional refs -------------------------------------
        x_ref = refs[0]                              # (T*Bt, 1) f32  [t-major, then batch]
        idx = 1
        layers = []
        for _ in range(num_layers):
            w_ih = refs[idx]                         # l==0: (1,Hp) f32 ; l>0: (Hp,Hp) bf16
            w_hh = refs[idx + 1]                     # (Hp, Hp) bf16 = W_hh^T
            bias = refs[idx + 2]                     # (1, Hp) f32 = b_ih + b_hh
            idx += 3
            layers.append((w_ih, w_hh, bias))
        w_fc = refs[idx]                             # (Hp, Cp) bf16 = W_fc^T
        b_fc = refs[idx + 1]                         # (1, Cp) f32
        out_ref = refs[idx + 2]                      # (Bt, Cp) output block
        seq = refs[idx + 3]                          # scratch (T*Bt, Hp) f32

        # ---- layer 0: hoisted input projection (input_size == 1), bias fused ----
        w0, _, bias0 = layers[0]
        seq[...] = x_ref[...] * w0[...] + bias0[...]          # (T*Bt,1)*(1,Hp)+(1,Hp)

        h0 = jnp.zeros((Bh, Hp), f32)
        h1 = jnp.zeros((Bh, Hp), f32)

        for l in range(num_layers):
            w_ih, w_hh, bias = layers[l]
            if l > 0:
                # Hoisted whole-sequence input projection, chunked over row blocks so the
                # in-place update never needs a seq-sized temporary (bf16 MXU, f32 acc).
                w_in = w_ih[...]
                b_in = bias[...]
                for s in range(0, rows, proj_chunk_rows):
                    e = min(s + proj_chunk_rows, rows)
                    blk = seq[s:e, :]
                    seq[s:e, :] = (jnp.dot(blk.astype(bf16), w_in,
                                           preferred_element_type=f32) + b_in)

            w = w_hh[...]                            # load once; resident across the loop
            store_back = (l < num_layers - 1)        # last layer's outputs not re-read

            def body(t, carry, _w=w, _store=store_back):
                ha, hb = carry
                s0 = pl.multiple_of(t * Bt, Bt)      # sublane-aligned dynamic slices
                s1 = pl.multiple_of(t * Bt + Bh, Bh)
                # Two independent recurrences (batch halves) -> MXU bubbles of one chain
                # are filled by the other.
                pa = seq[pl.ds(s0, Bh), :] + jnp.dot(
                    ha.astype(bf16), _w, preferred_element_type=f32)
                pb = seq[pl.ds(s1, Bh), :] + jnp.dot(
                    hb.astype(bf16), _w, preferred_element_type=f32)
                na = jnp.maximum(pa, 0.0)            # nonlinearity='relu'
                nb = jnp.maximum(pb, 0.0)
                if _store:
                    seq[pl.ds(s0, Bh), :] = na       # becomes next layer's input
                    seq[pl.ds(s1, Bh), :] = nb
                return (na, nb)

            h0, h1 = jax.lax.fori_loop(
                0, T, body,
                (jnp.zeros((Bh, Hp), f32), jnp.zeros((Bh, Hp), f32)),
                unroll=unroll)

        # ---- fc2 -> relu -> log_softmax over the real C labels -----------
        wfc = w_fc[...]
        bfc = b_fc[...]

        def head(h, r0):
            z = jnp.dot(h.astype(bf16), wfc, preferred_element_type=f32) + bfc
            z = jnp.maximum(z, 0.0)
            if C < Cp:
                col = jax.lax.broadcasted_iota(jnp.int32, (Bh, Cp), 1)
                z = jnp.where(col < C, z, -1e30)      # padded label lanes excluded
            m = jnp.max(z, axis=1, keepdims=True)
            lse = m + jnp.log(jnp.sum(jnp.exp(z - m), axis=1, keepdims=True))
            out_ref[r0:r0 + Bh, :] = (z - lse).astype(out_ref.dtype)

        head(h0, 0)
        head(h1, Bh)

    return kernel


def nlayer_rnn_forward(x, params, *, hidden_size, num_labels, num_layers):
    """x: (batch, seq) float32. Returns (batch, num_labels) log-probabilities."""
    assert num_layers >= 1
    B, T = x.shape
    H, C = hidden_size, num_labels

    f32 = jnp.float32
    bf16 = jnp.bfloat16
    Hp = _round_up(max(H, 1), 128)                   # lane-pad hidden
    Cp = _round_up(max(C, 1), 128)                   # lane-pad labels

    def pad2(a, r, c, dt):
        a = jnp.asarray(a, f32)
        out = jnp.zeros((r, c), f32).at[:a.shape[0], :a.shape[1]].set(a)
        return out.astype(dt)

    # ---- kernel-side weights: pre-transposed, zero-padded, biases pre-folded ----
    # (Hp,Hp)/(Hp,Cp) matrices stored bf16 for the MXU; scalar layer-0 weight & biases f32.
    weight_args = []
    for l in range(num_layers):
        w_ih, b_ih, w_hh, b_hh = params["rnn"][l]
        bias = (jnp.asarray(b_ih, f32) + jnp.asarray(b_hh, f32)).reshape(1, -1)
        if l == 0:
            weight_args.append(pad2(jnp.asarray(w_ih, f32).T, 1, Hp, f32))   # (1, Hp)
        else:
            weight_args.append(pad2(jnp.asarray(w_ih, f32).T, Hp, Hp, bf16)) # (Hp, Hp)
        weight_args.append(pad2(jnp.asarray(w_hh, f32).T, Hp, Hp, bf16))     # (Hp, Hp)
        weight_args.append(pad2(bias, 1, Hp, f32))                           # (1, Hp)
    weight_args.append(pad2(jnp.asarray(params["w_fc"], f32).T, Hp, Cp, bf16))          # (Hp,Cp)
    weight_args.append(pad2(jnp.asarray(params["b_fc"], f32).reshape(1, -1), 1, Cp, f32))

    w_bytes = sum(int(np.prod(a.shape)) * a.dtype.itemsize for a in weight_args)

    # ---- generation-aware tile / VMEM policy -------------------------------
    try:
        vmem_cap = int(pltpu.get_tpu_info().vmem_capacity_bytes)
    except Exception:
        vmem_cap = 64 << 20                          # conservative fallback (v7x-sized)
    vmem_cap = max(vmem_cap, 32 << 20)
    budget = int(vmem_cap * 0.7)

    def need_bytes(bt):
        seq_b = T * bt * Hp * 4                      # per-tile sequence scratch
        io_b = 2 * (T * bt * 4 + bt * Cp * 4)        # double-buffered x / out blocks
        chunk_t = max(1, min(T, (1 << 19) // max(1, bt * Hp * 4)))
        proj_b = 2 * chunk_t * bt * Hp * 4           # chunked projection temps
        return seq_b + 2 * w_bytes + io_b + proj_b + (2 << 20)

    bt_cap = 256 if (B >= 256 and vmem_cap >= (96 << 20)) else 128
    Bt = min(bt_cap, _round_up(B, 16))               # multiple of 16 -> aligned halves
    # 64-MiB-VMEM chips (v7x: 2 TensorCores) -> prefer >=2 batch tiles so both cores work.
    if vmem_cap <= (64 << 20) and B > 16 and _round_up(B, 16) <= Bt:
        Bt = max(16, _round_up(-(-B // 2), 16))
    while Bt > 16 and need_bytes(Bt) > budget:
        Bt -= 16

    Bp = _round_up(B, Bt)
    nb = Bp // Bt
    chunk_t = max(1, min(T, (1 << 19) // max(1, Bt * Hp * 4)))
    proj_chunk_rows = chunk_t * Bt

    # ---- input layout: (B, T) -> (nb*T*Bt, 1), tile-major then time then batch ----
    x = jnp.asarray(x, f32)
    x_pad = jnp.zeros((Bp, T), f32).at[:B].set(x)
    x_k = x_pad.reshape(nb, Bt, T).transpose(0, 2, 1).reshape(nb * T * Bt, 1)

    vmem_limit = int(min(max(need_bytes(Bt) + (4 << 20), 32 << 20),
                         vmem_cap - (4 << 20)))

    kernel = make_rnn_kernel(num_layers, T, Bt, Hp, C, Cp, proj_chunk_rows)

    def run(single_buffer_weights):
        in_specs = [pl.BlockSpec((T * Bt, 1), lambda i: (i, 0))]      # per-tile x block
        for a in weight_args:
            if single_buffer_weights:
                # Constant-index weights: no need to double-buffer them.
                in_specs.append(pl.BlockSpec(a.shape, lambda i: (0, 0),
                                             pipeline_mode=pl.Buffered(1)))
            else:
                in_specs.append(pl.BlockSpec(a.shape, lambda i: (0, 0)))
        return pl.pallas_call(
            kernel,
            out_shape=jax.ShapeDtypeStruct((Bp, Cp), f32),
            grid=(nb,),
            in_specs=in_specs,
            out_specs=pl.BlockSpec((Bt, Cp), lambda i: (i, 0)),       # lane-dense output
            scratch_shapes=[pltpu.VMEM((T * Bt, Hp), f32)],
            compiler_params=pltpu.CompilerParams(
                dimension_semantics=("parallel",),    # batch tiles independent
                vmem_limit_bytes=vmem_limit),
        )(x_k, *weight_args)

    try:
        out_p = run(True)
    except Exception:
        # Installed Pallas may not accept pipeline_mode=Buffered(1); fall back cleanly.
        out_p = run(False)

    return out_p[:B, :C]


def nlayer_rnn_reference(x, params, *, hidden_size, num_layers):
    """Pure-JAX f32 reference matching torch.nn.RNN(relu, batch_first) + fc + log_softmax."""
    B, T = x.shape
    H = hidden_size
    h_seq = x[:, :, None].astype(jnp.float32)                    # (B, T, 1)
    h = None
    for l in range(num_layers):
        w_ih, b_ih, w_hh, b_hh = params["rnn"][l]
        h = jnp.zeros((B, H), jnp.float32)
        outs = []
        for t in range(T):
            pre = h_seq[:, t, :] @ w_ih.T + b_ih + h @ w_hh.T + b_hh
            h = jnp.maximum(pre, 0.0)
            outs.append(h)
        h_seq = jnp.stack(outs, axis=1)                          # (B, T, H)
    z = jnp.maximum(h @ params["w_fc"].T + params["b_fc"], 0.0)
    return jax.nn.log_softmax(z, axis=1)


def init_params(key, *, input_size, hidden_size, num_labels, num_layers):
    """Deterministic synthetic init (uniform(-1/sqrt(H), 1/sqrt(H)), like PyTorch RNN)."""
    H, C = hidden_size, num_labels
    bound = 1.0 / np.sqrt(H)
    params = {"rnn": []}
    for l in range(num_layers):
        in_dim = input_size if l == 0 else H
        key, k1, k2, k3, k4 = jax.random.split(key, 5)
        params["rnn"].append((
            jax.random.uniform(k1, (H, in_dim), jnp.float32, -bound, bound),  # W_ih
            jax.random.uniform(k2, (H,), jnp.float32, -bound, bound),         # b_ih
            jax.random.uniform(k3, (H, H), jnp.float32, -bound, bound),       # W_hh
            jax.random.uniform(k4, (H,), jnp.float32, -bound, bound),         # b_hh
        ))
    key, k5, k6 = jax.random.split(key, 3)
    params["w_fc"] = jax.random.uniform(k5, (C, H), jnp.float32, -bound, bound)
    params["b_fc"] = jax.random.uniform(k6, (C,), jnp.float32, -bound, bound)
    return params


if __name__ == "__main__":
    def check(batch, seq, hidden, labels, layers):
        key = jax.random.PRNGKey(0)
        key, kx = jax.random.split(key)
        x = jax.random.normal(kx, (batch, seq), jnp.float32)
        params = init_params(key, input_size=1, hidden_size=hidden,
                             num_labels=labels, num_layers=layers)
        out = nlayer_rnn_forward(x, params, hidden_size=hidden,
                                 num_labels=labels, num_layers=layers)
        out = jax.block_until_ready(out)
        ref = nlayer_rnn_reference(x, params, hidden_size=hidden, num_layers=layers)
        # bf16 weights / matmul operands -> tolerance loosened vs the pure-f32 reference.
        np.testing.assert_allclose(np.asarray(out), np.asarray(ref),
                                   atol=3e-2, rtol=3e-2)

    # Small shapes consistent with the module: input is (batch, seq) of scalar features.
    check(2, 8, 32, 4, 2)          # demo shape: batch=2, seq=8, hidden=32, labels=4
    check(144, 12, 48, 5, 3)       # multi-tile grid + padded batch/labels + 3 layers

    print("KERNEL_OK")
</pallas_src>

<mosaic_0001>
module attributes {stable_mosaic.version = 11 : i64} {
  func.func @kernel(%arg0: i32, %arg1: memref<128x1xf32, #tpu.memory_space<vmem>>, %arg2: memref<1x128xf32, #tpu.memory_space<vmem>>, %arg3: memref<128x128xbf16, #tpu.memory_space<vmem>>, %arg4: memref<1x128xf32, #tpu.memory_space<vmem>>, %arg5: memref<128x128xbf16, #tpu.memory_space<vmem>>, %arg6: memref<128x128xbf16, #tpu.memory_space<vmem>>, %arg7: memref<1x128xf32, #tpu.memory_space<vmem>>, %arg8: memref<128x128xbf16, #tpu.memory_space<vmem>>, %arg9: memref<1x128xf32, #tpu.memory_space<vmem>>, %arg10: memref<16x128xf32, #tpu.memory_space<vmem>>, %arg11: memref<128x128xf32, #tpu.memory_space<vmem>>) attributes {dimension_semantics = [#tpu.dimension_semantics<parallel>], iteration_bounds = array<i64: 1>, scalar_prefetch = 0 : i64, scratch_operands = 1 : i64, tpu.core_type = #tpu.core_type<tc>, window_params = [{transform_indices = @transform_0, window_bounds = array<i64: 128, 1>}, {pipeline_mode = #tpu.pipeline_mode<synchronous>, transform_indices = @transform_1, window_bounds = array<i64: 1, 128>}, {pipeline_mode = #tpu.pipeline_mode<synchronous>, transform_indices = @transform_2, window_bounds = array<i64: 128, 128>}, {pipeline_mode = #tpu.pipeline_mode<synchronous>, transform_indices = @transform_3, window_bounds = array<i64: 1, 128>}, {pipeline_mode = #tpu.pipeline_mode<synchronous>, transform_indices = @transform_4, window_bounds = array<i64: 128, 128>}, {pipeline_mode = #tpu.pipeline_mode<synchronous>, transform_indices = @transform_5, window_bounds = array<i64: 128, 128>}, {pipeline_mode = #tpu.pipeline_mode<synchronous>, transform_indices = @transform_6, window_bounds = array<i64: 1, 128>}, {pipeline_mode = #tpu.pipeline_mode<synchronous>, transform_indices = @transform_7, window_bounds = array<i64: 128, 128>}, {pipeline_mode = #tpu.pipeline_mode<synchronous>, transform_indices = @transform_8, window_bounds = array<i64: 1, 128>}, {transform_indices = @transform_9, window_bounds = array<i64: 16, 128>}]} {
    %c0 = arith.constant 0 : index
    %c0_0 = arith.constant 0 : index
    %0 = vector.load %arg1[%c0, %c0_0] : memref<128x1xf32, #tpu.memory_space<vmem>>, vector<128x1xf32>
    %c0_1 = arith.constant 0 : index
    %c0_2 = arith.constant 0 : index
    %1 = vector.load %arg2[%c0_1, %c0_2] : memref<1x128xf32, #tpu.memory_space<vmem>>, vector<1x128xf32>
    %2 = vector.broadcast %0 : vector<128x1xf32> to vector<128x128xf32>
    %3 = vector.broadcast %1 : vector<1x128xf32> to vector<128x128xf32>
    %4 = arith.mulf %2, %3 : vector<128x128xf32>
    %c0_3 = arith.constant 0 : index
    %c0_4 = arith.constant 0 : index
    %5 = vector.load %arg4[%c0_3, %c0_4] : memref<1x128xf32, #tpu.memory_space<vmem>>, vector<1x128xf32>
    %6 = vector.broadcast %5 : vector<1x128xf32> to vector<128x128xf32>
    %7 = arith.addf %4, %6 : vector<128x128xf32>
    %c0_5 = arith.constant 0 : index
    %c0_6 = arith.constant 0 : index
    %8 = vector.load %arg11[%c0_5, %c0_6] : memref<128x128xf32, #tpu.memory_space<vmem>>, vector<128x128xf32>
    tpu.vector_store %arg11[%c0_5, %c0_6], %7 {strides = array<i32>} : memref<128x128xf32, #tpu.memory_space<vmem>>, vector<128x128xf32>,
    %c0_7 = arith.constant 0 : index
    %c0_8 = arith.constant 0 : index
    %9 = vector.load %arg3[%c0_7, %c0_8] : memref<128x128xbf16, #tpu.memory_space<vmem>>, vector<128x128xbf16>
    %cst = arith.constant 0.000000e+00 : f32
    %10 = vector.broadcast %cst : f32 to vector<8x128xf32>
    %cst_9 = arith.constant 0.000000e+00 : f32
    %11 = vector.broadcast %cst_9 : f32 to vector<8x128xf32>
    %c0_i32 = arith.constant 0 : i32
    %c16_i32 = arith.constant 16 : i32
    %12 = arith.muli %c0_i32, %c16_i32 : i32
    %13 = tpu.assume_multiple %12, 16 : i32
    %c16_i32_10 = arith.constant 16 : i32
    %14 = arith.muli %c0_i32, %c16_i32_10 : i32
    %c8_i32 = arith.constant 8 : i32
    %15 = arith.addi %14, %c8_i32 : i32
    %16 = tpu.assume_multiple %15, 8 : i32
    %17 = arith.index_cast %13 : i32 to index
    %c0_11 = arith.constant 0 : index
    %18 = vector.load %arg11[%17, %c0_11] : memref<128x128xf32, #tpu.memory_space<vmem>>, vector<8x128xf32>
    %19 = arith.truncf %10 : vector<8x128xf32> to vector<8x128xbf16>
    %cst_12 = arith.constant dense<0.000000e+00> : vector<8x128xf32>
    %20 = tpu.matmul %19, %9, %cst_12 {dimension_numbers = #tpu.dot_dimension_numbers<[1], [0], [0], [1], [0, 0, 1, 1], [], []>} : vector<8x128xbf16>, vector<128x128xbf16>, vector<8x128xf32> -> vector<8x128xf32>
    %21 = arith.addf %18, %20 : vector<8x128xf32>
    %22 = arith.index_cast %16 : i32 to index
    %c0_13 = arith.constant 0 : index
    %23 = vector.load %arg11[%22, %c0_13] : memref<128x128xf32, #tpu.memory_space<vmem>>, vector<8x128xf32>
    %24 = arith.truncf %11 : vector<8x128xf32> to vector<8x128xbf16>
    %cst_14 = arith.constant dense<0.000000e+00> : vector<8x128xf32>
    %25 = tpu.matmul %24, %9, %cst_14 {dimension_numbers = #tpu.dot_dimension_numbers<[1], [0], [0], [1], [0, 0, 1, 1], [], []>} : vector<8x128xbf16>, vector<128x128xbf16>, vector<8x128xf32> -> vector<8x128xf32>
    %26 = arith.addf %23, %25 : vector<8x128xf32>
    %cst_15 = arith.constant 0.000000e+00 : f32
    %27 = vector.broadcast %cst_15 : f32 to vector<8x128xf32>
    %28 = arith.maximumf %21, %27 : vector<8x128xf32>
    %cst_16 = arith.constant 0.000000e+00 : f32
    %29 = vector.broadcast %cst_16 : f32 to vector<8x128xf32>
    %30 = arith.maximumf %26, %29 : vector<8x128xf32>
    %31 = arith.index_cast %13 : i32 to index
    %c0_17 = arith.constant 0 : index
    %32 = vector.load %arg11[%31, %c0_17] : memref<128x128xf32, #tpu.memory_space<vmem>>, vector<8x128xf32>
    tpu.vector_store %arg11[%31, %c0_17], %28 {strides = array<i32>} : memref<128x128xf32, #tpu.memory_space<vmem>>, vector<8x128xf32>,
    %33 = arith.index_cast %16 : i32 to index
    %c0_18 = arith.constant 0 : index
    %34 = vector.load %arg11[%33, %c0_18] : memref<128x128xf32, #tpu.memory_space<vmem>>, vector<8x128xf32>
    tpu.vector_store %arg11[%33, %c0_18], %30 {strides = array<i32>} : memref<128x128xf32, #tpu.memory_space<vmem>>, vector<8x128xf32>,
    %c1_i32 = arith.constant 1 : i32
    %c16_i32_19 = arith.constant 16 : i32
    %35 = arith.muli %c1_i32, %c16_i32_19 : i32
    %36 = tpu.assume_multiple %35, 16 : i32
    %c16_i32_20 = arith.constant 16 : i32
    %37 = arith.muli %c1_i32, %c16_i32_20 : i32
    %c8_i32_21 = arith.constant 8 : i32
    %38 = arith.addi %37, %c8_i32_21 : i32
    %39 = tpu.assume_multiple %38, 8 : i32
    %40 = arith.index_cast %36 : i32 to index
    %c0_22 = arith.constant 0 : index
    %41 = vector.load %arg11[%40, %c0_22] : memref<128x128xf32, #tpu.memory_space<vmem>>, vector<8x128xf32>
    %42 = arith.truncf %28 : vector<8x128xf32> to vector<8x128xbf16>
    %cst_23 = arith.constant dense<0.000000e+00> : vector<8x128xf32>
    %43 = tpu.matmul %42, %9, %cst_23 {dimension_numbers = #tpu.dot_dimension_numbers<[1], [0], [0], [1], [0, 0, 1, 1], [], []>} : vector<8x128xbf16>, vector<128x128xbf16>, vector<8x128xf32> -> vector<8x128xf32>
    %44 = arith.addf %41, %43 : vector<8x128xf32>
    %45 = arith.index_cast %39 : i32 to index
    %c0_24 = arith.constant 0 : index
    %46 = vector.load %arg11[%45, %c0_24] : memref<128x128xf32, #tpu.memory_space<vmem>>, vector<8x128xf32>
    %47 = arith.truncf %30 : vector<8x128xf32> to vector<8x128xbf16>
    %cst_25 = arith.constant dense<0.000000e+00> : vector<8x128xf32>
    %48 = tpu.matmul %47, %9, %cst_25 {dimension_numbers = #tpu.dot_dimension_numbers<[1], [0], [0], [1], [0, 0, 1, 1], [], []>} : vector<8x128xbf16>, vector<128x128xbf16>, vector<8x128xf32> -> vector<8x128xf32>
    %49 = arith.addf %46, %48 : vector<8x128xf32>
    %cst_26 = arith.constant 0.000000e+00 : f32
    %50 = vector.broadcast %cst_26 : f32 to vector<8x128xf32>
    %51 = arith.maximumf %44, %50 : vector<8x128xf32>
    %cst_27 = arith.constant 0.000000e+00 : f32
    %52 = vector.broadcast %cst_27 : f32 to vector<8x128xf32>
    %53 = arith.maximumf %49, %52 : vector<8x128xf32>
    %54 = arith.index_cast %36 : i32 to index
    %c0_28 = arith.constant 0 : index
    %55 = vector.load %arg11[%54, %c0_28] : memref<128x128xf32, #tpu.memory_space<vmem>>, vector<8x128xf32>
    tpu.vector_store %arg11[%54, %c0_28], %51 {strides = array<i32>} : memref<128x128xf32, #tpu.memory_space<vmem>>, vector<8x128xf32>,
    %56 = arith.index_cast %39 : i32 to index
    %c0_29 = arith.constant 0 : index
    %57 = vector.load %arg11[%56, %c0_29] : memref<128x128xf32, #tpu.memory_space<vmem>>, vector<8x128xf32>
    tpu.vector_store %arg11[%56, %c0_29], %53 {strides = array<i32>} : memref<128x128xf32, #tpu.memory_space<vmem>>, vector<8x128xf32>,
    %c2_i32 = arith.constant 2 : i32
    %c16_i32_30 = arith.constant 16 : i32
    %58 = arith.muli %c2_i32, %c16_i32_30 : i32
    %59 = tpu.assume_multiple %58, 16 : i32
    %c16_i32_31 = arith.constant 16 : i32
    %60 = arith.muli %c2_i32, %c16_i32_31 : i32
    %c8_i32_32 = arith.constant 8 : i32
    %61 = arith.addi %60, %c8_i32_32 : i32
    %62 = tpu.assume_multiple %61, 8 : i32
    %63 = arith.index_cast %59 : i32 to index
    %c0_33 = arith.constant 0 : index
    %64 = vector.load %arg11[%63, %c0_33] : memref<128x128xf32, #tpu.memory_space<vmem>>, vector<8x128xf32>
    %65 = arith.truncf %51 : vector<8x128xf32> to vector<8x128xbf16>
    %cst_34 = arith.constant dense<0.000000e+00> : vector<8x128xf32>
    %66 = tpu.matmul %65, %9, %cst_34 {dimension_numbers = #tpu.dot_dimension_numbers<[1], [0], [0], [1], [0, 0, 1, 1], [], []>} : vector<8x128xbf16>, vector<128x128xbf16>, vector<8x128xf32> -> vector<8x128xf32>
    %67 = arith.addf %64, %66 : vector<8x128xf32>
    %68 = arith.index_cast %62 : i32 to index
    %c0_35 = arith.constant 0 : index
    %69 = vector.load %arg11[%68, %c0_35] : memref<128x128xf32, #tpu.memory_space<vmem>>, vector<8x128xf32>
    %70 = arith.truncf %53 : vector<8x128xf32> to vector<8x128xbf16>
    %cst_36 = arith.constant dense<0.000000e+00> : vector<8x128xf32>
    %71 = tpu.matmul %70, %9, %cst_36 {dimension_numbers = #tpu.dot_dimension_numbers<[1], [0], [0], [1], [0, 0, 1, 1], [], []>} : vector<8x128xbf16>, vector<128x128xbf16>, vector<8x128xf32> -> vector<8x128xf32>
    %72 = arith.addf %69, %71 : vector<8x128xf32>
    %cst_37 = arith.constant 0.000000e+00 : f32
    %73 = vector.broadcast %cst_37 : f32 to vector<8x128xf32>
    %74 = arith.maximumf %67, %73 : vector<8x128xf32>
    %cst_38 = arith.constant 0.000000e+00 : f32
    %75 = vector.broadcast %cst_38 : f32 to vector<8x128xf32>
    %76 = arith.maximumf %72, %75 : vector<8x128xf32>
    %77 = arith.index_cast %59 : i32 to index
    %c0_39 = arith.constant 0 : index
    %78 = vector.load %arg11[%77, %c0_39] : memref<128x128xf32, #tpu.memory_space<vmem>>, vector<8x128xf32>
    tpu.vector_store %arg11[%77, %c0_39], %74 {strides = array<i32>} : memref<128x128xf32, #tpu.memory_space<vmem>>, vector<8x128xf32>,
    %79 = arith.index_cast %62 : i32 to index
    %c0_40 = arith.constant 0 : index
    %80 = vector.load %arg11[%79, %c0_40] : memref<128x128xf32, #tpu.memory_space<vmem>>, vector<8x128xf32>
    tpu.vector_store %arg11[%79, %c0_40], %76 {strides = array<i32>} : memref<128x128xf32, #tpu.memory_space<vmem>>, vector<8x128xf32>,
    %c3_i32 = arith.constant 3 : i32
    %c16_i32_41 = arith.constant 16 : i32
    %81 = arith.muli %c3_i32, %c16_i32_41 : i32
    %82 = tpu.assume_multiple %81, 16 : i32
    %c16_i32_42 = arith.constant 16 : i32
    %83 = arith.muli %c3_i32, %c16_i32_42 : i32
    %c8_i32_43 = arith.constant 8 : i32
    %84 = arith.addi %83, %c8_i32_43 : i32
    %85 = tpu.assume_multiple %84, 8 : i32
    %86 = arith.index_cast %82 : i32 to index
    %c0_44 = arith.constant 0 : index
    %87 = vector.load %arg11[%86, %c0_44] : memref<128x128xf32, #tpu.memory_space<vmem>>, vector<8x128xf32>
    %88 = arith.truncf %74 : vector<8x128xf32> to vector<8x128xbf16>
    %cst_45 = arith.constant dense<0.000000e+00> : vector<8x128xf32>
    %89 = tpu.matmul %88, %9, %cst_45 {dimension_numbers = #tpu.dot_dimension_numbers<[1], [0], [0], [1], [0, 0, 1, 1], [], []>} : vector<8x128xbf16>, vector<128x128xbf16>, vector<8x128xf32> -> vector<8x128xf32>
    %90 = arith.addf %87, %89 : vector<8x128xf32>
    %91 = arith.index_cast %85 : i32 to index
    %c0_46 = arith.constant 0 : index
    %92 = vector.load %arg11[%91, %c0_46] : memref<128x128xf32, #tpu.memory_space<vmem>>, vector<8x128xf32>
    %93 = arith.truncf %76 : vector<8x128xf32> to vector<8x128xbf16>
    %cst_47 = arith.constant dense<0.000000e+00> : vector<8x128xf32>
    %94 = tpu.matmul %93, %9, %cst_47 {dimension_numbers = #tpu.dot_dimension_numbers<[1], [0], [0], [1], [0, 0, 1, 1], [], []>} : vector<8x128xbf16>, vector<128x128xbf16>, vector<8x128xf32> -> vector<8x128xf32>
    %95 = arith.addf %92, %94 : vector<8x128xf32>
    %cst_48 = arith.constant 0.000000e+00 : f32
    %96 = vector.broadcast %cst_48 : f32 to vector<8x128xf32>
    %97 = arith.maximumf %90, %96 : vector<8x128xf32>
    %cst_49 = arith.constant 0.000000e+00 : f32
    %98 = vector.broadcast %cst_49 : f32 to vector<8x128xf32>
    %99 = arith.maximumf %95, %98 : vector<8x128xf32>
    %100 = arith.index_cast %82 : i32 to index
    %c0_50 = arith.constant 0 : index
    %101 = vector.load %arg11[%100, %c0_50] : memref<128x128xf32, #tpu.memory_space<vmem>>, vector<8x128xf32>
    tpu.vector_store %arg11[%100, %c0_50], %97 {strides = array<i32>} : memref<128x128xf32, #tpu.memory_space<vmem>>, vector<8x128xf32>,
    %102 = arith.index_cast %85 : i32 to index
    %c0_51 = arith.constant 0 : index
    %103 = vector.load %arg11[%102, %c0_51] : memref<128x128xf32, #tpu.memory_space<vmem>>, vector<8x128xf32>
    tpu.vector_store %arg11[%102, %c0_51], %99 {strides = array<i32>} : memref<128x128xf32, #tpu.memory_space<vmem>>, vector<8x128xf32>,
    %c4_i32 = arith.constant 4 : i32
    %c16_i32_52 = arith.constant 16 : i32
    %104 = arith.muli %c4_i32, %c16_i32_52 : i32
    %105 = tpu.assume_multiple %104, 16 : i32
    %c16_i32_53 = arith.constant 16 : i32
    %106 = arith.muli %c4_i32, %c16_i32_53 : i32
    %c8_i32_54 = arith.constant 8 : i32
    %107 = arith.addi %106, %c8_i32_54 : i32
    %108 = tpu.assume_multiple %107, 8 : i32
    %109 = arith.index_cast %105 : i32 to index
    %c0_55 = arith.constant 0 : index
    %110 = vector.load %arg11[%109, %c0_55] : memref<128x128xf32, #tpu.memory_space<vmem>>, vector<8x128xf32>
    %111 = arith.truncf %97 : vector<8x128xf32> to vector<8x128xbf16>
    %cst_56 = arith.constant dense<0.000000e+00> : vector<8x128xf32>
    %112 = tpu.matmul %111, %9, %cst_56 {dimension_numbers = #tpu.dot_dimension_numbers<[1], [0], [0], [1], [0, 0, 1, 1], [], []>} : vector<8x128xbf16>, vector<128x128xbf16>, vector<8x128xf32> -> vector<8x128xf32>
    %113 = arith.addf %110, %112 : vector<8x128xf32>
    %114 = arith.index_cast %108 : i32 to index
    %c0_57 = arith.constant 0 : index
    %115 = vector.load %arg11[%114, %c0_57] : memref<128x128xf32, #tpu.memory_space<vmem>>, vector<8x128xf32>
    %116 = arith.truncf %99 : vector<8x128xf32> to vector<8x128xbf16>
    %cst_58 = arith.constant dense<0.000000e+00> : vector<8x128xf32>
    %117 = tpu.matmul %116, %9, %cst_58 {dimension_numbers = #tpu.dot_dimension_numbers<[1], [0], [0], [1], [0, 0, 1, 1], [], []>} : vector<8x128xbf16>, vector<128x128xbf16>, vector<8x128xf32> -> vector<8x128xf32>
    %118 = arith.addf %115, %117 : vector<8x128xf32>
    %cst_59 = arith.constant 0.000000e+00 : f32
    %119 = vector.broadcast %cst_59 : f32 to vector<8x128xf32>
    %120 = arith.maximumf %113, %119 : vector<8x128xf32>
    %cst_60 = arith.constant 0.000000e+00 : f32
    %121 = vector.broadcast %cst_60 : f32 to vector<8x128xf32>
    %122 = arith.maximumf %118, %121 : vector<8x128xf32>
    %123 = arith.index_cast %105 : i32 to index
    %c0_61 = arith.constant 0 : index
    %124 = vector.load %arg11[%123, %c0_61] : memref<128x128xf32, #tpu.memory_space<vmem>>, vector<8x128xf32>
    tpu.vector_store %arg11[%123, %c0_61], %120 {strides = array<i32>} : memref<128x128xf32, #tpu.memory_space<vmem>>, vector<8x128xf32>,
    %125 = arith.index_cast %108 : i32 to index
    %c0_62 = arith.constant 0 : index
    %126 = vector.load %arg11[%125, %c0_62] : memref<128x128xf32, #tpu.memory_space<vmem>>, vector<8x128xf32>
    tpu.vector_store %arg11[%125, %c0_62], %122 {strides = array<i32>} : memref<128x128xf32, #tpu.memory_space<vmem>>, vector<8x128xf32>,
    %c5_i32 = arith.constant 5 : i32
    %c16_i32_63 = arith.constant 16 : i32
    %127 = arith.muli %c5_i32, %c16_i32_63 : i32
    %128 = tpu.assume_multiple %127, 16 : i32
    %c16_i32_64 = arith.constant 16 : i32
    %129 = arith.muli %c5_i32, %c16_i32_64 : i32
    %c8_i32_65 = arith.constant 8 : i32
    %130 = arith.addi %129, %c8_i32_65 : i32
    %131 = tpu.assume_multiple %130, 8 : i32
    %132 = arith.index_cast %128 : i32 to index
    %c0_66 = arith.constant 0 : index
    %133 = vector.load %arg11[%132, %c0_66] : memref<128x128xf32, #tpu.memory_space<vmem>>, vector<8x128xf32>
    %134 = arith.truncf %120 : vector<8x128xf32> to vector<8x128xbf16>
    %cst_67 = arith.constant dense<0.000000e+00> : vector<8x128xf32>
    %135 = tpu.matmul %134, %9, %cst_67 {dimension_numbers = #tpu.dot_dimension_numbers<[1], [0], [0], [1], [0, 0, 1, 1], [], []>} : vector<8x128xbf16>, vector<128x128xbf16>, vector<8x128xf32> -> vector<8x128xf32>
    %136 = arith.addf %133, %135 : vector<8x128xf32>
    %137 = arith.index_cast %131 : i32 to index
    %c0_68 = arith.constant 0 : index
    %138 = vector.load %arg11[%137, %c0_68] : memref<128x128xf32, #tpu.memory_space<vmem>>, vector<8x128xf32>
    %139 = arith.truncf %122 : vector<8x128xf32> to vector<8x128xbf16>
    %cst_69 = arith.constant dense<0.000000e+00> : vector<8x128xf32>
    %140 = tpu.matmul %139, %9, %cst_69 {dimension_numbers = #tpu.dot_dimension_numbers<[1], [0], [0], [1], [0, 0, 1, 1], [], []>} : vector<8x128xbf16>, vector<128x128xbf16>, vector<8x128xf32> -> vector<8x128xf32>
    %141 = arith.addf %138, %140 : vector<8x128xf32>
    %cst_70 = arith.constant 0.000000e+00 : f32
    %142 = vector.broadcast %cst_70 : f32 to vector<8x128xf32>
    %143 = arith.maximumf %136, %142 : vector<8x128xf32>
    %cst_71 = arith.constant 0.000000e+00 : f32
    %144 = vector.broadcast %cst_71 : f32 to vector<8x128xf32>
    %145 = arith.maximumf %141, %144 : vector<8x128xf32>
    %146 = arith.index_cast %128 : i32 to index
    %c0_72 = arith.constant 0 : index
    %147 = vector.load %arg11[%146, %c0_72] : memref<128x128xf32, #tpu.memory_space<vmem>>, vector<8x128xf32>
    tpu.vector_store %arg11[%146, %c0_72], %143 {strides = array<i32>} : memref<128x128xf32, #tpu.memory_space<vmem>>, vector<8x128xf32>,
    %148 = arith.index_cast %131 : i32 to index
    %c0_73 = arith.constant 0 : index
    %149 = vector.load %arg11[%148, %c0_73] : memref<128x128xf32, #tpu.memory_space<vmem>>, vector<8x128xf32>
    tpu.vector_store %arg11[%148, %c0_73], %145 {strides = array<i32>} : memref<128x128xf32, #tpu.memory_space<vmem>>, vector<8x128xf32>,
    %c6_i32 = arith.constant 6 : i32
    %c16_i32_74 = arith.constant 16 : i32
    %150 = arith.muli %c6_i32, %c16_i32_74 : i32
    %151 = tpu.assume_multiple %150, 16 : i32
    %c16_i32_75 = arith.constant 16 : i32
    %152 = arith.muli %c6_i32, %c16_i32_75 : i32
    %c8_i32_76 = arith.constant 8 : i32
    %153 = arith.addi %152, %c8_i32_76 : i32
    %154 = tpu.assume_multiple %153, 8 : i32
    %155 = arith.index_cast %151 : i32 to index
    %c0_77 = arith.constant 0 : index
    %156 = vector.load %arg11[%155, %c0_77] : memref<128x128xf32, #tpu.memory_space<vmem>>, vector<8x128xf32>
    %157 = arith.truncf %143 : vector<8x128xf32> to vector<8x128xbf16>
    %cst_78 = arith.constant dense<0.000000e+00> : vector<8x128xf32>
    %158 = tpu.matmul %157, %9, %cst_78 {dimension_numbers = #tpu.dot_dimension_numbers<[1], [0], [0], [1], [0, 0, 1, 1], [], []>} : vector<8x128xbf16>, vector<128x128xbf16>, vector<8x128xf32> -> vector<8x128xf32>
    %159 = arith.addf %156, %158 : vector<8x128xf32>
    %160 = arith.index_cast %154 : i32 to index
    %c0_79 = arith.constant 0 : index
    %161 = vector.load %arg11[%160, %c0_79] : memref<128x128xf32, #tpu.memory_space<vmem>>, vector<8x128xf32>
    %162 = arith.truncf %145 : vector<8x128xf32> to vector<8x128xbf16>
    %cst_80 = arith.constant dense<0.000000e+00> : vector<8x128xf32>
    %163 = tpu.matmul %162, %9, %cst_80 {dimension_numbers = #tpu.dot_dimension_numbers<[1], [0], [0], [1], [0, 0, 1, 1], [], []>} : vector<8x128xbf16>, vector<128x128xbf16>, vector<8x128xf32> -> vector<8x128xf32>
    %164 = arith.addf %161, %163 : vector<8x128xf32>
    %cst_81 = arith.constant 0.000000e+00 : f32
    %165 = vector.broadcast %cst_81 : f32 to vector<8x128xf32>
    %166 = arith.maximumf %159, %165 : vector<8x128xf32>
    %cst_82 = arith.constant 0.000000e+00 : f32
    %167 = vector.broadcast %cst_82 : f32 to vector<8x128xf32>
    %168 = arith.maximumf %164, %167 : vector<8x128xf32>
    %169 = arith.index_cast %151 : i32 to index
    %c0_83 = arith.constant 0 : index
    %170 = vector.load %arg11[%169, %c0_83] : memref<128x128xf32, #tpu.memory_space<vmem>>, vector<8x128xf32>
    tpu.vector_store %arg11[%169, %c0_83], %166 {strides = array<i32>} : memref<128x128xf32, #tpu.memory_space<vmem>>, vector<8x128xf32>,
    %171 = arith.index_cast %154 : i32 to index
    %c0_84 = arith.constant 0 : index
    %172 = vector.load %arg11[%171, %c0_84] : memref<128x128xf32, #tpu.memory_space<vmem>>, vector<8x128xf32>
    tpu.vector_store %arg11[%171, %c0_84], %168 {strides = array<i32>} : memref<128x128xf32, #tpu.memory_space<vmem>>, vector<8x128xf32>,
    %c7_i32 = arith.constant 7 : i32
    %c16_i32_85 = arith.constant 16 : i32
    %173 = arith.muli %c7_i32, %c16_i32_85 : i32
    %174 = tpu.assume_multiple %173, 16 : i32
    %c16_i32_86 = arith.constant 16 : i32
    %175 = arith.muli %c7_i32, %c16_i32_86 : i32
    %c8_i32_87 = arith.constant 8 : i32
    %176 = arith.addi %175, %c8_i32_87 : i32
    %177 = tpu.assume_multiple %176, 8 : i32
    %178 = arith.index_cast %174 : i32 to index
    %c0_88 = arith.constant 0 : index
    %179 = vector.load %arg11[%178, %c0_88] : memref<128x128xf32, #tpu.memory_space<vmem>>, vector<8x128xf32>
    %180 = arith.truncf %166 : vector<8x128xf32> to vector<8x128xbf16>
    %cst_89 = arith.constant dense<0.000000e+00> : vector<8x128xf32>
    %181 = tpu.matmul %180, %9, %cst_89 {dimension_numbers = #tpu.dot_dimension_numbers<[1], [0], [0], [1], [0, 0, 1, 1], [], []>} : vector<8x128xbf16>, vector<128x128xbf16>, vector<8x128xf32> -> vector<8x128xf32>
    %182 = arith.addf %179, %181 : vector<8x128xf32>
    %183 = arith.index_cast %177 : i32 to index
    %c0_90 = arith.constant 0 : index
    %184 = vector.load %arg11[%183, %c0_90] : memref<128x128xf32, #tpu.memory_space<vmem>>, vector<8x128xf32>
    %185 = arith.truncf %168 : vector<8x128xf32> to vector<8x128xbf16>
    %cst_91 = arith.constant dense<0.000000e+00> : vector<8x128xf32>
    %186 = tpu.matmul %185, %9, %cst_91 {dimension_numbers = #tpu.dot_dimension_numbers<[1], [0], [0], [1], [0, 0, 1, 1], [], []>} : vector<8x128xbf16>, vector<128x128xbf16>, vector<8x128xf32> -> vector<8x128xf32>
    %187 = arith.addf %184, %186 : vector<8x128xf32>
    %cst_92 = arith.constant 0.000000e+00 : f32
    %188 = vector.broadcast %cst_92 : f32 to vector<8x128xf32>
    %189 = arith.maximumf %182, %188 : vector<8x128xf32>
    %cst_93 = arith.constant 0.000000e+00 : f32
    %190 = vector.broadcast %cst_93 : f32 to vector<8x128xf32>
    %191 = arith.maximumf %187, %190 : vector<8x128xf32>
    %192 = arith.index_cast %174 : i32 to index
    %c0_94 = arith.constant 0 : index
    %193 = vector.load %arg11[%192, %c0_94] : memref<128x128xf32, #tpu.memory_space<vmem>>, vector<8x128xf32>
    tpu.vector_store %arg11[%192, %c0_94], %189 {strides = array<i32>} : memref<128x128xf32, #tpu.memory_space<vmem>>, vector<8x128xf32>,
    %194 = arith.index_cast %177 : i32 to index
    %c0_95 = arith.constant 0 : index
    %195 = vector.load %arg11[%194, %c0_95] : memref<128x128xf32, #tpu.memory_space<vmem>>, vector<8x128xf32>
    tpu.vector_store %arg11[%194, %c0_95], %191 {strides = array<i32>} : memref<128x128xf32, #tpu.memory_space<vmem>>, vector<8x128xf32>,
    %c8_i32_96 = arith.constant 8 : i32
    %c0_97 = arith.constant 0 : index
    %c0_98 = arith.constant 0 : index
    %196 = vector.load %arg5[%c0_97, %c0_98] : memref<128x128xbf16, #tpu.memory_space<vmem>>, vector<128x128xbf16>
    %c0_99 = arith.constant 0 : index
    %c0_100 = arith.constant 0 : index
    %197 = vector.load %arg7[%c0_99, %c0_100] : memref<1x128xf32, #tpu.memory_space<vmem>>, vector<1x128xf32>
    %c0_101 = arith.constant 0 : index
    %c0_102 = arith.constant 0 : index
    %198 = vector.load %arg11[%c0_101, %c0_102] : memref<128x128xf32, #tpu.memory_space<vmem>>, vector<128x128xf32>
    %199 = arith.truncf %198 : vector<128x128xf32> to vector<128x128xbf16>
    %cst_103 = arith.constant dense<0.000000e+00> : vector<128x128xf32>
    %200 = tpu.matmul %199, %196, %cst_103 {dimension_numbers = #tpu.dot_dimension_numbers<[1], [0], [0], [1], [0, 0, 1, 1], [], []>} : vector<128x128xbf16>, vector<128x128xbf16>, vector<128x128xf32> -> vector<128x128xf32>
    %201 = vector.broadcast %197 : vector<1x128xf32> to vector<128x128xf32>
    %202 = arith.addf %200, %201 : vector<128x128xf32>
    %c0_104 = arith.constant 0 : index
    %c0_105 = arith.constant 0 : index
    %203 = vector.load %arg11[%c0_104, %c0_105] : memref<128x128xf32, #tpu.memory_space<vmem>>, vector<128x128xf32>
    tpu.vector_store %arg11[%c0_104, %c0_105], %202 {strides = array<i32>} : memref<128x128xf32, #tpu.memory_space<vmem>>, vector<128x128xf32>,
    %c0_106 = arith.constant 0 : index
    %c0_107 = arith.constant 0 : index
    %204 = vector.load %arg6[%c0_106, %c0_107] : memref<128x128xbf16, #tpu.memory_space<vmem>>, vector<128x128xbf16>
    %cst_108 = arith.constant 0.000000e+00 : f32
    %205 = vector.broadcast %cst_108 : f32 to vector<8x128xf32>
    %cst_109 = arith.constant 0.000000e+00 : f32
    %206 = vector.broadcast %cst_109 : f32 to vector<8x128xf32>
    %c0_i32_110 = arith.constant 0 : i32
    %c16_i32_111 = arith.constant 16 : i32
    %207 = arith.muli %c0_i32_110, %c16_i32_111 : i32
    %208 = tpu.assume_multiple %207, 16 : i32
    %c16_i32_112 = arith.constant 16 : i32
    %209 = arith.muli %c0_i32_110, %c16_i32_112 : i32
    %c8_i32_113 = arith.constant 8 : i32
    %210 = arith.addi %209, %c8_i32_113 : i32
    %211 = tpu.assume_multiple %210, 8 : i32
    %212 = arith.index_cast %208 : i32 to index
    %c0_114 = arith.constant 0 : index
    %213 = vector.load %arg11[%212, %c0_114] : memref<128x128xf32, #tpu.memory_space<vmem>>, vector<8x128xf32>
    %214 = arith.truncf %205 : vector<8x128xf32> to vector<8x128xbf16>
    %cst_115 = arith.constant dense<0.000000e+00> : vector<8x128xf32>
    %215 = tpu.matmul %214, %204, %cst_115 {dimension_numbers = #tpu.dot_dimension_numbers<[1], [0], [0], [1], [0, 0, 1, 1], [], []>} : vector<8x128xbf16>, vector<128x128xbf16>, vector<8x128xf32> -> vector<8x128xf32>
    %216 = arith.addf %213, %215 : vector<8x128xf32>
    %217 = arith.index_cast %211 : i32 to index
    %c0_116 = arith.constant 0 : index
    %218 = vector.load %arg11[%217, %c0_116] : memref<128x128xf32, #tpu.memory_space<vmem>>, vector<8x128xf32>
    %219 = arith.truncf %206 : vector<8x128xf32> to vector<8x128xbf16>
    %cst_117 = arith.constant dense<0.000000e+00> : vector<8x128xf32>
    %220 = tpu.matmul %219, %204, %cst_117 {dimension_numbers = #tpu.dot_dimension_numbers<[1], [0], [0], [1], [0, 0, 1, 1], [], []>} : vector<8x128xbf16>, vector<128x128xbf16>, vector<8x128xf32> -> vector<8x128xf32>
    %221 = arith.addf %218, %220 : vector<8x128xf32>
    %cst_118 = arith.constant 0.000000e+00 : f32
    %222 = vector.broadcast %cst_118 : f32 to vector<8x128xf32>
    %223 = arith.maximumf %216, %222 : vector<8x128xf32>
    %cst_119 = arith.constant 0.000000e+00 : f32
    %224 = vector.broadcast %cst_119 : f32 to vector<8x128xf32>
    %225 = arith.maximumf %221, %224 : vector<8x128xf32>
    %c1_i32_120 = arith.constant 1 : i32
    %c16_i32_121 = arith.constant 16 : i32
    %226 = arith.muli %c1_i32_120, %c16_i32_121 : i32
    %227 = tpu.assume_multiple %226, 16 : i32
    %c16_i32_122 = arith.constant 16 : i32
    %228 = arith.muli %c1_i32_120, %c16_i32_122 : i32
    %c8_i32_123 = arith.constant 8 : i32
    %229 = arith.addi %228, %c8_i32_123 : i32
    %230 = tpu.assume_multiple %229, 8 : i32
    %231 = arith.index_cast %227 : i32 to index
    %c0_124 = arith.constant 0 : index
    %232 = vector.load %arg11[%231, %c0_124] : memref<128x128xf32, #tpu.memory_space<vmem>>, vector<8x128xf32>
    %233 = arith.truncf %223 : vector<8x128xf32> to vector<8x128xbf16>
    %cst_125 = arith.constant dense<0.000000e+00> : vector<8x128xf32>
    %234 = tpu.matmul %233, %204, %cst_125 {dimension_numbers = #tpu.dot_dimension_numbers<[1], [0], [0], [1], [0, 0, 1, 1], [], []>} : vector<8x128xbf16>, vector<128x128xbf16>, vector<8x128xf32> -> vector<8x128xf32>
    %235 = arith.addf %232, %234 : vector<8x128xf32>
    %236 = arith.index_cast %230 : i32 to index
    %c0_126 = arith.constant 0 : index
    %237 = vector.load %arg11[%236, %c0_126] : memref<128x128xf32, #tpu.memory_space<vmem>>, vector<8x128xf32>
    %238 = arith.truncf %225 : vector<8x128xf32> to vector<8x128xbf16>
    %cst_127 = arith.constant dense<0.000000e+00> : vector<8x128xf32>
    %239 = tpu.matmul %238, %204, %cst_127 {dimension_numbers = #tpu.dot_dimension_numbers<[1], [0], [0], [1], [0, 0, 1, 1], [], []>} : vector<8x128xbf16>, vector<128x128xbf16>, vector<8x128xf32> -> vector<8x128xf32>
    %240 = arith.addf %237, %239 : vector<8x128xf32>
    %cst_128 = arith.constant 0.000000e+00 : f32
    %241 = vector.broadcast %cst_128 : f32 to vector<8x128xf32>
    %242 = arith.maximumf %235, %241 : vector<8x128xf32>
    %cst_129 = arith.constant 0.000000e+00 : f32
    %243 = vector.broadcast %cst_129 : f32 to vector<8x128xf32>
    %244 = arith.maximumf %240, %243 : vector<8x128xf32>
    %c2_i32_130 = arith.constant 2 : i32
    %c16_i32_131 = arith.constant 16 : i32
    %245 = arith.muli %c2_i32_130, %c16_i32_131 : i32
    %246 = tpu.assume_multiple %245, 16 : i32
    %c16_i32_132 = arith.constant 16 : i32
    %247 = arith.muli %c2_i32_130, %c16_i32_132 : i32
    %c8_i32_133 = arith.constant 8 : i32
    %248 = arith.addi %247, %c8_i32_133 : i32
    %249 = tpu.assume_multiple %248, 8 : i32
    %250 = arith.index_cast %246 : i32 to index
    %c0_134 = arith.constant 0 : index
    %251 = vector.load %arg11[%250, %c0_134] : memref<128x128xf32, #tpu.memory_space<vmem>>, vector<8x128xf32>
    %252 = arith.truncf %242 : vector<8x128xf32> to vector<8x128xbf16>
    %cst_135 = arith.constant dense<0.000000e+00> : vector<8x128xf32>
    %253 = tpu.matmul %252, %204, %cst_135 {dimension_numbers = #tpu.dot_dimension_numbers<[1], [0], [0], [1], [0, 0, 1, 1], [], []>} : vector<8x128xbf16>, vector<128x128xbf16>, vector<8x128xf32> -> vector<8x128xf32>
    %254 = arith.addf %251, %253 : vector<8x128xf32>
    %255 = arith.index_cast %249 : i32 to index
    %c0_136 = arith.constant 0 : index
    %256 = vector.load %arg11[%255, %c0_136] : memref<128x128xf32, #tpu.memory_space<vmem>>, vector<8x128xf32>
    %257 = arith.truncf %244 : vector<8x128xf32> to vector<8x128xbf16>
    %cst_137 = arith.constant dense<0.000000e+00> : vector<8x128xf32>
    %258 = tpu.matmul %257, %204, %cst_137 {dimension_numbers = #tpu.dot_dimension_numbers<[1], [0], [0], [1], [0, 0, 1, 1], [], []>} : vector<8x128xbf16>, vector<128x128xbf16>, vector<8x128xf32> -> vector<8x128xf32>
    %259 = arith.addf %256, %258 : vector<8x128xf32>
    %cst_138 = arith.constant 0.000000e+00 : f32
    %260 = vector.broadcast %cst_138 : f32 to vector<8x128xf32>
    %261 = arith.maximumf %254, %260 : vector<8x128xf32>
    %cst_139 = arith.constant 0.000000e+00 : f32
    %262 = vector.broadcast %cst_139 : f32 to vector<8x128xf32>
    %263 = arith.maximumf %259, %262 : vector<8x128xf32>
    %c3_i32_140 = arith.constant 3 : i32
    %c16_i32_141 = arith.constant 16 : i32
    %264 = arith.muli %c3_i32_140, %c16_i32_141 : i32
    %265 = tpu.assume_multiple %264, 16 : i32
    %c16_i32_142 = arith.constant 16 : i32
    %266 = arith.muli %c3_i32_140, %c16_i32_142 : i32
    %c8_i32_143 = arith.constant 8 : i32
    %267 = arith.addi %266, %c8_i32_143 : i32
    %268 = tpu.assume_multiple %267, 8 : i32
    %269 = arith.index_cast %265 : i32 to index
    %c0_144 = arith.constant 0 : index
    %270 = vector.load %arg11[%269, %c0_144] : memref<128x128xf32, #tpu.memory_space<vmem>>, vector<8x128xf32>
    %271 = arith.truncf %261 : vector<8x128xf32> to vector<8x128xbf16>
    %cst_145 = arith.constant dense<0.000000e+00> : vector<8x128xf32>
    %272 = tpu.matmul %271, %204, %cst_145 {dimension_numbers = #tpu.dot_dimension_numbers<[1], [0], [0], [1], [0, 0, 1, 1], [], []>} : vector<8x128xbf16>, vector<128x128xbf16>, vector<8x128xf32> -> vector<8x128xf32>
    %273 = arith.addf %270, %272 : vector<8x128xf32>
    %274 = arith.index_cast %268 : i32 to index
    %c0_146 = arith.constant 0 : index
    %275 = vector.load %arg11[%274, %c0_146] : memref<128x128xf32, #tpu.memory_space<vmem>>, vector<8x128xf32>
    %276 = arith.truncf %263 : vector<8x128xf32> to vector<8x128xbf16>
    %cst_147 = arith.constant dense<0.000000e+00> : vector<8x128xf32>
    %277 = tpu.matmul %276, %204, %cst_147 {dimension_numbers = #tpu.dot_dimension_numbers<[1], [0], [0], [1], [0, 0, 1, 1], [], []>} : vector<8x128xbf16>, vector<128x128xbf16>, vector<8x128xf32> -> vector<8x128xf32>
    %278 = arith.addf %275, %277 : vector<8x128xf32>
    %cst_148 = arith.constant 0.000000e+00 : f32
    %279 = vector.broadcast %cst_148 : f32 to vector<8x128xf32>
    %280 = arith.maximumf %273, %279 : vector<8x128xf32>
    %cst_149 = arith.constant 0.000000e+00 : f32
    %281 = vector.broadcast %cst_149 : f32 to vector<8x128xf32>
    %282 = arith.maximumf %278, %281 : vector<8x128xf32>
    %c4_i32_150 = arith.constant 4 : i32
    %c16_i32_151 = arith.constant 16 : i32
    %283 = arith.muli %c4_i32_150, %c16_i32_151 : i32
    %284 = tpu.assume_multiple %283, 16 : i32
    %c16_i32_152 = arith.constant 16 : i32
    %285 = arith.muli %c4_i32_150, %c16_i32_152 : i32
    %c8_i32_153 = arith.constant 8 : i32
    %286 = arith.addi %285, %c8_i32_153 : i32
    %287 = tpu.assume_multiple %286, 8 : i32
    %288 = arith.index_cast %284 : i32 to index
    %c0_154 = arith.constant 0 : index
    %289 = vector.load %arg11[%288, %c0_154] : memref<128x128xf32, #tpu.memory_space<vmem>>, vector<8x128xf32>
    %290 = arith.truncf %280 : vector<8x128xf32> to vector<8x128xbf16>
    %cst_155 = arith.constant dense<0.000000e+00> : vector<8x128xf32>
    %291 = tpu.matmul %290, %204, %cst_155 {dimension_numbers = #tpu.dot_dimension_numbers<[1], [0], [0], [1], [0, 0, 1, 1], [], []>} : vector<8x128xbf16>, vector<128x128xbf16>, vector<8x128xf32> -> vector<8x128xf32>
    %292 = arith.addf %289, %291 : vector<8x128xf32>
    %293 = arith.index_cast %287 : i32 to index
    %c0_156 = arith.constant 0 : index
    %294 = vector.load %arg11[%293, %c0_156] : memref<128x128xf32, #tpu.memory_space<vmem>>, vector<8x128xf32>
    %295 = arith.truncf %282 : vector<8x128xf32> to vector<8x128xbf16>
    %cst_157 = arith.constant dense<0.000000e+00> : vector<8x128xf32>
    %296 = tpu.matmul %295, %204, %cst_157 {dimension_numbers = #tpu.dot_dimension_numbers<[1], [0], [0], [1], [0, 0, 1, 1], [], []>} : vector<8x128xbf16>, vector<128x128xbf16>, vector<8x128xf32> -> vector<8x128xf32>
    %297 = arith.addf %294, %296 : vector<8x128xf32>
    %cst_158 = arith.constant 0.000000e+00 : f32
    %298 = vector.broadcast %cst_158 : f32 to vector<8x128xf32>
    %299 = arith.maximumf %292, %298 : vector<8x128xf32>
    %cst_159 = arith.constant 0.000000e+00 : f32
    %300 = vector.broadcast %cst_159 : f32 to vector<8x128xf32>
    %301 = arith.maximumf %297, %300 : vector<8x128xf32>
    %c5_i32_160 = arith.constant 5 : i32
    %c16_i32_161 = arith.constant 16 : i32
    %302 = arith.muli %c5_i32_160, %c16_i32_161 : i32
    %303 = tpu.assume_multiple %302, 16 : i32
    %c16_i32_162 = arith.constant 16 : i32
    %304 = arith.muli %c5_i32_160, %c16_i32_162 : i32
    %c8_i32_163 = arith.constant 8 : i32
    %305 = arith.addi %304, %c8_i32_163 : i32
    %306 = tpu.assume_multiple %305, 8 : i32
    %307 = arith.index_cast %303 : i32 to index
    %c0_164 = arith.constant 0 : index
    %308 = vector.load %arg11[%307, %c0_164] : memref<128x128xf32, #tpu.memory_space<vmem>>, vector<8x128xf32>
    %309 = arith.truncf %299 : vector<8x128xf32> to vector<8x128xbf16>
    %cst_165 = arith.constant dense<0.000000e+00> : vector<8x128xf32>
    %310 = tpu.matmul %309, %204, %cst_165 {dimension_numbers = #tpu.dot_dimension_numbers<[1], [0], [0], [1], [0, 0, 1, 1], [], []>} : vector<8x128xbf16>, vector<128x128xbf16>, vector<8x128xf32> -> vector<8x128xf32>
    %311 = arith.addf %308, %310 : vector<8x128xf32>
    %312 = arith.index_cast %306 : i32 to index
    %c0_166 = arith.constant 0 : index
    %313 = vector.load %arg11[%312, %c0_166] : memref<128x128xf32, #tpu.memory_space<vmem>>, vector<8x128xf32>
    %314 = arith.truncf %301 : vector<8x128xf32> to vector<8x128xbf16>
    %cst_167 = arith.constant dense<0.000000e+00> : vector<8x128xf32>
    %315 = tpu.matmul %314, %204, %cst_167 {dimension_numbers = #tpu.dot_dimension_numbers<[1], [0], [0], [1], [0, 0, 1, 1], [], []>} : vector<8x128xbf16>, vector<128x128xbf16>, vector<8x128xf32> -> vector<8x128xf32>
    %316 = arith.addf %313, %315 : vector<8x128xf32>
    %cst_168 = arith.constant 0.000000e+00 : f32
    %317 = vector.broadcast %cst_168 : f32 to vector<8x128xf32>
    %318 = arith.maximumf %311, %317 : vector<8x128xf32>
    %cst_169 = arith.constant 0.000000e+00 : f32
    %319 = vector.broadcast %cst_169 : f32 to vector<8x128xf32>
    %320 = arith.maximumf %316, %319 : vector<8x128xf32>
    %c6_i32_170 = arith.constant 6 : i32
    %c16_i32_171 = arith.constant 16 : i32
    %321 = arith.muli %c6_i32_170, %c16_i32_171 : i32
    %322 = tpu.assume_multiple %321, 16 : i32
    %c16_i32_172 = arith.constant 16 : i32
    %323 = arith.muli %c6_i32_170, %c16_i32_172 : i32
    %c8_i32_173 = arith.constant 8 : i32
    %324 = arith.addi %323, %c8_i32_173 : i32
    %325 = tpu.assume_multiple %324, 8 : i32
    %326 = arith.index_cast %322 : i32 to index
    %c0_174 = arith.constant 0 : index
    %327 = vector.load %arg11[%326, %c0_174] : memref<128x128xf32, #tpu.memory_space<vmem>>, vector<8x128xf32>
    %328 = arith.truncf %318 : vector<8x128xf32> to vector<8x128xbf16>
    %cst_175 = arith.constant dense<0.000000e+00> : vector<8x128xf32>
    %329 = tpu.matmul %328, %204, %cst_175 {dimension_numbers = #tpu.dot_dimension_numbers<[1], [0], [0], [1], [0, 0, 1, 1], [], []>} : vector<8x128xbf16>, vector<128x128xbf16>, vector<8x128xf32> -> vector<8x128xf32>
    %330 = arith.addf %327, %329 : vector<8x128xf32>
    %331 = arith.index_cast %325 : i32 to index
    %c0_176 = arith.constant 0 : index
    %332 = vector.load %arg11[%331, %c0_176] : memref<128x128xf32, #tpu.memory_space<vmem>>, vector<8x128xf32>
    %333 = arith.truncf %320 : vector<8x128xf32> to vector<8x128xbf16>
    %cst_177 = arith.constant dense<0.000000e+00> : vector<8x128xf32>
    %334 = tpu.matmul %333, %204, %cst_177 {dimension_numbers = #tpu.dot_dimension_numbers<[1], [0], [0], [1], [0, 0, 1, 1], [], []>} : vector<8x128xbf16>, vector<128x128xbf16>, vector<8x128xf32> -> vector<8x128xf32>
    %335 = arith.addf %332, %334 : vector<8x128xf32>
    %cst_178 = arith.constant 0.000000e+00 : f32
    %336 = vector.broadcast %cst_178 : f32 to vector<8x128xf32>
    %337 = arith.maximumf %330, %336 : vector<8x128xf32>
    %cst_179 = arith.constant 0.000000e+00 : f32
    %338 = vector.broadcast %cst_179 : f32 to vector<8x128xf32>
    %339 = arith.maximumf %335, %338 : vector<8x128xf32>
    %c7_i32_180 = arith.constant 7 : i32
    %c16_i32_181 = arith.constant 16 : i32
    %340 = arith.muli %c7_i32_180, %c16_i32_181 : i32
    %341 = tpu.assume_multiple %340, 16 : i32
    %c16_i32_182 = arith.constant 16 : i32
    %342 = arith.muli %c7_i32_180, %c16_i32_182 : i32
    %c8_i32_183 = arith.constant 8 : i32
    %343 = arith.addi %342, %c8_i32_183 : i32
    %344 = tpu.assume_multiple %343, 8 : i32
    %345 = arith.index_cast %341 : i32 to index
    %c0_184 = arith.constant 0 : index
    %346 = vector.load %arg11[%345, %c0_184] : memref<128x128xf32, #tpu.memory_space<vmem>>, vector<8x128xf32>
    %347 = arith.truncf %337 : vector<8x128xf32> to vector<8x128xbf16>
    %cst_185 = arith.constant dense<0.000000e+00> : vector<8x128xf32>
    %348 = tpu.matmul %347, %204, %cst_185 {dimension_numbers = #tpu.dot_dimension_numbers<[1], [0], [0], [1], [0, 0, 1, 1], [], []>} : vector<8x128xbf16>, vector<128x128xbf16>, vector<8x128xf32> -> vector<8x128xf32>
    %349 = arith.addf %346, %348 : vector<8x128xf32>
    %350 = arith.index_cast %344 : i32 to index
    %c0_186 = arith.constant 0 : index
    %351 = vector.load %arg11[%350, %c0_186] : memref<128x128xf32, #tpu.memory_space<vmem>>, vector<8x128xf32>
    %352 = arith.truncf %339 : vector<8x128xf32> to vector<8x128xbf16>
    %cst_187 = arith.constant dense<0.000000e+00> : vector<8x128xf32>
    %353 = tpu.matmul %352, %204, %cst_187 {dimension_numbers = #tpu.dot_dimension_numbers<[1], [0], [0], [1], [0, 0, 1, 1], [], []>} : vector<8x128xbf16>, vector<128x128xbf16>, vector<8x128xf32> -> vector<8x128xf32>
    %354 = arith.addf %351, %353 : vector<8x128xf32>
    %cst_188 = arith.constant 0.000000e+00 : f32
    %355 = vector.broadcast %cst_188 : f32 to vector<8x128xf32>
    %356 = arith.maximumf %349, %355 : vector<8x128xf32>
    %cst_189 = arith.constant 0.000000e+00 : f32
    %357 = vector.broadcast %cst_189 : f32 to vector<8x128xf32>
    %358 = arith.maximumf %354, %357 : vector<8x128xf32>
    %c8_i32_190 = arith.constant 8 : i32
    %c0_191 = arith.constant 0 : index
    %c0_192 = arith.constant 0 : index
    %359 = vector.load %arg8[%c0_191, %c0_192] : memref<128x128xbf16, #tpu.memory_space<vmem>>, vector<128x128xbf16>
    %c0_193 = arith.constant 0 : index
    %c0_194 = arith.constant 0 : index
    %360 = vector.load %arg9[%c0_193, %c0_194] : memref<1x128xf32, #tpu.memory_space<vmem>>, vector<1x128xf32>
    %361 = arith.truncf %356 : vector<8x128xf32> to vector<8x128xbf16>
    %cst_195 = arith.constant dense<0.000000e+00> : vector<8x128xf32>
    %362 = tpu.matmul %361, %359, %cst_195 {dimension_numbers = #tpu.dot_dimension_numbers<[1], [0], [0], [1], [0, 0, 1, 1], [], []>} : vector<8x128xbf16>, vector<128x128xbf16>, vector<8x128xf32> -> vector<8x128xf32>
    %363 = vector.broadcast %360 : vector<1x128xf32> to vector<8x128xf32>
    %364 = arith.addf %362, %363 : vector<8x128xf32>
    %cst_196 = arith.constant 0.000000e+00 : f32
    %365 = vector.broadcast %cst_196 : f32 to vector<8x128xf32>
    %366 = arith.maximumf %364, %365 : vector<8x128xf32>
    %367 = tpu.iota {dimensions = array<i32: 1>} : vector<8x128xi32>
    %c4_i32_197 = arith.constant 4 : i32
    %368 = vector.broadcast %c4_i32_197 : i32 to vector<8x128xi32>
    %369 = arith.cmpi slt, %367, %368 : vector<8x128xi32>
    %cst_198 = arith.constant -1.000000e+30 : f32
    %370 = vector.broadcast %cst_198 : f32 to vector<8x128xf32>
    %371 = arith.select %369, %366, %370 : vector<8x128xi1>, vector<8x128xf32>
    %cst_199 = arith.constant dense<0xFF800000> : vector<8xf32>
    %372 = vector.multi_reduction <maximumf>, %371, %cst_199 [1] : vector<8x128xf32> to vector<8xf32>
    %373 = vector.shape_cast %372 : vector<8xf32> to vector<8x1xf32>
    %374 = vector.broadcast %373 : vector<8x1xf32> to vector<8x128xf32>
    %375 = arith.subf %371, %374 : vector<8x128xf32>
    %376 = math.exp %375 : vector<8x128xf32>
    %cst_200 = arith.constant dense<0.000000e+00> : vector<8xf32>
    %377 = vector.multi_reduction <add>, %376, %cst_200 [1] : vector<8x128xf32> to vector<8xf32>
    %378 = vector.shape_cast %377 : vector<8xf32> to vector<8x1xf32>
    %379 = math.log %378 : vector<8x1xf32>
    %380 = arith.addf %373, %379 : vector<8x1xf32>
    %381 = vector.broadcast %380 : vector<8x1xf32> to vector<8x128xf32>
    %382 = arith.subf %371, %381 : vector<8x128xf32>
    %c0_201 = arith.constant 0 : index
    %c0_202 = arith.constant 0 : index
    %383 = vector.load %arg10[%c0_201, %c0_202] : memref<16x128xf32, #tpu.memory_space<vmem>>, vector<8x128xf32>
    tpu.vector_store %arg10[%c0_201, %c0_202], %382 {strides = array<i32>} : memref<16x128xf32, #tpu.memory_space<vmem>>, vector<8x128xf32>,
    %384 = arith.truncf %358 : vector<8x128xf32> to vector<8x128xbf16>
    %cst_203 = arith.constant dense<0.000000e+00> : vector<8x128xf32>
    %385 = tpu.matmul %384, %359, %cst_203 {dimension_numbers = #tpu.dot_dimension_numbers<[1], [0], [0], [1], [0, 0, 1, 1], [], []>} : vector<8x128xbf16>, vector<128x128xbf16>, vector<8x128xf32> -> vector<8x128xf32>
    %386 = vector.broadcast %360 : vector<1x128xf32> to vector<8x128xf32>
    %387 = arith.addf %385, %386 : vector<8x128xf32>
    %cst_204 = arith.constant 0.000000e+00 : f32
    %388 = vector.broadcast %cst_204 : f32 to vector<8x128xf32>
    %389 = arith.maximumf %387, %388 : vector<8x128xf32>
    %390 = tpu.iota {dimensions = array<i32: 1>} : vector<8x128xi32>
    %c4_i32_205 = arith.constant 4 : i32
    %391 = vector.broadcast %c4_i32_205 : i32 to vector<8x128xi32>
    %392 = arith.cmpi slt, %390, %391 : vector<8x128xi32>
    %cst_206 = arith.constant -1.000000e+30 : f32
    %393 = vector.broadcast %cst_206 : f32 to vector<8x128xf32>
    %394 = arith.select %392, %389, %393 : vector<8x128xi1>, vector<8x128xf32>
    %cst_207 = arith.constant dense<0xFF800000> : vector<8xf32>
    %395 = vector.multi_reduction <maximumf>, %394, %cst_207 [1] : vector<8x128xf32> to vector<8xf32>
    %396 = vector.shape_cast %395 : vector<8xf32> to vector<8x1xf32>
    %397 = vector.broadcast %396 : vector<8x1xf32> to vector<8x128xf32>
    %398 = arith.subf %394, %397 : vector<8x128xf32>
    %399 = math.exp %398 : vector<8x128xf32>
    %cst_208 = arith.constant dense<0.000000e+00> : vector<8xf32>
    %400 = vector.multi_reduction <add>, %399, %cst_208 [1] : vector<8x128xf32> to vector<8xf32>
    %401 = vector.shape_cast %400 : vector<8xf32> to vector<8x1xf32>
    %402 = math.log %401 : vector<8x1xf32>
    %403 = arith.addf %396, %402 : vector<8x1xf32>
    %404 = vector.broadcast %403 : vector<8x1xf32> to vector<8x128xf32>
    %405 = arith.subf %394, %404 : vector<8x128xf32>
    %c8 = arith.constant 8 : index
    %c0_209 = arith.constant 0 : index
    %406 = vector.load %arg10[%c8, %c0_209] : memref<16x128xf32, #tpu.memory_space<vmem>>, vector<8x128xf32>
    tpu.vector_store %arg10[%c8, %c0_209], %405 {strides = array<i32>} : memref<16x128xf32, #tpu.memory_space<vmem>>, vector<8x128xf32>,
    return
  }
  func.func @transform_0(%arg0: i32) -> (i32, i32) {
    %c0_i32 = arith.constant 0 : i32
    %c0_i32_0 = arith.constant 0 : i32
    return %arg0, %c0_i32 : i32, i32
  }
  func.func @transform_1(%arg0: i32) -> (i32, i32) {
    %c0_i32 = arith.constant 0 : i32
    %c0_i32_0 = arith.constant 0 : i32
    %c0_i32_1 = arith.constant 0 : i32
    return %c0_i32, %c0_i32_0 : i32, i32
  }
  func.func @transform_2(%arg0: i32) -> (i32, i32) {
    %c0_i32 = arith.constant 0 : i32
    %c0_i32_0 = arith.constant 0 : i32
    %c0_i32_1 = arith.constant 0 : i32
    return %c0_i32, %c0_i32_0 : i32, i32
  }
  func.func @transform_3(%arg0: i32) -> (i32, i32) {
    %c0_i32 = arith.constant 0 : i32
    %c0_i32_0 = arith.constant 0 : i32
    %c0_i32_1 = arith.constant 0 : i32
    return %c0_i32, %c0_i32_0 : i32, i32
  }
  func.func @transform_4(%arg0: i32) -> (i32, i32) {
    %c0_i32 = arith.constant 0 : i32
    %c0_i32_0 = arith.constant 0 : i32
    %c0_i32_1 = arith.constant 0 : i32
    return %c0_i32, %c0_i32_0 : i32, i32
  }
  func.func @transform_5(%arg0: i32) -> (i32, i32) {
    %c0_i32 = arith.constant 0 : i32
    %c0_i32_0 = arith.constant 0 : i32
    %c0_i32_1 = arith.constant 0 : i32
    return %c0_i32, %c0_i32_0 : i32, i32
  }
  func.func @transform_6(%arg0: i32) -> (i32, i32) {
    %c0_i32 = arith.constant 0 : i32
    %c0_i32_0 = arith.constant 0 : i32
    %c0_i32_1 = arith.constant 0 : i32
    return %c0_i32, %c0_i32_0 : i32, i32
  }
  func.func @transform_7(%arg0: i32) -> (i32, i32) {
    %c0_i32 = arith.constant 0 : i32
    %c0_i32_0 = arith.constant 0 : i32
    %c0_i32_1 = arith.constant 0 : i32
    return %c0_i32, %c0_i32_0 : i32, i32
  }
  func.func @transform_8(%arg0: i32) -> (i32, i32) {
    %c0_i32 = arith.constant 0 : i32
    %c0_i32_0 = arith.constant 0 : i32
    %c0_i32_1 = arith.constant 0 : i32
    return %c0_i32, %c0_i32_0 : i32, i32
  }
  func.func @transform_9(%arg0: i32) -> (i32, i32) {
    %c0_i32 = arith.constant 0 : i32
    %c0_i32_0 = arith.constant 0 : i32
    return %arg0, %c0_i32 : i32, i32
  }
}

module attributes {stable_mosaic.version = 11 : i64} {
  func.func @kernel(%arg0: i32, %arg1: memref<128x1xf32, #tpu.memory_space<vmem>>, %arg2: memref<1x128xf32, #tpu.memory_space<vmem>>, %arg3: memref<128x128xbf16, #tpu.memory_space<vmem>>, %arg4: memref<1x128xf32, #tpu.memory_space<vmem>>, %arg5: memref<128x128xbf16, #tpu.memory_space<vmem>>, %arg6: memref<128x128xbf16, #tpu.memory_space<vmem>>, %arg7: memref<1x128xf32, #tpu.memory_space<vmem>>, %arg8: memref<128x128xbf16, #tpu.memory_space<vmem>>, %arg9: memref<1x128xf32, #tpu.memory_space<vmem>>, %arg10: memref<16x128xf32, #tpu.memory_space<vmem>>, %arg11: memref<128x128xf32, #tpu.memory_space<vmem>>) attributes {dimension_semantics = [#tpu.dimension_semantics<parallel>], iteration_bounds = array<i64: 1>, scalar_prefetch = 0 : i64, scratch_operands = 1 : i64, tpu.core_type = #tpu.core_type<tc>, window_params = [{transform_indices = @transform_0, window_bounds = array<i64: 128, 1>}, {pipeline_mode = #tpu.pipeline_mode<synchronous>, transform_indices = @transform_1, window_bounds = array<i64: 1, 128>}, {pipeline_mode = #tpu.pipeline_mode<synchronous>, transform_indices = @transform_2, window_bounds = array<i64: 128, 128>}, {pipeline_mode = #tpu.pipeline_mode<synchronous>, transform_indices = @transform_3, window_bounds = array<i64: 1, 128>}, {pipeline_mode = #tpu.pipeline_mode<synchronous>, transform_indices = @transform_4, window_bounds = array<i64: 128, 128>}, {pipeline_mode = #tpu.pipeline_mode<synchronous>, transform_indices = @transform_5, window_bounds = array<i64: 128, 128>}, {pipeline_mode = #tpu.pipeline_mode<synchronous>, transform_indices = @transform_6, window_bounds = array<i64: 1, 128>}, {pipeline_mode = #tpu.pipeline_mode<synchronous>, transform_indices = @transform_7, window_bounds = array<i64: 128, 128>}, {pipeline_mode = #tpu.pipeline_mode<synchronous>, transform_indices = @transform_8, window_bounds = array<i64: 1, 128>}, {transform_indices = @transform_9, window_bounds = array<i64: 16, 128>}]} {
    %c0 = arith.constant 0 : index
    %c0_0 = arith.constant 0 : index
    %0 = vector.load %arg1[%c0, %c0_0] : memref<128x1xf32, #tpu.memory_space<vmem>>, vector<128x1xf32>
    %c0_1 = arith.constant 0 : index
    %c0_2 = arith.constant 0 : index
    %1 = vector.load %arg2[%c0_1, %c0_2] : memref<1x128xf32, #tpu.memory_space<vmem>>, vector<1x128xf32>
    %2 = vector.broadcast %0 : vector<128x1xf32> to vector<128x128xf32>
    %3 = vector.broadcast %1 : vector<1x128xf32> to vector<128x128xf32>
    %4 = arith.mulf %2, %3 : vector<128x128xf32>
    %c0_3 = arith.constant 0 : index
    %c0_4 = arith.constant 0 : index
    %5 = vector.load %arg4[%c0_3, %c0_4] : memref<1x128xf32, #tpu.memory_space<vmem>>, vector<1x128xf32>
    %6 = vector.broadcast %5 : vector<1x128xf32> to vector<128x128xf32>
    %7 = arith.addf %4, %6 : vector<128x128xf32>
    %c0_5 = arith.constant 0 : index
    %c0_6 = arith.constant 0 : index
    %8 = vector.load %arg11[%c0_5, %c0_6] : memref<128x128xf32, #tpu.memory_space<vmem>>, vector<128x128xf32>
    tpu.vector_store %arg11[%c0_5, %c0_6], %7 {strides = array<i32>} : memref<128x128xf32, #tpu.memory_space<vmem>>, vector<128x128xf32>,
    %c0_7 = arith.constant 0 : index
    %c0_8 = arith.constant 0 : index
    %9 = vector.load %arg3[%c0_7, %c0_8] : memref<128x128xbf16, #tpu.memory_space<vmem>>, vector<128x128xbf16>
    %cst = arith.constant 0.000000e+00 : f32
    %10 = vector.broadcast %cst : f32 to vector<8x128xf32>
    %cst_9 = arith.constant 0.000000e+00 : f32
    %11 = vector.broadcast %cst_9 : f32 to vector<8x128xf32>
    %c0_i32 = arith.constant 0 : i32
    %c16_i32 = arith.constant 16 : i32
    %12 = arith.muli %c0_i32, %c16_i32 : i32
    %13 = tpu.assume_multiple %12, 16 : i32
    %c16_i32_10 = arith.constant 16 : i32
    %14 = arith.muli %c0_i32, %c16_i32_10 : i32
    %c8_i32 = arith.constant 8 : i32
    %15 = arith.addi %14, %c8_i32 : i32
    %16 = tpu.assume_multiple %15, 8 : i32
    %17 = arith.index_cast %13 : i32 to index
    %c0_11 = arith.constant 0 : index
    %18 = vector.load %arg11[%17, %c0_11] : memref<128x128xf32, #tpu.memory_space<vmem>>, vector<8x128xf32>
    %19 = arith.truncf %10 : vector<8x128xf32> to vector<8x128xbf16>
    %cst_12 = arith.constant dense<0.000000e+00> : vector<8x128xf32>
    %20 = tpu.matmul %19, %9, %cst_12 {dimension_numbers = #tpu.dot_dimension_numbers<[1], [0], [0], [1], [0, 0, 1, 1], [], []>} : vector<8x128xbf16>, vector<128x128xbf16>, vector<8x128xf32> -> vector<8x128xf32>
    %21 = arith.addf %18, %20 : vector<8x128xf32>
    %22 = arith.index_cast %16 : i32 to index
    %c0_13 = arith.constant 0 : index
    %23 = vector.load %arg11[%22, %c0_13] : memref<128x128xf32, #tpu.memory_space<vmem>>, vector<8x128xf32>
    %24 = arith.truncf %11 : vector<8x128xf32> to vector<8x128xbf16>
    %cst_14 = arith.constant dense<0.000000e+00> : vector<8x128xf32>
    %25 = tpu.matmul %24, %9, %cst_14 {dimension_numbers = #tpu.dot_dimension_numbers<[1], [0], [0], [1], [0, 0, 1, 1], [], []>} : vector<8x128xbf16>, vector<128x128xbf16>, vector<8x128xf32> -> vector<8x128xf32>
    %26 = arith.addf %23, %25 : vector<8x128xf32>
    %cst_15 = arith.constant 0.000000e+00 : f32
    %27 = vector.broadcast %cst_15 : f32 to vector<8x128xf32>
    %28 = arith.maximumf %21, %27 : vector<8x128xf32>
    %cst_16 = arith.constant 0.000000e+00 : f32
    %29 = vector.broadcast %cst_16 : f32 to vector<8x128xf32>
    %30 = arith.maximumf %26, %29 : vector<8x128xf32>
    %31 = arith.index_cast %13 : i32 to index
    %c0_17 = arith.constant 0 : index
    %32 = vector.load %arg11[%31, %c0_17] : memref<128x128xf32, #tpu.memory_space<vmem>>, vector<8x128xf32>
    tpu.vector_store %arg11[%31, %c0_17], %28 {strides = array<i32>} : memref<128x128xf32, #tpu.memory_space<vmem>>, vector<8x128xf32>,
    %33 = arith.index_cast %16 : i32 to index
    %c0_18 = arith.constant 0 : index
    %34 = vector.load %arg11[%33, %c0_18] : memref<128x128xf32, #tpu.memory_space<vmem>>, vector<8x128xf32>
    tpu.vector_store %arg11[%33, %c0_18], %30 {strides = array<i32>} : memref<128x128xf32, #tpu.memory_space<vmem>>, vector<8x128xf32>,
    %c1_i32 = arith.constant 1 : i32
    %c16_i32_19 = arith.constant 16 : i32
    %35 = arith.muli %c1_i32, %c16_i32_19 : i32
    %36 = tpu.assume_multiple %35, 16 : i32
    %c16_i32_20 = arith.constant 16 : i32
    %37 = arith.muli %c1_i32, %c16_i32_20 : i32
    %c8_i32_21 = arith.constant 8 : i32
    %38 = arith.addi %37, %c8_i32_21 : i32
    %39 = tpu.assume_multiple %38, 8 : i32
    %40 = arith.index_cast %36 : i32 to index
    %c0_22 = arith.constant 0 : index
    %41 = vector.load %arg11[%40, %c0_22] : memref<128x128xf32, #tpu.memory_space<vmem>>, vector<8x128xf32>
    %42 = arith.truncf %28 : vector<8x128xf32> to vector<8x128xbf16>
    %cst_23 = arith.constant dense<0.000000e+00> : vector<8x128xf32>
    %43 = tpu.matmul %42, %9, %cst_23 {dimension_numbers = #tpu.dot_dimension_numbers<[1], [0], [0], [1], [0, 0, 1, 1], [], []>} : vector<8x128xbf16>, vector<128x128xbf16>, vector<8x128xf32> -> vector<8x128xf32>
    %44 = arith.addf %41, %43 : vector<8x128xf32>
    %45 = arith.index_cast %39 : i32 to index
    %c0_24 = arith.constant 0 : index
    %46 = vector.load %arg11[%45, %c0_24] : memref<128x128xf32, #tpu.memory_space<vmem>>, vector<8x128xf32>
    %47 = arith.truncf %30 : vector<8x128xf32> to vector<8x128xbf16>
    %cst_25 = arith.constant dense<0.000000e+00> : vector<8x128xf32>
    %48 = tpu.matmul %47, %9, %cst_25 {dimension_numbers = #tpu.dot_dimension_numbers<[1], [0], [0], [1], [0, 0, 1, 1], [], []>} : vector<8x128xbf16>, vector<128x128xbf16>, vector<8x128xf32> -> vector<8x128xf32>
    %49 = arith.addf %46, %48 : vector<8x128xf32>
    %cst_26 = arith.constant 0.000000e+00 : f32
    %50 = vector.broadcast %cst_26 : f32 to vector<8x128xf32>
    %51 = arith.maximumf %44, %50 : vector<8x128xf32>
    %cst_27 = arith.constant 0.000000e+00 : f32
    %52 = vector.broadcast %cst_27 : f32 to vector<8x128xf32>
    %53 = arith.maximumf %49, %52 : vector<8x128xf32>
    %54 = arith.index_cast %36 : i32 to index
    %c0_28 = arith.constant 0 : index
    %55 = vector.load %arg11[%54, %c0_28] : memref<128x128xf32, #tpu.memory_space<vmem>>, vector<8x128xf32>
    tpu.vector_store %arg11[%54, %c0_28], %51 {strides = array<i32>} : memref<128x128xf32, #tpu.memory_space<vmem>>, vector<8x128xf32>,
    %56 = arith.index_cast %39 : i32 to index
    %c0_29 = arith.constant 0 : index
    %57 = vector.load %arg11[%56, %c0_29] : memref<128x128xf32, #tpu.memory_space<vmem>>, vector<8x128xf32>
    tpu.vector_store %arg11[%56, %c0_29], %53 {strides = array<i32>} : memref<128x128xf32, #tpu.memory_space<vmem>>, vector<8x128xf32>,
    %c2_i32 = arith.constant 2 : i32
    %c16_i32_30 = arith.constant 16 : i32
    %58 = arith.muli %c2_i32, %c16_i32_30 : i32
    %59 = tpu.assume_multiple %58, 16 : i32
    %c16_i32_31 = arith.constant 16 : i32
    %60 = arith.muli %c2_i32, %c16_i32_31 : i32
    %c8_i32_32 = arith.constant 8 : i32
    %61 = arith.addi %60, %c8_i32_32 : i32
    %62 = tpu.assume_multiple %61, 8 : i32
    %63 = arith.index_cast %59 : i32 to index
    %c0_33 = arith.constant 0 : index
    %64 = vector.load %arg11[%63, %c0_33] : memref<128x128xf32, #tpu.memory_space<vmem>>, vector<8x128xf32>
    %65 = arith.truncf %51 : vector<8x128xf32> to vector<8x128xbf16>
    %cst_34 = arith.constant dense<0.000000e+00> : vector<8x128xf32>
    %66 = tpu.matmul %65, %9, %cst_34 {dimension_numbers = #tpu.dot_dimension_numbers<[1], [0], [0], [1], [0, 0, 1, 1], [], []>} : vector<8x128xbf16>, vector<128x128xbf16>, vector<8x128xf32> -> vector<8x128xf32>
    %67 = arith.addf %64, %66 : vector<8x128xf32>
    %68 = arith.index_cast %62 : i32 to index
    %c0_35 = arith.constant 0 : index
    %69 = vector.load %arg11[%68, %c0_35] : memref<128x128xf32, #tpu.memory_space<vmem>>, vector<8x128xf32>
    %70 = arith.truncf %53 : vector<8x128xf32> to vector<8x128xbf16>
    %cst_36 = arith.constant dense<0.000000e+00> : vector<8x128xf32>
    %71 = tpu.matmul %70, %9, %cst_36 {dimension_numbers = #tpu.dot_dimension_numbers<[1], [0], [0], [1], [0, 0, 1, 1], [], []>} : vector<8x128xbf16>, vector<128x128xbf16>, vector<8x128xf32> -> vector<8x128xf32>
    %72 = arith.addf %69, %71 : vector<8x128xf32>
    %cst_37 = arith.constant 0.000000e+00 : f32
    %73 = vector.broadcast %cst_37 : f32 to vector<8x128xf32>
    %74 = arith.maximumf %67, %73 : vector<8x128xf32>
    %cst_38 = arith.constant 0.000000e+00 : f32
    %75 = vector.broadcast %cst_38 : f32 to vector<8x128xf32>
    %76 = arith.maximumf %72, %75 : vector<8x128xf32>
    %77 = arith.index_cast %59 : i32 to index
    %c0_39 = arith.constant 0 : index
    %78 = vector.load %arg11[%77, %c0_39] : memref<128x128xf32, #tpu.memory_space<vmem>>, vector<8x128xf32>
    tpu.vector_store %arg11[%77, %c0_39], %74 {strides = array<i32>} : memref<128x128xf32, #tpu.memory_space<vmem>>, vector<8x128xf32>,
    %79 = arith.index_cast %62 : i32 to index
    %c0_40 = arith.constant 0 : index
    %80 = vector.load %arg11[%79, %c0_40] : memref<128x128xf32, #tpu.memory_space<vmem>>, vector<8x128xf32>
    tpu.vector_store %arg11[%79, %c0_40], %76 {strides = array<i32>} : memref<128x128xf32, #tpu.memory_space<vmem>>, vector<8x128xf32>,
    %c3_i32 = arith.constant 3 : i32
    %c16_i32_41 = arith.constant 16 : i32
    %81 = arith.muli %c3_i32, %c16_i32_41 : i32
    %82 = tpu.assume_multiple %81, 16 : i32
    %c16_i32_42 = arith.constant 16 : i32
    %83 = arith.muli %c3_i32, %c16_i32_42 : i32
    %c8_i32_43 = arith.constant 8 : i32
    %84 = arith.addi %83, %c8_i32_43 : i32
    %85 = tpu.assume_multiple %84, 8 : i32
    %86 = arith.index_cast %82 : i32 to index
    %c0_44 = arith.constant 0 : index
    %87 = vector.load %arg11[%86, %c0_44] : memref<128x128xf32, #tpu.memory_space<vmem>>, vector<8x128xf32>
    %88 = arith.truncf %74 : vector<8x128xf32> to vector<8x128xbf16>
    %cst_45 = arith.constant dense<0.000000e+00> : vector<8x128xf32>
    %89 = tpu.matmul %88, %9, %cst_45 {dimension_numbers = #tpu.dot_dimension_numbers<[1], [0], [0], [1], [0, 0, 1, 1], [], []>} : vector<8x128xbf16>, vector<128x128xbf16>, vector<8x128xf32> -> vector<8x128xf32>
    %90 = arith.addf %87, %89 : vector<8x128xf32>
    %91 = arith.index_cast %85 : i32 to index
    %c0_46 = arith.constant 0 : index
    %92 = vector.load %arg11[%91, %c0_46] : memref<128x128xf32, #tpu.memory_space<vmem>>, vector<8x128xf32>
    %93 = arith.truncf %76 : vector<8x128xf32> to vector<8x128xbf16>
    %cst_47 = arith.constant dense<0.000000e+00> : vector<8x128xf32>
    %94 = tpu.matmul %93, %9, %cst_47 {dimension_numbers = #tpu.dot_dimension_numbers<[1], [0], [0], [1], [0, 0, 1, 1], [], []>} : vector<8x128xbf16>, vector<128x128xbf16>, vector<8x128xf32> -> vector<8x128xf32>
    %95 = arith.addf %92, %94 : vector<8x128xf32>
    %cst_48 = arith.constant 0.000000e+00 : f32
    %96 = vector.broadcast %cst_48 : f32 to vector<8x128xf32>
    %97 = arith.maximumf %90, %96 : vector<8x128xf32>
    %cst_49 = arith.constant 0.000000e+00 : f32
    %98 = vector.broadcast %cst_49 : f32 to vector<8x128xf32>
    %99 = arith.maximumf %95, %98 : vector<8x128xf32>
    %100 = arith.index_cast %82 : i32 to index
    %c0_50 = arith.constant 0 : index
    %101 = vector.load %arg11[%100, %c0_50] : memref<128x128xf32, #tpu.memory_space<vmem>>, vector<8x128xf32>
    tpu.vector_store %arg11[%100, %c0_50], %97 {strides = array<i32>} : memref<128x128xf32, #tpu.memory_space<vmem>>, vector<8x128xf32>,
    %102 = arith.index_cast %85 : i32 to index
    %c0_51 = arith.constant 0 : index
    %103 = vector.load %arg11[%102, %c0_51] : memref<128x128xf32, #tpu.memory_space<vmem>>, vector<8x128xf32>
    tpu.vector_store %arg11[%102, %c0_51], %99 {strides = array<i32>} : memref<128x128xf32, #tpu.memory_space<vmem>>, vector<8x128xf32>,
    %c4_i32 = arith.constant 4 : i32
    %c16_i32_52 = arith.constant 16 : i32
    %104 = arith.muli %c4_i32, %c16_i32_52 : i32
    %105 = tpu.assume_multiple %104, 16 : i32
    %c16_i32_53 = arith.constant 16 : i32
    %106 = arith.muli %c4_i32, %c16_i32_53 : i32
    %c8_i32_54 = arith.constant 8 : i32
    %107 = arith.addi %106, %c8_i32_54 : i32
    %108 = tpu.assume_multiple %107, 8 : i32
    %109 = arith.index_cast %105 : i32 to index
    %c0_55 = arith.constant 0 : index
    %110 = vector.load %arg11[%109, %c0_55] : memref<128x128xf32, #tpu.memory_space<vmem>>, vector<8x128xf32>
    %111 = arith.truncf %97 : vector<8x128xf32> to vector<8x128xbf16>
    %cst_56 = arith.constant dense<0.000000e+00> : vector<8x128xf32>
    %112 = tpu.matmul %111, %9, %cst_56 {dimension_numbers = #tpu.dot_dimension_numbers<[1], [0], [0], [1], [0, 0, 1, 1], [], []>} : vector<8x128xbf16>, vector<128x128xbf16>, vector<8x128xf32> -> vector<8x128xf32>
    %113 = arith.addf %110, %112 : vector<8x128xf32>
    %114 = arith.index_cast %108 : i32 to index
    %c0_57 = arith.constant 0 : index
    %115 = vector.load %arg11[%114, %c0_57] : memref<128x128xf32, #tpu.memory_space<vmem>>, vector<8x128xf32>
    %116 = arith.truncf %99 : vector<8x128xf32> to vector<8x128xbf16>
    %cst_58 = arith.constant dense<0.000000e+00> : vector<8x128xf32>
    %117 = tpu.matmul %116, %9, %cst_58 {dimension_numbers = #tpu.dot_dimension_numbers<[1], [0], [0], [1], [0, 0, 1, 1], [], []>} : vector<8x128xbf16>, vector<128x128xbf16>, vector<8x128xf32> -> vector<8x128xf32>
    %118 = arith.addf %115, %117 : vector<8x128xf32>
    %cst_59 = arith.constant 0.000000e+00 : f32
    %119 = vector.broadcast %cst_59 : f32 to vector<8x128xf32>
    %120 = arith.maximumf %113, %119 : vector<8x128xf32>
    %cst_60 = arith.constant 0.000000e+00 : f32
    %121 = vector.broadcast %cst_60 : f32 to vector<8x128xf32>
    %122 = arith.maximumf %118, %121 : vector<8x128xf32>
    %123 = arith.index_cast %105 : i32 to index
    %c0_61 = arith.constant 0 : index
    %124 = vector.load %arg11[%123, %c0_61] : memref<128x128xf32, #tpu.memory_space<vmem>>, vector<8x128xf32>
    tpu.vector_store %arg11[%123, %c0_61], %120 {strides = array<i32>} : memref<128x128xf32, #tpu.memory_space<vmem>>, vector<8x128xf32>,
    %125 = arith.index_cast %108 : i32 to index
    %c0_62 = arith.constant 0 : index
    %126 = vector.load %arg11[%125, %c0_62] : memref<128x128xf32, #tpu.memory_space<vmem>>, vector<8x128xf32>
    tpu.vector_store %arg11[%125, %c0_62], %122 {strides = array<i32>} : memref<128x128xf32, #tpu.memory_space<vmem>>, vector<8x128xf32>,
    %c5_i32 = arith.constant 5 : i32
    %c16_i32_63 = arith.constant 16 : i32
    %127 = arith.muli %c5_i32, %c16_i32_63 : i32
    %128 = tpu.assume_multiple %127, 16 : i32
    %c16_i32_64 = arith.constant 16 : i32
    %129 = arith.muli %c5_i32, %c16_i32_64 : i32
    %c8_i32_65 = arith.constant 8 : i32
    %130 = arith.addi %129, %c8_i32_65 : i32
    %131 = tpu.assume_multiple %130, 8 : i32
    %132 = arith.index_cast %128 : i32 to index
    %c0_66 = arith.constant 0 : index
    %133 = vector.load %arg11[%132, %c0_66] : memref<128x128xf32, #tpu.memory_space<vmem>>, vector<8x128xf32>
    %134 = arith.truncf %120 : vector<8x128xf32> to vector<8x128xbf16>
    %cst_67 = arith.constant dense<0.000000e+00> : vector<8x128xf32>
    %135 = tpu.matmul %134, %9, %cst_67 {dimension_numbers = #tpu.dot_dimension_numbers<[1], [0], [0], [1], [0, 0, 1, 1], [], []>} : vector<8x128xbf16>, vector<128x128xbf16>, vector<8x128xf32> -> vector<8x128xf32>
    %136 = arith.addf %133, %135 : vector<8x128xf32>
    %137 = arith.index_cast %131 : i32 to index
    %c0_68 = arith.constant 0 : index
    %138 = vector.load %arg11[%137, %c0_68] : memref<128x128xf32, #tpu.memory_space<vmem>>, vector<8x128xf32>
    %139 = arith.truncf %122 : vector<8x128xf32> to vector<8x128xbf16>
    %cst_69 = arith.constant dense<0.000000e+00> : vector<8x128xf32>
    %140 = tpu.matmul %139, %9, %cst_69 {dimension_numbers = #tpu.dot_dimension_numbers<[1], [0], [0], [1], [0, 0, 1, 1], [], []>} : vector<8x128xbf16>, vector<128x128xbf16>, vector<8x128xf32> -> vector<8x128xf32>
    %141 = arith.addf %138, %140 : vector<8x128xf32>
    %cst_70 = arith.constant 0.000000e+00 : f32
    %142 = vector.broadcast %cst_70 : f32 to vector<8x128xf32>
    %143 = arith.maximumf %136, %142 : vector<8x128xf32>
    %cst_71 = arith.constant 0.000000e+00 : f32
    %144 = vector.broadcast %cst_71 : f32 to vector<8x128xf32>
    %145 = arith.maximumf %141, %144 : vector<8x128xf32>
    %146 = arith.index_cast %128 : i32 to index
    %c0_72 = arith.constant 0 : index
    %147 = vector.load %arg11[%146, %c0_72] : memref<128x128xf32, #tpu.memory_space<vmem>>, vector<8x128xf32>
    tpu.vector_store %arg11[%146, %c0_72], %143 {strides = array<i32>} : memref<128x128xf32, #tpu.memory_space<vmem>>, vector<8x128xf32>,
    %148 = arith.index_cast %131 : i32 to index
    %c0_73 = arith.constant 0 : index
    %149 = vector.load %arg11[%148, %c0_73] : memref<128x128xf32, #tpu.memory_space<vmem>>, vector<8x128xf32>
    tpu.vector_store %arg11[%148, %c0_73], %145 {strides = array<i32>} : memref<128x128xf32, #tpu.memory_space<vmem>>, vector<8x128xf32>,
    %c6_i32 = arith.constant 6 : i32
    %c16_i32_74 = arith.constant 16 : i32
    %150 = arith.muli %c6_i32, %c16_i32_74 : i32
    %151 = tpu.assume_multiple %150, 16 : i32
    %c16_i32_75 = arith.constant 16 : i32
    %152 = arith.muli %c6_i32, %c16_i32_75 : i32
    %c8_i32_76 = arith.constant 8 : i32
    %153 = arith.addi %152, %c8_i32_76 : i32
    %154 = tpu.assume_multiple %153, 8 : i32
    %155 = arith.index_cast %151 : i32 to index
    %c0_77 = arith.constant 0 : index
    %156 = vector.load %arg11[%155, %c0_77] : memref<128x128xf32, #tpu.memory_space<vmem>>, vector<8x128xf32>
    %157 = arith.truncf %143 : vector<8x128xf32> to vector<8x128xbf16>
    %cst_78 = arith.constant dense<0.000000e+00> : vector<8x128xf32>
    %158 = tpu.matmul %157, %9, %cst_78 {dimension_numbers = #tpu.dot_dimension_numbers<[1], [0], [0], [1], [0, 0, 1, 1], [], []>} : vector<8x128xbf16>, vector<128x128xbf16>, vector<8x128xf32> -> vector<8x128xf32>
    %159 = arith.addf %156, %158 : vector<8x128xf32>
    %160 = arith.index_cast %154 : i32 to index
    %c0_79 = arith.constant 0 : index
    %161 = vector.load %arg11[%160, %c0_79] : memref<128x128xf32, #tpu.memory_space<vmem>>, vector<8x128xf32>
    %162 = arith.truncf %145 : vector<8x128xf32> to vector<8x128xbf16>
    %cst_80 = arith.constant dense<0.000000e+00> : vector<8x128xf32>
    %163 = tpu.matmul %162, %9, %cst_80 {dimension_numbers = #tpu.dot_dimension_numbers<[1], [0], [0], [1], [0, 0, 1, 1], [], []>} : vector<8x128xbf16>, vector<128x128xbf16>, vector<8x128xf32> -> vector<8x128xf32>
    %164 = arith.addf %161, %163 : vector<8x128xf32>
    %cst_81 = arith.constant 0.000000e+00 : f32
    %165 = vector.broadcast %cst_81 : f32 to vector<8x128xf32>
    %166 = arith.maximumf %159, %165 : vector<8x128xf32>
    %cst_82 = arith.constant 0.000000e+00 : f32
    %167 = vector.broadcast %cst_82 : f32 to vector<8x128xf32>
    %168 = arith.maximumf %164, %167 : vector<8x128xf32>
    %169 = arith.index_cast %151 : i32 to index
    %c0_83 = arith.constant 0 : index
    %170 = vector.load %arg11[%169, %c0_83] : memref<128x128xf32, #tpu.memory_space<vmem>>, vector<8x128xf32>
    tpu.vector_store %arg11[%169, %c0_83], %166 {strides = array<i32>} : memref<128x128xf32, #tpu.memory_space<vmem>>, vector<8x128xf32>,
    %171 = arith.index_cast %154 : i32 to index
    %c0_84 = arith.constant 0 : index
    %172 = vector.load %arg11[%171, %c0_84] : memref<128x128xf32, #tpu.memory_space<vmem>>, vector<8x128xf32>
    tpu.vector_store %arg11[%171, %c0_84], %168 {strides = array<i32>} : memref<128x128xf32, #tpu.memory_space<vmem>>, vector<8x128xf32>,
    %c7_i32 = arith.constant 7 : i32
    %c16_i32_85 = arith.constant 16 : i32
    %173 = arith.muli %c7_i32, %c16_i32_85 : i32
    %174 = tpu.assume_multiple %173, 16 : i32
    %c16_i32_86 = arith.constant 16 : i32
    %175 = arith.muli %c7_i32, %c16_i32_86 : i32
    %c8_i32_87 = arith.constant 8 : i32
    %176 = arith.addi %175, %c8_i32_87 : i32
    %177 = tpu.assume_multiple %176, 8 : i32
    %178 = arith.index_cast %174 : i32 to index
    %c0_88 = arith.constant 0 : index
    %179 = vector.load %arg11[%178, %c0_88] : memref<128x128xf32, #tpu.memory_space<vmem>>, vector<8x128xf32>
    %180 = arith.truncf %166 : vector<8x128xf32> to vector<8x128xbf16>
    %cst_89 = arith.constant dense<0.000000e+00> : vector<8x128xf32>
    %181 = tpu.matmul %180, %9, %cst_89 {dimension_numbers = #tpu.dot_dimension_numbers<[1], [0], [0], [1], [0, 0, 1, 1], [], []>} : vector<8x128xbf16>, vector<128x128xbf16>, vector<8x128xf32> -> vector<8x128xf32>
    %182 = arith.addf %179, %181 : vector<8x128xf32>
    %183 = arith.index_cast %177 : i32 to index
    %c0_90 = arith.constant 0 : index
    %184 = vector.load %arg11[%183, %c0_90] : memref<128x128xf32, #tpu.memory_space<vmem>>, vector<8x128xf32>
    %185 = arith.truncf %168 : vector<8x128xf32> to vector<8x128xbf16>
    %cst_91 = arith.constant dense<0.000000e+00> : vector<8x128xf32>
    %186 = tpu.matmul %185, %9, %cst_91 {dimension_numbers = #tpu.dot_dimension_numbers<[1], [0], [0], [1], [0, 0, 1, 1], [], []>} : vector<8x128xbf16>, vector<128x128xbf16>, vector<8x128xf32> -> vector<8x128xf32>
    %187 = arith.addf %184, %186 : vector<8x128xf32>
    %cst_92 = arith.constant 0.000000e+00 : f32
    %188 = vector.broadcast %cst_92 : f32 to vector<8x128xf32>
    %189 = arith.maximumf %182, %188 : vector<8x128xf32>
    %cst_93 = arith.constant 0.000000e+00 : f32
    %190 = vector.broadcast %cst_93 : f32 to vector<8x128xf32>
    %191 = arith.maximumf %187, %190 : vector<8x128xf32>
    %192 = arith.index_cast %174 : i32 to index
    %c0_94 = arith.constant 0 : index
    %193 = vector.load %arg11[%192, %c0_94] : memref<128x128xf32, #tpu.memory_space<vmem>>, vector<8x128xf32>
    tpu.vector_store %arg11[%192, %c0_94], %189 {strides = array<i32>} : memref<128x128xf32, #tpu.memory_space<vmem>>, vector<8x128xf32>,
    %194 = arith.index_cast %177 : i32 to index
    %c0_95 = arith.constant 0 : index
    %195 = vector.load %arg11[%194, %c0_95] : memref<128x128xf32, #tpu.memory_space<vmem>>, vector<8x128xf32>
    tpu.vector_store %arg11[%194, %c0_95], %191 {strides = array<i32>} : memref<128x128xf32, #tpu.memory_space<vmem>>, vector<8x128xf32>,
    %c8_i32_96 = arith.constant 8 : i32
    %c0_97 = arith.constant 0 : index
    %c0_98 = arith.constant 0 : index
    %196 = vector.load %arg5[%c0_97, %c0_98] : memref<128x128xbf16, #tpu.memory_space<vmem>>, vector<128x128xbf16>
    %c0_99 = arith.constant 0 : index
    %c0_100 = arith.constant 0 : index
    %197 = vector.load %arg7[%c0_99, %c0_100] : memref<1x128xf32, #tpu.memory_space<vmem>>, vector<1x128xf32>
    %c0_101 = arith.constant 0 : index
    %c0_102 = arith.constant 0 : index
    %198 = vector.load %arg11[%c0_101, %c0_102] : memref<128x128xf32, #tpu.memory_space<vmem>>, vector<128x128xf32>
    %199 = arith.truncf %198 : vector<128x128xf32> to vector<128x128xbf16>
    %cst_103 = arith.constant dense<0.000000e+00> : vector<128x128xf32>
    %200 = tpu.matmul %199, %196, %cst_103 {dimension_numbers = #tpu.dot_dimension_numbers<[1], [0], [0], [1], [0, 0, 1, 1], [], []>} : vector<128x128xbf16>, vector<128x128xbf16>, vector<128x128xf32> -> vector<128x128xf32>
    %201 = vector.broadcast %197 : vector<1x128xf32> to vector<128x128xf32>
    %202 = arith.addf %200, %201 : vector<128x128xf32>
    %c0_104 = arith.constant 0 : index
    %c0_105 = arith.constant 0 : index
    %203 = vector.load %arg11[%c0_104, %c0_105] : memref<128x128xf32, #tpu.memory_space<vmem>>, vector<128x128xf32>
    tpu.vector_store %arg11[%c0_104, %c0_105], %202 {strides = array<i32>} : memref<128x128xf32, #tpu.memory_space<vmem>>, vector<128x128xf32>,
    %c0_106 = arith.constant 0 : index
    %c0_107 = arith.constant 0 : index
    %204 = vector.load %arg6[%c0_106, %c0_107] : memref<128x128xbf16, #tpu.memory_space<vmem>>, vector<128x128xbf16>
    %cst_108 = arith.constant 0.000000e+00 : f32
    %205 = vector.broadcast %cst_108 : f32 to vector<8x128xf32>
    %cst_109 = arith.constant 0.000000e+00 : f32
    %206 = vector.broadcast %cst_109 : f32 to vector<8x128xf32>
    %c0_i32_110 = arith.constant 0 : i32
    %c16_i32_111 = arith.constant 16 : i32
    %207 = arith.muli %c0_i32_110, %c16_i32_111 : i32
    %208 = tpu.assume_multiple %207, 16 : i32
    %c16_i32_112 = arith.constant 16 : i32
    %209 = arith.muli %c0_i32_110, %c16_i32_112 : i32
    %c8_i32_113 = arith.constant 8 : i32
    %210 = arith.addi %209, %c8_i32_113 : i32
    %211 = tpu.assume_multiple %210, 8 : i32
    %212 = arith.index_cast %208 : i32 to index
    %c0_114 = arith.constant 0 : index
    %213 = vector.load %arg11[%212, %c0_114] : memref<128x128xf32, #tpu.memory_space<vmem>>, vector<8x128xf32>
    %214 = arith.truncf %205 : vector<8x128xf32> to vector<8x128xbf16>
    %cst_115 = arith.constant dense<0.000000e+00> : vector<8x128xf32>
    %215 = tpu.matmul %214, %204, %cst_115 {dimension_numbers = #tpu.dot_dimension_numbers<[1], [0], [0], [1], [0, 0, 1, 1], [], []>} : vector<8x128xbf16>, vector<128x128xbf16>, vector<8x128xf32> -> vector<8x128xf32>
    %216 = arith.addf %213, %215 : vector<8x128xf32>
    %217 = arith.index_cast %211 : i32 to index
    %c0_116 = arith.constant 0 : index
    %218 = vector.load %arg11[%217, %c0_116] : memref<128x128xf32, #tpu.memory_space<vmem>>, vector<8x128xf32>
    %219 = arith.truncf %206 : vector<8x128xf32> to vector<8x128xbf16>
    %cst_117 = arith.constant dense<0.000000e+00> : vector<8x128xf32>
    %220 = tpu.matmul %219, %204, %cst_117 {dimension_numbers = #tpu.dot_dimension_numbers<[1], [0], [0], [1], [0, 0, 1, 1], [], []>} : vector<8x128xbf16>, vector<128x128xbf16>, vector<8x128xf32> -> vector<8x128xf32>
    %221 = arith.addf %218, %220 : vector<8x128xf32>
    %cst_118 = arith.constant 0.000000e+00 : f32
    %222 = vector.broadcast %cst_118 : f32 to vector<8x128xf32>
    %223 = arith.maximumf %216, %222 : vector<8x128xf32>
    %cst_119 = arith.constant 0.000000e+00 : f32
    %224 = vector.broadcast %cst_119 : f32 to vector<8x128xf32>
    %225 = arith.maximumf %221, %224 : vector<8x128xf32>
    %c1_i32_120 = arith.constant 1 : i32
    %c16_i32_121 = arith.constant 16 : i32
    %226 = arith.muli %c1_i32_120, %c16_i32_121 : i32
    %227 = tpu.assume_multiple %226, 16 : i32
    %c16_i32_122 = arith.constant 16 : i32
    %228 = arith.muli %c1_i32_120, %c16_i32_122 : i32
    %c8_i32_123 = arith.constant 8 : i32
    %229 = arith.addi %228, %c8_i32_123 : i32
    %230 = tpu.assume_multiple %229, 8 : i32
    %231 = arith.index_cast %227 : i32 to index
    %c0_124 = arith.constant 0 : index
    %232 = vector.load %arg11[%231, %c0_124] : memref<128x128xf32, #tpu.memory_space<vmem>>, vector<8x128xf32>
    %233 = arith.truncf %223 : vector<8x128xf32> to vector<8x128xbf16>
    %cst_125 = arith.constant dense<0.000000e+00> : vector<8x128xf32>
    %234 = tpu.matmul %233, %204, %cst_125 {dimension_numbers = #tpu.dot_dimension_numbers<[1], [0], [0], [1], [0, 0, 1, 1], [], []>} : vector<8x128xbf16>, vector<128x128xbf16>, vector<8x128xf32> -> vector<8x128xf32>
    %235 = arith.addf %232, %234 : vector<8x128xf32>
    %236 = arith.index_cast %230 : i32 to index
    %c0_126 = arith.constant 0 : index
    %237 = vector.load %arg11[%236, %c0_126] : memref<128x128xf32, #tpu.memory_space<vmem>>, vector<8x128xf32>
    %238 = arith.truncf %225 : vector<8x128xf32> to vector<8x128xbf16>
    %cst_127 = arith.constant dense<0.000000e+00> : vector<8x128xf32>
    %239 = tpu.matmul %238, %204, %cst_127 {dimension_numbers = #tpu.dot_dimension_numbers<[1], [0], [0], [1], [0, 0, 1, 1], [], []>} : vector<8x128xbf16>, vector<128x128xbf16>, vector<8x128xf32> -> vector<8x128xf32>
    %240 = arith.addf %237, %239 : vector<8x128xf32>
    %cst_128 = arith.constant 0.000000e+00 : f32
    %241 = vector.broadcast %cst_128 : f32 to vector<8x128xf32>
    %242 = arith.maximumf %235, %241 : vector<8x128xf32>
    %cst_129 = arith.constant 0.000000e+00 : f32
    %243 = vector.broadcast %cst_129 : f32 to vector<8x128xf32>
    %244 = arith.maximumf %240, %243 : vector<8x128xf32>
    %c2_i32_130 = arith.constant 2 : i32
    %c16_i32_131 = arith.constant 16 : i32
    %245 = arith.muli %c2_i32_130, %c16_i32_131 : i32
    %246 = tpu.assume_multiple %245, 16 : i32
    %c16_i32_132 = arith.constant 16 : i32
    %247 = arith.muli %c2_i32_130, %c16_i32_132 : i32
    %c8_i32_133 = arith.constant 8 : i32
    %248 = arith.addi %247, %c8_i32_133 : i32
    %249 = tpu.assume_multiple %248, 8 : i32
    %250 = arith.index_cast %246 : i32 to index
    %c0_134 = arith.constant 0 : index
    %251 = vector.load %arg11[%250, %c0_134] : memref<128x128xf32, #tpu.memory_space<vmem>>, vector<8x128xf32>
    %252 = arith.truncf %242 : vector<8x128xf32> to vector<8x128xbf16>
    %cst_135 = arith.constant dense<0.000000e+00> : vector<8x128xf32>
    %253 = tpu.matmul %252, %204, %cst_135 {dimension_numbers = #tpu.dot_dimension_numbers<[1], [0], [0], [1], [0, 0, 1, 1], [], []>} : vector<8x128xbf16>, vector<128x128xbf16>, vector<8x128xf32> -> vector<8x128xf32>
    %254 = arith.addf %251, %253 : vector<8x128xf32>
    %255 = arith.index_cast %249 : i32 to index
    %c0_136 = arith.constant 0 : index
    %256 = vector.load %arg11[%255, %c0_136] : memref<128x128xf32, #tpu.memory_space<vmem>>, vector<8x128xf32>
    %257 = arith.truncf %244 : vector<8x128xf32> to vector<8x128xbf16>
    %cst_137 = arith.constant dense<0.000000e+00> : vector<8x128xf32>
    %258 = tpu.matmul %257, %204, %cst_137 {dimension_numbers = #tpu.dot_dimension_numbers<[1], [0], [0], [1], [0, 0, 1, 1], [], []>} : vector<8x128xbf16>, vector<128x128xbf16>, vector<8x128xf32> -> vector<8x128xf32>
    %259 = arith.addf %256, %258 : vector<8x128xf32>
    %cst_138 = arith.constant 0.000000e+00 : f32
    %260 = vector.broadcast %cst_138 : f32 to vector<8x128xf32>
    %261 = arith.maximumf %254, %260 : vector<8x128xf32>
    %cst_139 = arith.constant 0.000000e+00 : f32
    %262 = vector.broadcast %cst_139 : f32 to vector<8x128xf32>
    %263 = arith.maximumf %259, %262 : vector<8x128xf32>
    %c3_i32_140 = arith.constant 3 : i32
    %c16_i32_141 = arith.constant 16 : i32
    %264 = arith.muli %c3_i32_140, %c16_i32_141 : i32
    %265 = tpu.assume_multiple %264, 16 : i32
    %c16_i32_142 = arith.constant 16 : i32
    %266 = arith.muli %c3_i32_140, %c16_i32_142 : i32
    %c8_i32_143 = arith.constant 8 : i32
    %267 = arith.addi %266, %c8_i32_143 : i32
    %268 = tpu.assume_multiple %267, 8 : i32
    %269 = arith.index_cast %265 : i32 to index
    %c0_144 = arith.constant 0 : index
    %270 = vector.load %arg11[%269, %c0_144] : memref<128x128xf32, #tpu.memory_space<vmem>>, vector<8x128xf32>
    %271 = arith.truncf %261 : vector<8x128xf32> to vector<8x128xbf16>
    %cst_145 = arith.constant dense<0.000000e+00> : vector<8x128xf32>
    %272 = tpu.matmul %271, %204, %cst_145 {dimension_numbers = #tpu.dot_dimension_numbers<[1], [0], [0], [1], [0, 0, 1, 1], [], []>} : vector<8x128xbf16>, vector<128x128xbf16>, vector<8x128xf32> -> vector<8x128xf32>
    %273 = arith.addf %270, %272 : vector<8x128xf32>
    %274 = arith.index_cast %268 : i32 to index
    %c0_146 = arith.constant 0 : index
    %275 = vector.load %arg11[%274, %c0_146] : memref<128x128xf32, #tpu.memory_space<vmem>>, vector<8x128xf32>
    %276 = arith.truncf %263 : vector<8x128xf32> to vector<8x128xbf16>
    %cst_147 = arith.constant dense<0.000000e+00> : vector<8x128xf32>
    %277 = tpu.matmul %276, %204, %cst_147 {dimension_numbers = #tpu.dot_dimension_numbers<[1], [0], [0], [1], [0, 0, 1, 1], [], []>} : vector<8x128xbf16>, vector<128x128xbf16>, vector<8x128xf32> -> vector<8x128xf32>
    %278 = arith.addf %275, %277 : vector<8x128xf32>
    %cst_148 = arith.constant 0.000000e+00 : f32
    %279 = vector.broadcast %cst_148 : f32 to vector<8x128xf32>
    %280 = arith.maximumf %273, %279 : vector<8x128xf32>
    %cst_149 = arith.constant 0.000000e+00 : f32
    %281 = vector.broadcast %cst_149 : f32 to vector<8x128xf32>
    %282 = arith.maximumf %278, %281 : vector<8x128xf32>
    %c4_i32_150 = arith.constant 4 : i32
    %c16_i32_151 = arith.constant 16 : i32
    %283 = arith.muli %c4_i32_150, %c16_i32_151 : i32
    %284 = tpu.assume_multiple %283, 16 : i32
    %c16_i32_152 = arith.constant 16 : i32
    %285 = arith.muli %c4_i32_150, %c16_i32_152 : i32
    %c8_i32_153 = arith.constant 8 : i32
    %286 = arith.addi %285, %c8_i32_153 : i32
    %287 = tpu.assume_multiple %286, 8 : i32
    %288 = arith.index_cast %284 : i32 to index
    %c0_154 = arith.constant 0 : index
    %289 = vector.load %arg11[%288, %c0_154] : memref<128x128xf32, #tpu.memory_space<vmem>>, vector<8x128xf32>
    %290 = arith.truncf %280 : vector<8x128xf32> to vector<8x128xbf16>
    %cst_155 = arith.constant dense<0.000000e+00> : vector<8x128xf32>
    %291 = tpu.matmul %290, %204, %cst_155 {dimension_numbers = #tpu.dot_dimension_numbers<[1], [0], [0], [1], [0, 0, 1, 1], [], []>} : vector<8x128xbf16>, vector<128x128xbf16>, vector<8x128xf32> -> vector<8x128xf32>
    %292 = arith.addf %289, %291 : vector<8x128xf32>
    %293 = arith.index_cast %287 : i32 to index
    %c0_156 = arith.constant 0 : index
    %294 = vector.load %arg11[%293, %c0_156] : memref<128x128xf32, #tpu.memory_space<vmem>>, vector<8x128xf32>
    %295 = arith.truncf %282 : vector<8x128xf32> to vector<8x128xbf16>
    %cst_157 = arith.constant dense<0.000000e+00> : vector<8x128xf32>
    %296 = tpu.matmul %295, %204, %cst_157 {dimension_numbers = #tpu.dot_dimension_numbers<[1], [0], [0], [1], [0, 0, 1, 1], [], []>} : vector<8x128xbf16>, vector<128x128xbf16>, vector<8x128xf32> -> vector<8x128xf32>
    %297 = arith.addf %294, %296 : vector<8x128xf32>
    %cst_158 = arith.constant 0.000000e+00 : f32
    %298 = vector.broadcast %cst_158 : f32 to vector<8x128xf32>
    %299 = arith.maximumf %292, %298 : vector<8x128xf32>
    %cst_159 = arith.constant 0.000000e+00 : f32
    %300 = vector.broadcast %cst_159 : f32 to vector<8x128xf32>
    %301 = arith.maximumf %297, %300 : vector<8x128xf32>
    %c5_i32_160 = arith.constant 5 : i32
    %c16_i32_161 = arith.constant 16 : i32
    %302 = arith.muli %c5_i32_160, %c16_i32_161 : i32
    %303 = tpu.assume_multiple %302, 16 : i32
    %c16_i32_162 = arith.constant 16 : i32
    %304 = arith.muli %c5_i32_160, %c16_i32_162 : i32
    %c8_i32_163 = arith.constant 8 : i32
    %305 = arith.addi %304, %c8_i32_163 : i32
    %306 = tpu.assume_multiple %305, 8 : i32
    %307 = arith.index_cast %303 : i32 to index
    %c0_164 = arith.constant 0 : index
    %308 = vector.load %arg11[%307, %c0_164] : memref<128x128xf32, #tpu.memory_space<vmem>>, vector<8x128xf32>
    %309 = arith.truncf %299 : vector<8x128xf32> to vector<8x128xbf16>
    %cst_165 = arith.constant dense<0.000000e+00> : vector<8x128xf32>
    %310 = tpu.matmul %309, %204, %cst_165 {dimension_numbers = #tpu.dot_dimension_numbers<[1], [0], [0], [1], [0, 0, 1, 1], [], []>} : vector<8x128xbf16>, vector<128x128xbf16>, vector<8x128xf32> -> vector<8x128xf32>
    %311 = arith.addf %308, %310 : vector<8x128xf32>
    %312 = arith.index_cast %306 : i32 to index
    %c0_166 = arith.constant 0 : index
    %313 = vector.load %arg11[%312, %c0_166] : memref<128x128xf32, #tpu.memory_space<vmem>>, vector<8x128xf32>
    %314 = arith.truncf %301 : vector<8x128xf32> to vector<8x128xbf16>
    %cst_167 = arith.constant dense<0.000000e+00> : vector<8x128xf32>
    %315 = tpu.matmul %314, %204, %cst_167 {dimension_numbers = #tpu.dot_dimension_numbers<[1], [0], [0], [1], [0, 0, 1, 1], [], []>} : vector<8x128xbf16>, vector<128x128xbf16>, vector<8x128xf32> -> vector<8x128xf32>
    %316 = arith.addf %313, %315 : vector<8x128xf32>
    %cst_168 = arith.constant 0.000000e+00 : f32
    %317 = vector.broadcast %cst_168 : f32 to vector<8x128xf32>
    %318 = arith.maximumf %311, %317 : vector<8x128xf32>
    %cst_169 = arith.constant 0.000000e+00 : f32
    %319 = vector.broadcast %cst_169 : f32 to vector<8x128xf32>
    %320 = arith.maximumf %316, %319 : vector<8x128xf32>
    %c6_i32_170 = arith.constant 6 : i32
    %c16_i32_171 = arith.constant 16 : i32
    %321 = arith.muli %c6_i32_170, %c16_i32_171 : i32
    %322 = tpu.assume_multiple %321, 16 : i32
    %c16_i32_172 = arith.constant 16 : i32
    %323 = arith.muli %c6_i32_170, %c16_i32_172 : i32
    %c8_i32_173 = arith.constant 8 : i32
    %324 = arith.addi %323, %c8_i32_173 : i32
    %325 = tpu.assume_multiple %324, 8 : i32
    %326 = arith.index_cast %322 : i32 to index
    %c0_174 = arith.constant 0 : index
    %327 = vector.load %arg11[%326, %c0_174] : memref<128x128xf32, #tpu.memory_space<vmem>>, vector<8x128xf32>
    %328 = arith.truncf %318 : vector<8x128xf32> to vector<8x128xbf16>
    %cst_175 = arith.constant dense<0.000000e+00> : vector<8x128xf32>
    %329 = tpu.matmul %328, %204, %cst_175 {dimension_numbers = #tpu.dot_dimension_numbers<[1], [0], [0], [1], [0, 0, 1, 1], [], []>} : vector<8x128xbf16>, vector<128x128xbf16>, vector<8x128xf32> -> vector<8x128xf32>
    %330 = arith.addf %327, %329 : vector<8x128xf32>
    %331 = arith.index_cast %325 : i32 to index
    %c0_176 = arith.constant 0 : index
    %332 = vector.load %arg11[%331, %c0_176] : memref<128x128xf32, #tpu.memory_space<vmem>>, vector<8x128xf32>
    %333 = arith.truncf %320 : vector<8x128xf32> to vector<8x128xbf16>
    %cst_177 = arith.constant dense<0.000000e+00> : vector<8x128xf32>
    %334 = tpu.matmul %333, %204, %cst_177 {dimension_numbers = #tpu.dot_dimension_numbers<[1], [0], [0], [1], [0, 0, 1, 1], [], []>} : vector<8x128xbf16>, vector<128x128xbf16>, vector<8x128xf32> -> vector<8x128xf32>
    %335 = arith.addf %332, %334 : vector<8x128xf32>
    %cst_178 = arith.constant 0.000000e+00 : f32
    %336 = vector.broadcast %cst_178 : f32 to vector<8x128xf32>
    %337 = arith.maximumf %330, %336 : vector<8x128xf32>
    %cst_179 = arith.constant 0.000000e+00 : f32
    %338 = vector.broadcast %cst_179 : f32 to vector<8x128xf32>
    %339 = arith.maximumf %335, %338 : vector<8x128xf32>
    %c7_i32_180 = arith.constant 7 : i32
    %c16_i32_181 = arith.constant 16 : i32
    %340 = arith.muli %c7_i32_180, %c16_i32_181 : i32
    %341 = tpu.assume_multiple %340, 16 : i32
    %c16_i32_182 = arith.constant 16 : i32
    %342 = arith.muli %c7_i32_180, %c16_i32_182 : i32
    %c8_i32_183 = arith.constant 8 : i32
    %343 = arith.addi %342, %c8_i32_183 : i32
    %344 = tpu.assume_multiple %343, 8 : i32
    %345 = arith.index_cast %341 : i32 to index
    %c0_184 = arith.constant 0 : index
    %346 = vector.load %arg11[%345, %c0_184] : memref<128x128xf32, #tpu.memory_space<vmem>>, vector<8x128xf32>
    %347 = arith.truncf %337 : vector<8x128xf32> to vector<8x128xbf16>
    %cst_185 = arith.constant dense<0.000000e+00> : vector<8x128xf32>
    %348 = tpu.matmul %347, %204, %cst_185 {dimension_numbers = #tpu.dot_dimension_numbers<[1], [0], [0], [1], [0, 0, 1, 1], [], []>} : vector<8x128xbf16>, vector<128x128xbf16>, vector<8x128xf32> -> vector<8x128xf32>
    %349 = arith.addf %346, %348 : vector<8x128xf32>
    %350 = arith.index_cast %344 : i32 to index
    %c0_186 = arith.constant 0 : index
    %351 = vector.load %arg11[%350, %c0_186] : memref<128x128xf32, #tpu.memory_space<vmem>>, vector<8x128xf32>
    %352 = arith.truncf %339 : vector<8x128xf32> to vector<8x128xbf16>
    %cst_187 = arith.constant dense<0.000000e+00> : vector<8x128xf32>
    %353 = tpu.matmul %352, %204, %cst_187 {dimension_numbers = #tpu.dot_dimension_numbers<[1], [0], [0], [1], [0, 0, 1, 1], [], []>} : vector<8x128xbf16>, vector<128x128xbf16>, vector<8x128xf32> -> vector<8x128xf32>
    %354 = arith.addf %351, %353 : vector<8x128xf32>
    %cst_188 = arith.constant 0.000000e+00 : f32
    %355 = vector.broadcast %cst_188 : f32 to vector<8x128xf32>
    %356 = arith.maximumf %349, %355 : vector<8x128xf32>
    %cst_189 = arith.constant 0.000000e+00 : f32
    %357 = vector.broadcast %cst_189 : f32 to vector<8x128xf32>
    %358 = arith.maximumf %354, %357 : vector<8x128xf32>
    %c8_i32_190 = arith.constant 8 : i32
    %c0_191 = arith.constant 0 : index
    %c0_192 = arith.constant 0 : index
    %359 = vector.load %arg8[%c0_191, %c0_192] : memref<128x128xbf16, #tpu.memory_space<vmem>>, vector<128x128xbf16>
    %c0_193 = arith.constant 0 : index
    %c0_194 = arith.constant 0 : index
    %360 = vector.load %arg9[%c0_193, %c0_194] : memref<1x128xf32, #tpu.memory_space<vmem>>, vector<1x128xf32>
    %361 = arith.truncf %356 : vector<8x128xf32> to vector<8x128xbf16>
    %cst_195 = arith.constant dense<0.000000e+00> : vector<8x128xf32>
    %362 = tpu.matmul %361, %359, %cst_195 {dimension_numbers = #tpu.dot_dimension_numbers<[1], [0], [0], [1], [0, 0, 1, 1], [], []>} : vector<8x128xbf16>, vector<128x128xbf16>, vector<8x128xf32> -> vector<8x128xf32>
    %363 = vector.broadcast %360 : vector<1x128xf32> to vector<8x128xf32>
    %364 = arith.addf %362, %363 : vector<8x128xf32>
    %cst_196 = arith.constant 0.000000e+00 : f32
    %365 = vector.broadcast %cst_196 : f32 to vector<8x128xf32>
    %366 = arith.maximumf %364, %365 : vector<8x128xf32>
    %367 = tpu.iota {dimensions = array<i32: 1>} : vector<8x128xi32>
    %c4_i32_197 = arith.constant 4 : i32
    %368 = vector.broadcast %c4_i32_197 : i32 to vector<8x128xi32>
    %369 = arith.cmpi slt, %367, %368 : vector<8x128xi32>
    %cst_198 = arith.constant -1.000000e+30 : f32
    %370 = vector.broadcast %cst_198 : f32 to vector<8x128xf32>
    %371 = arith.select %369, %366, %370 : vector<8x128xi1>, vector<8x128xf32>
    %cst_199 = arith.constant dense<0xFF800000> : vector<8xf32>
    %372 = vector.multi_reduction <maximumf>, %371, %cst_199 [1] : vector<8x128xf32> to vector<8xf32>
    %373 = vector.shape_cast %372 : vector<8xf32> to vector<8x1xf32>
    %374 = vector.broadcast %373 : vector<8x1xf32> to vector<8x128xf32>
    %375 = arith.subf %371, %374 : vector<8x128xf32>
    %376 = math.exp %375 : vector<8x128xf32>
    %cst_200 = arith.constant dense<0.000000e+00> : vector<8xf32>
    %377 = vector.multi_reduction <add>, %376, %cst_200 [1] : vector<8x128xf32> to vector<8xf32>
    %378 = vector.shape_cast %377 : vector<8xf32> to vector<8x1xf32>
    %379 = math.log %378 : vector<8x1xf32>
    %380 = arith.addf %373, %379 : vector<8x1xf32>
    %381 = vector.broadcast %380 : vector<8x1xf32> to vector<8x128xf32>
    %382 = arith.subf %371, %381 : vector<8x128xf32>
    %c0_201 = arith.constant 0 : index
    %c0_202 = arith.constant 0 : index
    %383 = vector.load %arg10[%c0_201, %c0_202] : memref<16x128xf32, #tpu.memory_space<vmem>>, vector<8x128xf32>
    tpu.vector_store %arg10[%c0_201, %c0_202], %382 {strides = array<i32>} : memref<16x128xf32, #tpu.memory_space<vmem>>, vector<8x128xf32>,
    %384 = arith.truncf %358 : vector<8x128xf32> to vector<8x128xbf16>
    %cst_203 = arith.constant dense<0.000000e+00> : vector<8x128xf32>
    %385 = tpu.matmul %384, %359, %cst_203 {dimension_numbers = #tpu.dot_dimension_numbers<[1], [0], [0], [1], [0, 0, 1, 1], [], []>} : vector<8x128xbf16>, vector<128x128xbf16>, vector<8x128xf32> -> vector<8x128xf32>
    %386 = vector.broadcast %360 : vector<1x128xf32> to vector<8x128xf32>
    %387 = arith.addf %385, %386 : vector<8x128xf32>
    %cst_204 = arith.constant 0.000000e+00 : f32
    %388 = vector.broadcast %cst_204 : f32 to vector<8x128xf32>
    %389 = arith.maximumf %387, %388 : vector<8x128xf32>
    %390 = tpu.iota {dimensions = array<i32: 1>} : vector<8x128xi32>
    %c4_i32_205 = arith.constant 4 : i32
    %391 = vector.broadcast %c4_i32_205 : i32 to vector<8x128xi32>
    %392 = arith.cmpi slt, %390, %391 : vector<8x128xi32>
    %cst_206 = arith.constant -1.000000e+30 : f32
    %393 = vector.broadcast %cst_206 : f32 to vector<8x128xf32>
    %394 = arith.select %392, %389, %393 : vector<8x128xi1>, vector<8x128xf32>
    %cst_207 = arith.constant dense<0xFF800000> : vector<8xf32>
    %395 = vector.multi_reduction <maximumf>, %394, %cst_207 [1] : vector<8x128xf32> to vector<8xf32>
    %396 = vector.shape_cast %395 : vector<8xf32> to vector<8x1xf32>
    %397 = vector.broadcast %396 : vector<8x1xf32> to vector<8x128xf32>
    %398 = arith.subf %394, %397 : vector<8x128xf32>
    %399 = math.exp %398 : vector<8x128xf32>
    %cst_208 = arith.constant dense<0.000000e+00> : vector<8xf32>
    %400 = vector.multi_reduction <add>, %399, %cst_208 [1] : vector<8x128xf32> to vector<8xf32>
    %401 = vector.shape_cast %400 : vector<8xf32> to vector<8x1xf32>
    %402 = math.log %401 : vector<8x1xf32>
    %403 = arith.addf %396, %402 : vector<8x1xf32>
    %404 = vector.broadcast %403 : vector<8x1xf32> to vector<8x128xf32>
    %405 = arith.subf %394, %404 : vector<8x128xf32>
    %c8 = arith.constant 8 : index
    %c0_209 = arith.constant 0 : index
    %406 = vector.load %arg10[%c8, %c0_209] : memref<16x128xf32, #tpu.memory_space<vmem>>, vector<8x128xf32>
    tpu.vector_store %arg10[%c8, %c0_209], %405 {strides = array<i32>} : memref<16x128xf32, #tpu.memory_space<vmem>>, vector<8x128xf32>,
    return
  }
  func.func @transform_0(%arg0: i32) -> (i32, i32) {
    %c0_i32 = arith.constant 0 : i32
    %c0_i32_0 = arith.constant 0 : i32
    return %arg0, %c0_i32 : i32, i32
  }
  func.func @transform_1(%arg0: i32) -> (i32, i32) {
    %c0_i32 = arith.constant 0 : i32
    %c0_i32_0 = arith.constant 0 : i32
    %c0_i32_1 = arith.constant 0 : i32
    return %c0_i32, %c0_i32_0 : i32, i32
  }
  func.func @transform_2(%arg0: i32) -> (i32, i32) {
    %c0_i32 = arith.constant 0 : i32
    %c0_i32_0 = arith.constant 0 : i32
    %c0_i32_1 = arith.constant 0 : i32
    return %c0_i32, %c0_i32_0 : i32, i32
  }
  func.func @transform_3(%arg0: i32) -> (i32, i32) {
    %c0_i32 = arith.constant 0 : i32
    %c0_i32_0 = arith.constant 0 : i32
    %c0_i32_1 = arith.constant 0 : i32
    return %c0_i32, %c0_i32_0 : i32, i32
  }
  func.func @transform_4(%arg0: i32) -> (i32, i32) {
    %c0_i32 = arith.constant 0 : i32
    %c0_i32_0 = arith.constant 0 : i32
    %c0_i32_1 = arith.constant 0 : i32
    return %c0_i32, %c0_i32_0 : i32, i32
  }
  func.func @transform_5(%arg0: i32) -> (i32, i32) {
    %c0_i32 = arith.constant 0 : i32
    %c0_i32_0 = arith.constant 0 : i32
    %c0_i32_1 = arith.constant 0 : i32
    return %c0_i32, %c0_i32_0 : i32, i32
  }
  func.func @transform_6(%arg0: i32) -> (i32, i32) {
    %c0_i32 = arith.constant 0 : i32
    %c0_i32_0 = arith.constant 0 : i32
    %c0_i32_1 = arith.constant 0 : i32
    return %c0_i32, %c0_i32_0 : i32, i32
  }
  func.func @transform_7(%arg0: i32) -> (i32, i32) {
    %c0_i32 = arith.constant 0 : i32
    %c0_i32_0 = arith.constant 0 : i32
    %c0_i32_1 = arith.constant 0 : i32
    return %c0_i32, %c0_i32_0 : i32, i32
  }
  func.func @transform_8(%arg0: i32) -> (i32, i32) {
    %c0_i32 = arith.constant 0 : i32
    %c0_i32_0 = arith.constant 0 : i32
    %c0_i32_1 = arith.constant 0 : i32
    return %c0_i32, %c0_i32_0 : i32, i32
  }
  func.func @transform_9(%arg0: i32) -> (i32, i32) {
    %c0_i32 = arith.constant 0 : i32
    %c0_i32_0 = arith.constant 0 : i32
    return %arg0, %c0_i32 : i32, i32
  }
}

</mosaic_0001>

<llo_original>
// kernel: tpu_custom_call.1
$region0: #{tpu_custom_call.1}
  #allocation0 [shape = 'u32[]', space=smem, size = 0x4, offset = 0x4, fixed_abs, tag = 'smem constant byte address 0x4 - core index']
  #allocation1 [shape = 'u32[144,128]{1,0:T(1,128)}', space=vmem, size = 0x12000, scoped, tag = 'internal scratch']
  #allocation2 [shape = 'f32[128,128]{1,0:T(8,128)}', space=vmem, size = 0x10000, scoped, tag = 'scratch operand']
  %s0 = inlined_call_operand.vmem [shape: f32[128,1], index: 0, kind: input, shape index: {}]
  %s1 = inlined_call_operand.vmem [shape: f32[1,128], index: 1, kind: input, shape index: {}]
  %s2 = inlined_call_operand.vmem [shape: bf16[128,128], index: 2, kind: input, shape index: {}]
  %s3 = inlined_call_operand.vmem [shape: f32[1,128], index: 3, kind: input, shape index: {}]
  %s4 = inlined_call_operand.vmem [shape: bf16[128,128], index: 4, kind: input, shape index: {}]
  %s5 = inlined_call_operand.hbm [shape: bf16[128,128], index: 5, kind: input, shape index: {}]
  %s6 = inlined_call_operand.vmem [shape: f32[1,128], index: 6, kind: input, shape index: {}]
  %s7 = inlined_call_operand.hbm [shape: bf16[128,128], index: 7, kind: input, shape index: {}]
  %s8 = inlined_call_operand.vmem [shape: f32[1,128], index: 8, kind: input, shape index: {}]
  %s9 = inlined_call_operand.hbm [shape: f32[16,128], index: 9, kind: output, shape index: {}]
  %s10 = sld [smem:[#allocation0]]
  $region54: #{tpu_custom_call.1} parent=0
    _
  %s12 = ssub.s32 1, %s10
  %s13 = scalar_select 0, %s12, %s10
  $region1: #{tpu_custom_call.1} parent=0
    #allocation3 [shape = 'u8[32768]{0}', space=vmem, size = 0x8000, scoped, tag = 'input window, operand 5, single buffered']
    #allocation4 [shape = 's32[1]{0}', space=sflag, size = 0x4, scoped, tag = 'scoped memory for tpu_custom_call.1']
    #allocation5 [shape = 's32[1]{0}', space=sflag, size = 0x4, scoped, tag = 'scoped memory for tpu_custom_call.1']
    #allocation6 [shape = 'u8[32768]{0}', space=vmem, size = 0x8000, scoped, tag = 'input window, operand 7, single buffered']
    #allocation7 [shape = 's32[1]{0}', space=sflag, size = 0x4, scoped, tag = 'scoped memory for tpu_custom_call.1']
    #allocation8 [shape = 'u8[8192]{0}', space=vmem, size = 0x2000, scoped, tag = 'output window, operand 0, single buffered']
    %14 = vsyncpa [#allocation4], 0
    %15 = vsyncpa [#allocation7], 0
    %16 = vsyncpa [#allocation5], 0
    // Predicated region
    $region2: #{tpu_custom_call.1} parent=1 // pred_check
      _
    $region3: #{tpu_custom_call.1} parent=1 // pred_check_branch
      %18 = sbr.rel (0) target = $region5
    $region4: #{tpu_custom_call.1} parent=1 // pred_region
      _
    $region5: #{tpu_custom_call.1} parent=1 // pred_fallthru
      _
    // Predicated region
    $region6: #{tpu_custom_call.1} parent=1 // pred_check
      _
    $region7: #{tpu_custom_call.1} parent=1 // pred_check_branch
      %20 = sbr.rel (0) target = $region9
    $region8: #{tpu_custom_call.1} parent=1 // pred_region
      _
    $region9: #{tpu_custom_call.1} parent=1 // pred_fallthru
      _
    // Predicated region
    $region10: #{tpu_custom_call.1} parent=1 // pred_check
      _
    $region11: #{tpu_custom_call.1} parent=1 // pred_check_branch
      %22 = sbr.rel (0) target = $region13
    $region12: #{tpu_custom_call.1} parent=1 // pred_region
      _
    $region13: #{tpu_custom_call.1} parent=1 // pred_fallthru
      _
    // Predicated region
    $region14: #{tpu_custom_call.1} parent=1 // pred_check
      _
    $region15: #{tpu_custom_call.1} parent=1 // pred_check_branch
      %24 = sbr.rel (0) target = $region17
    $region16: #{tpu_custom_call.1} parent=1 // pred_region
      _
    $region17: #{tpu_custom_call.1} parent=1 // pred_fallthru
      _
    // Predicated region
    $region18: #{tpu_custom_call.1} parent=1 // pred_check
      _
    $region19: #{tpu_custom_call.1} parent=1 // pred_check_branch
      %26 = sbr.rel (0) target = $region21
    $region20: #{tpu_custom_call.1} parent=1 // pred_region
      _
    $region21: #{tpu_custom_call.1} parent=1 // pred_fallthru
      _
    // Predicated region
    $region22: #{tpu_custom_call.1} parent=1 // pred_check
      _
    $region23: #{tpu_custom_call.1} parent=1 // pred_check_branch
      %28 = sbr.rel (0) target = $region25
    $region24: #{tpu_custom_call.1} parent=1 // pred_region
      %s30 = ssub.s32 1024, 1024
      %31 = vsyncadd [#allocation4], %s30
      %s32 = sshll.u32 [#allocation3], 4
      %s33 = int_to_ptr.vmem [resolvable:$true] %s32
      %38 = dma.hbm_to_vmem [thread:$0]  %s5, 1024, %s33, [#allocation4], 64, 64, 4
    $region25: #{tpu_custom_call.1} parent=1 // pred_fallthru
      _
    // Predicated region
    $region26: #{tpu_custom_call.1} parent=1 // pred_check
      _
    $region27: #{tpu_custom_call.1} parent=1 // pred_check_branch
      %40 = sbr.rel (0) target = $region29
    $region28: #{tpu_custom_call.1} parent=1 // pred_region
      _
    $region29: #{tpu_custom_call.1} parent=1 // pred_fallthru
      _
    // Predicated region
    $region30: #{tpu_custom_call.1} parent=1 // pred_check
      _
    $region31: #{tpu_custom_call.1} parent=1 // pred_check_branch
      %42 = sbr.rel (0) target = $region33
    $region32: #{tpu_custom_call.1} parent=1 // pred_region
      %s44 = ssub.s32 1024, 1024
      %45 = vsyncadd [#allocation7], %s44
      %s46 = sshll.u32 [#allocation6], 4
      %s47 = int_to_ptr.vmem [resolvable:$true] %s46
      %52 = dma.hbm_to_vmem [thread:$0]  %s7, 1024, %s47, [#allocation7], 64, 64, 4
    $region33: #{tpu_custom_call.1} parent=1 // pred_fallthru
      _
    // Predicated region
    $region34: #{tpu_custom_call.1} parent=1 // pred_check
      _
    $region35: #{tpu_custom_call.1} parent=1 // pred_check_branch
      %54 = sbr.rel (0) target = $region37
    $region36: #{tpu_custom_call.1} parent=1 // pred_region
      _
    $region37: #{tpu_custom_call.1} parent=1 // pred_fallthru
      _
    // Predicated region
    $region38: #{tpu_custom_call.1} parent=1 // pred_check
      _
    $region39: #{tpu_custom_call.1} parent=1 // pred_check_branch
      %56 = sbr.rel (0) target = $region41
    $region40: #{tpu_custom_call.1} parent=1 // pred_region
      %57 = dma.done [#allocation4], 1024
    $region41: #{tpu_custom_call.1} parent=1 // pred_fallthru
      _
    // Predicated region
    $region42: #{tpu_custom_call.1} parent=1 // pred_check
      _
    $region43: #{tpu_custom_call.1} parent=1 // pred_check_branch
      %59 = sbr.rel (0) target = $region45
    $region44: #{tpu_custom_call.1} parent=1 // pred_region
      %60 = dma.done [#allocation7], 1024
    $region45: #{tpu_custom_call.1} parent=1 // pred_fallthru
      _
    %v62 = vld [vmem:[%s0] sm:$0xff]
    %v63 = vld [vmem:[%s0 + $0x8] sm:$0xff]
    %v64 = vld [vmem:[%s0 + $0x10] sm:$0xff]
    %v65 = vld [vmem:[%s0 + $0x18] sm:$0xff]
    %v66 = vld [vmem:[%s0 + $0x20] sm:$0xff]
    %v67 = vld [vmem:[%s0 + $0x28] sm:$0xff]
    %v68 = vld [vmem:[%s0 + $0x30] sm:$0xff]
    %v69 = vld [vmem:[%s0 + $0x38] sm:$0xff]
    %v70 = vld [vmem:[%s0 + $0x40] sm:$0xff]
    %v71 = vld [vmem:[%s0 + $0x48] sm:$0xff]
    %v72 = vld [vmem:[%s0 + $0x50] sm:$0xff]
    %v73 = vld [vmem:[%s0 + $0x58] sm:$0xff]
    %v74 = vld [vmem:[%s0 + $0x60] sm:$0xff]
    %v75 = vld [vmem:[%s0 + $0x68] sm:$0xff]
    %v76 = vld [vmem:[%s0 + $0x70] sm:$0xff]
    %v77 = vld [vmem:[%s0 + $0x78] sm:$0xff]
    %v78 = vld [vmem:[%s1] sm:$0x1]
    %80 = vset.pattern.permute.xlu0 0
    %81 = vperm.xlu0 %80, %v62
    %v82 = vpop.permute.xlu0 %81
    %85 = vset.pattern.permute.xlu0 0
    %86 = vperm.xlu0 %85, %v63
    %v87 = vpop.permute.xlu0 %86
    %90 = vset.pattern.permute.xlu0 0
    %91 = vperm.xlu0 %90, %v64
    %v92 = vpop.permute.xlu0 %91
    %95 = vset.pattern.permute.xlu0 0
    %96 = vperm.xlu0 %95, %v65
    %v97 = vpop.permute.xlu0 %96
    %100 = vset.pattern.permute.xlu0 0
    %101 = vperm.xlu0 %100, %v66
    %v102 = vpop.permute.xlu0 %101
    %105 = vset.pattern.permute.xlu0 0
    %106 = vperm.xlu0 %105, %v67
    %v107 = vpop.permute.xlu0 %106
    %110 = vset.pattern.permute.xlu0 0
    %111 = vperm.xlu0 %110, %v68
    %v112 = vpop.permute.xlu0 %111
    %115 = vset.pattern.permute.xlu0 0
    %116 = vperm.xlu0 %115, %v69
    %v117 = vpop.permute.xlu0 %116
    %120 = vset.pattern.permute.xlu0 0
    %121 = vperm.xlu0 %120, %v70
    %v122 = vpop.permute.xlu0 %121
    %125 = vset.pattern.permute.xlu0 0
    %126 = vperm.xlu0 %125, %v71
    %v127 = vpop.permute.xlu0 %126
    %130 = vset.pattern.permute.xlu0 0
    %131 = vperm.xlu0 %130, %v72
    %v132 = vpop.permute.xlu0 %131
    %135 = vset.pattern.permute.xlu0 0
    %136 = vperm.xlu0 %135, %v73
    %v137 = vpop.permute.xlu0 %136
    %140 = vset.pattern.permute.xlu0 0
    %141 = vperm.xlu0 %140, %v74
    %v142 = vpop.permute.xlu0 %141
    %145 = vset.pattern.permute.xlu0 0
    %146 = vperm.xlu0 %145, %v75
    %v147 = vpop.permute.xlu0 %146
    %150 = vset.pattern.permute.xlu0 0
    %151 = vperm.xlu0 %150, %v76
    %v152 = vpop.permute.xlu0 %151
    %155 = vset.pattern.permute.xlu0 0
    %156 = vperm.xlu0 %155, %v77
    %v157 = vpop.permute.xlu0 %156
    %v160 = vlaneseq
    %v161 = vshrl.u32 %v160, 7
    %v162 = vsub.s32 0, %v161
    %v163 = vrot.slane %v78, %v162
    %v165 = vmul.f32 %v82, %v163
    %v166 = vmul.f32 %v87, %v163
    %v167 = vmul.f32 %v92, %v163
    %v168 = vmul.f32 %v97, %v163
    %v169 = vmul.f32 %v102, %v163
    %v170 = vmul.f32 %v107, %v163
    %v171 = vmul.f32 %v112, %v163
    %v172 = vmul.f32 %v117, %v163
    %v173 = vmul.f32 %v122, %v163
    %v174 = vmul.f32 %v127, %v163
    %v175 = vmul.f32 %v132, %v163
    %v176 = vmul.f32 %v137, %v163
    %v177 = vmul.f32 %v142, %v163
    %v178 = vmul.f32 %v147, %v163
    %v179 = vmul.f32 %v152, %v163
    %v180 = vmul.f32 %v157, %v163
    %v181 = vld [vmem:[%s3] sm:$0x1]
    %v183 = vlaneseq
    %v184 = vshrl.u32 %v183, 7
    %v185 = vsub.s32 0, %v184
    %v186 = vrot.slane %v181, %v185
    %v188 = vadd.f32 %v165, %v186
    %v189 = vadd.f32 %v166, %v186
    %v190 = vadd.f32 %v167, %v186
    %v191 = vadd.f32 %v168, %v186
    %v192 = vadd.f32 %v169, %v186
    %v193 = vadd.f32 %v170, %v186
    %v194 = vadd.f32 %v171, %v186
    %v195 = vadd.f32 %v172, %v186
    %v196 = vadd.f32 %v173, %v186
    %v197 = vadd.f32 %v174, %v186
    %v198 = vadd.f32 %v175, %v186
    %v199 = vadd.f32 %v176, %v186
    %v200 = vadd.f32 %v177, %v186
    %v201 = vadd.f32 %v178, %v186
    %v202 = vadd.f32 %v179, %v186
    %v203 = vadd.f32 %v180, %v186
    %204 = vst [vmem:[#allocation2] sm:$0xff] %v188
    %205 = vst [vmem:[#allocation2 + $0x8] sm:$0xff] %v189
    %206 = vst [vmem:[#allocation2 + $0x10] sm:$0xff] %v190
    %207 = vst [vmem:[#allocation2 + $0x18] sm:$0xff] %v191
    %208 = vst [vmem:[#allocation2 + $0x20] sm:$0xff] %v192
    %209 = vst [vmem:[#allocation2 + $0x28] sm:$0xff] %v193
    %210 = vst [vmem:[#allocation2 + $0x30] sm:$0xff] %v194
    %211 = vst [vmem:[#allocation2 + $0x38] sm:$0xff] %v195
    %212 = vst [vmem:[#allocation2 + $0x40] sm:$0xff] %v196
    %213 = vst [vmem:[#allocation2 + $0x48] sm:$0xff] %v197
    %214 = vst [vmem:[#allocation2 + $0x50] sm:$0xff] %v198
    %215 = vst [vmem:[#allocation2 + $0x58] sm:$0xff] %v199
    %216 = vst [vmem:[#allocation2 + $0x60] sm:$0xff] %v200
    %217 = vst [vmem:[#allocation2 + $0x68] sm:$0xff] %v201
    %218 = vst [vmem:[#allocation2 + $0x70] sm:$0xff] %v202
    %219 = vst [vmem:[#allocation2 + $0x78] sm:$0xff] %v203
    %v220 = vld [vmem:[%s2] sm:$0xf]
    %v221 = vld [vmem:[%s2 + $0x4] sm:$0xf]
    %v222 = vld [vmem:[%s2 + $0x8] sm:$0xf]
    %v223 = vld [vmem:[%s2 + $0xc] sm:$0xf]
    %v224 = vld [vmem:[%s2 + $0x10] sm:$0xf]
    %v225 = vld [vmem:[%s2 + $0x14] sm:$0xf]
    %v226 = vld [vmem:[%s2 + $0x18] sm:$0xf]
    %v227 = vld [vmem:[%s2 + $0x1c] sm:$0xf]
    %v228 = vld [vmem:[%s2 + $0x20] sm:$0xf]
    %v229 = vld [vmem:[%s2 + $0x24] sm:$0xf]
    %v230 = vld [vmem:[%s2 + $0x28] sm:$0xf]
    %v231 = vld [vmem:[%s2 + $0x2c] sm:$0xf]
    %v232 = vld [vmem:[%s2 + $0x30] sm:$0xf]
    %v233 = vld [vmem:[%s2 + $0x34] sm:$0xf]
    %v234 = vld [vmem:[%s2 + $0x38] sm:$0xf]
    %v235 = vld [vmem:[%s2 + $0x3c] sm:$0xf]
    %v236 = vld [vmem:[#allocation2] sm:$0xff]
    %v253 = vunpack.c.l.b16 %v220
    %v254 = vunpack.c.l.b16 %v221
    %v255 = vunpack.c.l.b16 %v222
    %v256 = vunpack.c.l.b16 %v223
    %v257 = vunpack.c.l.b16 %v224
    %v258 = vunpack.c.l.b16 %v225
    %v259 = vunpack.c.l.b16 %v226
    %v260 = vunpack.c.l.b16 %v227
    %v261 = vunpack.c.l.b16 %v228
    %v262 = vunpack.c.l.b16 %v229
    %v263 = vunpack.c.l.b16 %v230
    %v264 = vunpack.c.l.b16 %v231
    %v265 = vunpack.c.l.b16 %v232
    %v266 = vunpack.c.l.b16 %v233
    %v267 = vunpack.c.l.b16 %v234
    %v268 = vunpack.c.l.b16 %v235
    %v269 = vpack.c.b16 %v254, %v253
    %v270 = vpack.c.b16 %v256, %v255
    %v271 = vpack.c.b16 %v258, %v257
    %v272 = vpack.c.b16 %v260, %v259
    %v273 = vpack.c.b16 %v262, %v261
    %v274 = vpack.c.b16 %v264, %v263
    %v275 = vpack.c.b16 %v266, %v265
    %v276 = vpack.c.b16 %v268, %v267
    %285 = vmatprep.subr.bf16.mxu0 0
    %286 = vmatpush1.bf16.msra.mxu0 %v269
    %287 = vmatprep.subr.bf16.mxu0 0
    %288 = vmatpush1.bf16.msra.mxu0 %v270
    %289 = vmatprep.subr.bf16.mxu0 0
    %290 = vmatpush1.bf16.msra.mxu0 %v271
    %291 = vmatprep.subr.bf16.mxu0 0
    %292 = vmatpush1.bf16.msra.mxu0 %v272
    %293 = vmatprep.subr.bf16.mxu0 0
    %294 = vmatpush1.bf16.msra.mxu0 %v273
    %295 = vmatprep.subr.bf16.mxu0 0
    %296 = vmatpush1.bf16.msra.mxu0 %v274
    %297 = vmatprep.subr.bf16.mxu0 0
    %298 = vmatpush1.bf16.msra.mxu0 %v275
    %299 = vmatprep.subr.bf16.mxu0 0
    %300 = vmatpush1.bf16.msra.mxu0 %v276
    %301 = vmatprep.subr.bf16.mxu0 0
    %302 = vmatpush1.bf16.msra.mxu0 0
    %303 = vmatprep.subr.bf16.mxu0 0
    %304 = vmatpush1.bf16.msra.mxu0 0
    %305 = vmatprep.subr.bf16.mxu0 0
    %306 = vmatpush1.bf16.msra.mxu0 0
    %307 = vmatprep.subr.bf16.mxu0 0
    %308 = vmatpush1.bf16.msra.mxu0 0
    %309 = vmatprep.subr.bf16.mxu0 0
    %310 = vmatpush1.bf16.msra.mxu0 0
    %311 = vmatprep.subr.bf16.mxu0 0
    %312 = vmatpush1.bf16.msra.mxu0 0
    %313 = vmatprep.subr.bf16.mxu0 0
    %314 = vmatpush1.bf16.msra.mxu0 0
    %315 = vmatprep.subr.bf16.mxu0 0
    %316 = vmatpush1.bf16.msra.mxu0 0
    %317 = vmatprep.mubr.bf16.mxu0 0
    %318 = vmatmul.mubr.bf16.gmra.mrb[0].mxu0 0
    %v319 = vpop.f32.mrb[0].mxu0
    %v320 = vadd.f32 0.0, %v319
    %v321 = vpop.f32.mrb[0].mxu0
    %v322 = vpop.f32.mrb[0].mxu0
    %v323 = vpop.f32.mrb[0].mxu0
    %324 = vdwg.mxu0
    %v325 = vadd.f32 %v236, %v320
    %s326 = scalar_lea.vmem [#allocation2], 8
    %v327 = vld [vmem:[%s326] sm:$0xff]
    %v328 = vadd.f32 %v327, %v320
    %v329 = vmax.f32 %v325, 0.0
    %v330 = vmax.f32 %v328, 0.0
    %331 = vst [vmem:[#allocation2] sm:$0xff] %v329
    %332 = vst [vmem:[%s326] sm:$0xff] %v330
    %s333 = scalar_lea.vmem [#allocation2], 16
    %v334 = vld [vmem:[%s333] sm:$0xff]
    %v335 = vpack.c.bf16 %v329, %v329
    %336 = vmatprep.subr.bf16.mxu0 0
    %337 = vmatpush1.bf16.msra.mxu0 %v269
    %338 = vmatprep.subr.bf16.mxu0 0
    %339 = vmatpush1.bf16.msra.mxu0 %v270
    %340 = vmatprep.subr.bf16.mxu0 0
    %341 = vmatpush1.bf16.msra.mxu0 %v271
    %342 = vmatprep.subr.bf16.mxu0 0
    %343 = vmatpush1.bf16.msra.mxu0 %v272
    %344 = vmatprep.subr.bf16.mxu0 0
    %345 = vmatpush1.bf16.msra.mxu0 %v273
    %346 = vmatprep.subr.bf16.mxu0 0
    %347 = vmatpush1.bf16.msra.mxu0 %v274
    %348 = vmatprep.subr.bf16.mxu0 0
    %349 = vmatpush1.bf16.msra.mxu0 %v275
    %350 = vmatprep.subr.bf16.mxu0 0
    %351 = vmatpush1.bf16.msra.mxu0 %v276
    %352 = vmatprep.subr.bf16.mxu0 0
    %353 = vmatpush1.bf16.msra.mxu0 0
    %354 = vmatprep.subr.bf16.mxu0 0
    %355 = vmatpush1.bf16.msra.mxu0 0
    %356 = vmatprep.subr.bf16.mxu0 0
    %357 = vmatpush1.bf16.msra.mxu0 0
    %358 = vmatprep.subr.bf16.mxu0 0
    %359 = vmatpush1.bf16.msra.mxu0 0
    %360 = vmatprep.subr.bf16.mxu0 0
    %361 = vmatpush1.bf16.msra.mxu0 0
    %362 = vmatprep.subr.bf16.mxu0 0
    %363 = vmatpush1.bf16.msra.mxu0 0
    %364 = vmatprep.subr.bf16.mxu0 0
    %365 = vmatpush1.bf16.msra.mxu0 0
    %366 = vmatprep.subr.bf16.mxu0 0
    %367 = vmatpush1.bf16.msra.mxu0 0
    %368 = vmatprep.mubr.bf16.mxu0 0
    %369 = vmatmul.mubr.bf16.gmra.mrb[0].mxu0 %v335
    %v370 = vpop.f32.mrb[0].mxu0
    %v371 = vadd.f32 0.0, %v370
    %v372 = vpop.f32.mrb[0].mxu0
    %v373 = vpop.f32.mrb[0].mxu0
    %v374 = vpop.f32.mrb[0].mxu0
    %375 = vdwg.mxu0
    %v376 = vadd.f32 %v334, %v371
    %s377 = scalar_lea.vmem [#allocation2], 24
    %v378 = vld [vmem:[%s377] sm:$0xff]
    %v379 = vpack.c.bf16 %v330, %v330
    %380 = vmatprep.subr.bf16.mxu0 0
    %381 = vmatpush1.bf16.msra.mxu0 %v269
    %382 = vmatprep.subr.bf16.mxu0 0
    %383 = vmatpush1.bf16.msra.mxu0 %v270
    %384 = vmatprep.subr.bf16.mxu0 0
    %385 = vmatpush1.bf16.msra.mxu0 %v271
    %386 = vmatprep.subr.bf16.mxu0 0
    %387 = vmatpush1.bf16.msra.mxu0 %v272
    %388 = vmatprep.subr.bf16.mxu0 0
    %389 = vmatpush1.bf16.msra.mxu0 %v273
    %390 = vmatprep.subr.bf16.mxu0 0
    %391 = vmatpush1.bf16.msra.mxu0 %v274
    %392 = vmatprep.subr.bf16.mxu0 0
    %393 = vmatpush1.bf16.msra.mxu0 %v275
    %394 = vmatprep.subr.bf16.mxu0 0
    %395 = vmatpush1.bf16.msra.mxu0 %v276
    %396 = vmatprep.subr.bf16.mxu0 0
    %397 = vmatpush1.bf16.msra.mxu0 0
    %398 = vmatprep.subr.bf16.mxu0 0
    %399 = vmatpush1.bf16.msra.mxu0 0
    %400 = vmatprep.subr.bf16.mxu0 0
    %401 = vmatpush1.bf16.msra.mxu0 0
    %402 = vmatprep.subr.bf16.mxu0 0
    %403 = vmatpush1.bf16.msra.mxu0 0
    %404 = vmatprep.subr.bf16.mxu0 0
    %405 = vmatpush1.bf16.msra.mxu0 0
    %406 = vmatprep.subr.bf16.mxu0 0
    %407 = vmatpush1.bf16.msra.mxu0 0
    %408 = vmatprep.subr.bf16.mxu0 0
    %409 = vmatpush1.bf16.msra.mxu0 0
    %410 = vmatprep.subr.bf16.mxu0 0
    %411 = vmatpush1.bf16.msra.mxu0 0
    %412 = vmatprep.mubr.bf16.mxu0 0
    %413 = vmatmul.mubr.bf16.gmra.mrb[0].mxu0 %v379
    %v414 = vpop.f32.mrb[0].mxu0
    %v415 = vadd.f32 0.0, %v414
    %v416 = vpop.f32.mrb[0].mxu0
    %v417 = vpop.f32.mrb[0].mxu0
    %v418 = vpop.f32.mrb[0].mxu0
    %419 = vdwg.mxu0
    %v420 = vadd.f32 %v378, %v415
    %v421 = vmax.f32 %v376, 0.0
    %v422 = vmax.f32 %v420, 0.0
    %423 = vst [vmem:[%s333] sm:$0xff] %v421
    %424 = vst [vmem:[%s377] sm:$0xff] %v422
    %s425 = scalar_lea.vmem [#allocation2], 32
    %v426 = vld [vmem:[%s425] sm:$0xff]
    %v427 = vpack.c.bf16 %v421, %v421
    %428 = vmatprep.subr.bf16.mxu0 0
    %429 = vmatpush1.bf16.msra.mxu0 %v269
    %430 = vmatprep.subr.bf16.mxu0 0
    %431 = vmatpush1.bf16.msra.mxu0 %v270
    %432 = vmatprep.subr.bf16.mxu0 0
    %433 = vmatpush1.bf16.msra.mxu0 %v271
    %434 = vmatprep.subr.bf16.mxu0 0
    %435 = vmatpush1.bf16.msra.mxu0 %v272
    %436 = vmatprep.subr.bf16.mxu0 0
    %437 = vmatpush1.bf16.msra.mxu0 %v273
    %438 = vmatprep.subr.bf16.mxu0 0
    %439 = vmatpush1.bf16.msra.mxu0 %v274
    %440 = vmatprep.subr.bf16.mxu0 0
    %441 = vmatpush1.bf16.msra.mxu0 %v275
    %442 = vmatprep.subr.bf16.mxu0 0
    %443 = vmatpush1.bf16.msra.mxu0 %v276
    %444 = vmatprep.subr.bf16.mxu0 0
    %445 = vmatpush1.bf16.msra.mxu0 0
    %446 = vmatprep.subr.bf16.mxu0 0
    %447 = vmatpush1.bf16.msra.mxu0 0
    %448 = vmatprep.subr.bf16.mxu0 0
    %449 = vmatpush1.bf16.msra.mxu0 0
    %450 = vmatprep.subr.bf16.mxu0 0
    %451 = vmatpush1.bf16.msra.mxu0 0
    %452 = vmatprep.subr.bf16.mxu0 0
    %453 = vmatpush1.bf16.msra.mxu0 0
    %454 = vmatprep.subr.bf16.mxu0 0
    %455 = vmatpush1.bf16.msra.mxu0 0
    %456 = vmatprep.subr.bf16.mxu0 0
    %457 = vmatpush1.bf16.msra.mxu0 0
    %458 = vmatprep.subr.bf16.mxu0 0
    %459 = vmatpush1.bf16.msra.mxu0 0
    %460 = vmatprep.mubr.bf16.mxu0 0
    %461 = vmatmul.mubr.bf16.gmra.mrb[0].mxu0 %v427
    %v462 = vpop.f32.mrb[0].mxu0
    %v463 = vadd.f32 0.0, %v462
    %v464 = vpop.f32.mrb[0].mxu0
    %v465 = vpop.f32.mrb[0].mxu0
    %v466 = vpop.f32.mrb[0].mxu0
    %467 = vdwg.mxu0
    %v468 = vadd.f32 %v426, %v463
    %s469 = scalar_lea.vmem [#allocation2], 40
    %v470 = vld [vmem:[%s469] sm:$0xff]
    %v471 = vpack.c.bf16 %v422, %v422
    %472 = vmatprep.subr.bf16.mxu0 0
    %473 = vmatpush1.bf16.msra.mxu0 %v269
    %474 = vmatprep.subr.bf16.mxu0 0
    %475 = vmatpush1.bf16.msra.mxu0 %v270
    %476 = vmatprep.subr.bf16.mxu0 0
    %477 = vmatpush1.bf16.msra.mxu0 %v271
    %478 = vmatprep.subr.bf16.mxu0 0
    %479 = vmatpush1.bf16.msra.mxu0 %v272
    %480 = vmatprep.subr.bf16.mxu0 0
    %481 = vmatpush1.bf16.msra.mxu0 %v273
    %482 = vmatprep.subr.bf16.mxu0 0
    %483 = vmatpush1.bf16.msra.mxu0 %v274
    %484 = vmatprep.subr.bf16.mxu0 0
    %485 = vmatpush1.bf16.msra.mxu0 %v275
    %486 = vmatprep.subr.bf16.mxu0 0
    %487 = vmatpush1.bf16.msra.mxu0 %v276
    %488 = vmatprep.subr.bf16.mxu0 0
    %489 = vmatpush1.bf16.msra.mxu0 0
    %490 = vmatprep.subr.bf16.mxu0 0
    %491 = vmatpush1.bf16.msra.mxu0 0
    %492 = vmatprep.subr.bf16.mxu0 0
    %493 = vmatpush1.bf16.msra.mxu0 0
    %494 = vmatprep.subr.bf16.mxu0 0
    %495 = vmatpush1.bf16.msra.mxu0 0
    %496 = vmatprep.subr.bf16.mxu0 0
    %497 = vmatpush1.bf16.msra.mxu0 0
    %498 = vmatprep.subr.bf16.mxu0 0
    %499 = vmatpush1.bf16.msra.mxu0 0
    %500 = vmatprep.subr.bf16.mxu0 0
    %501 = vmatpush1.bf16.msra.mxu0 0
    %502 = vmatprep.subr.bf16.mxu0 0
    %503 = vmatpush1.bf16.msra.mxu0 0
    %504 = vmatprep.mubr.bf16.mxu0 0
    %505 = vmatmul.mubr.bf16.gmra.mrb[0].mxu0 %v471
    %v506 = vpop.f32.mrb[0].mxu0
    %v507 = vadd.f32 0.0, %v506
    %v508 = vpop.f32.mrb[0].mxu0
    %v509 = vpop.f32.mrb[0].mxu0
    %v510 = vpop.f32.mrb[0].mxu0
    %511 = vdwg.mxu0
    %v512 = vadd.f32 %v470, %v507
    %v513 = vmax.f32 %v468, 0.0
    %v514 = vmax.f32 %v512, 0.0
    %515 = vst [vmem:[%s425] sm:$0xff] %v513
    %516 = vst [vmem:[%s469] sm:$0xff] %v514
    %s517 = scalar_lea.vmem [#allocation2], 48
    %v518 = vld [vmem:[%s517] sm:$0xff]
    %v519 = vpack.c.bf16 %v513, %v513
    %520 = vmatprep.subr.bf16.mxu0 0
    %521 = vmatpush1.bf16.msra.mxu0 %v269
    %522 = vmatprep.subr.bf16.mxu0 0
    %523 = vmatpush1.bf16.msra.mxu0 %v270
    %524 = vmatprep.subr.bf16.mxu0 0
    %525 = vmatpush1.bf16.msra.mxu0 %v271
    %526 = vmatprep.subr.bf16.mxu0 0
    %527 = vmatpush1.bf16.msra.mxu0 %v272
    %528 = vmatprep.subr.bf16.mxu0 0
    %529 = vmatpush1.bf16.msra.mxu0 %v273
    %530 = vmatprep.subr.bf16.mxu0 0
    %531 = vmatpush1.bf16.msra.mxu0 %v274
    %532 = vmatprep.subr.bf16.mxu0 0
    %533 = vmatpush1.bf16.msra.mxu0 %v275
    %534 = vmatprep.subr.bf16.mxu0 0
    %535 = vmatpush1.bf16.msra.mxu0 %v276
    %536 = vmatprep.subr.bf16.mxu0 0
    %537 = vmatpush1.bf16.msra.mxu0 0
    %538 = vmatprep.subr.bf16.mxu0 0
    %539 = vmatpush1.bf16.msra.mxu0 0
    %540 = vmatprep.subr.bf16.mxu0 0
    %541 = vmatpush1.bf16.msra.mxu0 0
    %542 = vmatprep.subr.bf16.mxu0 0
    %543 = vmatpush1.bf16.msra.mxu0 0
    %544 = vmatprep.subr.bf16.mxu0 0
    %545 = vmatpush1.bf16.msra.mxu0 0
    %546 = vmatprep.subr.bf16.mxu0 0
    %547 = vmatpush1.bf16.msra.mxu0 0
    %548 = vmatprep.subr.bf16.mxu0 0
    %549 = vmatpush1.bf16.msra.mxu0 0
    %550 = vmatprep.subr.bf16.mxu0 0
    %551 = vmatpush1.bf16.msra.mxu0 0
    %552 = vmatprep.mubr.bf16.mxu0 0
    %553 = vmatmul.mubr.bf16.gmra.mrb[0].mxu0 %v519
    %v554 = vpop.f32.mrb[0].mxu0
    %v555 = vadd.f32 0.0, %v554
    %v556 = vpop.f32.mrb[0].mxu0
    %v557 = vpop.f32.mrb[0].mxu0
    %v558 = vpop.f32.mrb[0].mxu0
    %559 = vdwg.mxu0
    %v560 = vadd.f32 %v518, %v555
    %s561 = scalar_lea.vmem [#allocation2], 56
    %v562 = vld [vmem:[%s561] sm:$0xff]
    %v563 = vpack.c.bf16 %v514, %v514
    %564 = vmatprep.subr.bf16.mxu0 0
    %565 = vmatpush1.bf16.msra.mxu0 %v269
    %566 = vmatprep.subr.bf16.mxu0 0
    %567 = vmatpush1.bf16.msra.mxu0 %v270
    %568 = vmatprep.subr.bf16.mxu0 0
    %569 = vmatpush1.bf16.msra.mxu0 %v271
    %570 = vmatprep.subr.bf16.mxu0 0
    %571 = vmatpush1.bf16.msra.mxu0 %v272
    %572 = vmatprep.subr.bf16.mxu0 0
    %573 = vmatpush1.bf16.msra.mxu0 %v273
    %574 = vmatprep.subr.bf16.mxu0 0
    %575 = vmatpush1.bf16.msra.mxu0 %v274
    %576 = vmatprep.subr.bf16.mxu0 0
    %577 = vmatpush1.bf16.msra.mxu0 %v275
    %578 = vmatprep.subr.bf16.mxu0 0
    %579 = vmatpush1.bf16.msra.mxu0 %v276
    %580 = vmatprep.subr.bf16.mxu0 0
    %581 = vmatpush1.bf16.msra.mxu0 0
    %582 = vmatprep.subr.bf16.mxu0 0
    %583 = vmatpush1.bf16.msra.mxu0 0
    %584 = vmatprep.subr.bf16.mxu0 0
    %585 = vmatpush1.bf16.msra.mxu0 0
    %586 = vmatprep.subr.bf16.mxu0 0
    %587 = vmatpush1.bf16.msra.mxu0 0
    %588 = vmatprep.subr.bf16.mxu0 0
    %589 = vmatpush1.bf16.msra.mxu0 0
    %590 = vmatprep.subr.bf16.mxu0 0
    %591 = vmatpush1.bf16.msra.mxu0 0
    %592 = vmatprep.subr.bf16.mxu0 0
    %593 = vmatpush1.bf16.msra.mxu0 0
    %594 = vmatprep.subr.bf16.mxu0 0
    %595 = vmatpush1.bf16.msra.mxu0 0
    %596 = vmatprep.mubr.bf16.mxu0 0
    %597 = vmatmul.mubr.bf16.gmra.mrb[0].mxu0 %v563
    %v598 = vpop.f32.mrb[0].mxu0
    %v599 = vadd.f32 0.0, %v598
    %v600 = vpop.f32.mrb[0].mxu0
    %v601 = vpop.f32.mrb[0].mxu0
    %v602 = vpop.f32.mrb[0].mxu0
    %603 = vdwg.mxu0
    %v604 = vadd.f32 %v562, %v599
    %v605 = vmax.f32 %v560, 0.0
    %v606 = vmax.f32 %v604, 0.0
    %607 = vst [vmem:[%s517] sm:$0xff] %v605
    %608 = vst [vmem:[%s561] sm:$0xff] %v606
    %s609 = scalar_lea.vmem [#allocation2], 64
    %v610 = vld [vmem:[%s609] sm:$0xff]
    %v611 = vpack.c.bf16 %v605, %v605
    %612 = vmatprep.subr.bf16.mxu0 0
    %613 = vmatpush1.bf16.msra.mxu0 %v269
    %614 = vmatprep.subr.bf16.mxu0 0
    %615 = vmatpush1.bf16.msra.mxu0 %v270
    %616 = vmatprep.subr.bf16.mxu0 0
    %617 = vmatpush1.bf16.msra.mxu0 %v271
    %618 = vmatprep.subr.bf16.mxu0 0
    %619 = vmatpush1.bf16.msra.mxu0 %v272
    %620 = vmatprep.subr.bf16.mxu0 0
    %621 = vmatpush1.bf16.msra.mxu0 %v273
    %622 = vmatprep.subr.bf16.mxu0 0
    %623 = vmatpush1.bf16.msra.mxu0 %v274
    %624 = vmatprep.subr.bf16.mxu0 0
    %625 = vmatpush1.bf16.msra.mxu0 %v275
    %626 = vmatprep.subr.bf16.mxu0 0
    %627 = vmatpush1.bf16.msra.mxu0 %v276
    %628 = vmatprep.subr.bf16.mxu0 0
    %629 = vmatpush1.bf16.msra.mxu0 0
    %630 = vmatprep.subr.bf16.mxu0 0
    %631 = vmatpush1.bf16.msra.mxu0 0
    %632 = vmatprep.subr.bf16.mxu0 0
    %633 = vmatpush1.bf16.msra.mxu0 0
    %634 = vmatprep.subr.bf16.mxu0 0
    %635 = vmatpush1.bf16.msra.mxu0 0
    %636 = vmatprep.subr.bf16.mxu0 0
    %637 = vmatpush1.bf16.msra.mxu0 0
    %638 = vmatprep.subr.bf16.mxu0 0
    %639 = vmatpush1.bf16.msra.mxu0 0
    %640 = vmatprep.subr.bf16.mxu0 0
    %641 = vmatpush1.bf16.msra.mxu0 0
    %642 = vmatprep.subr.bf16.mxu0 0
    %643 = vmatpush1.bf16.msra.mxu0 0
    %644 = vmatprep.mubr.bf16.mxu0 0
    %645 = vmatmul.mubr.bf16.gmra.mrb[0].mxu0 %v611
    %v646 = vpop.f32.mrb[0].mxu0
    %v647 = vadd.f32 0.0, %v646
    %v648 = vpop.f32.mrb[0].mxu0
    %v649 = vpop.f32.mrb[0].mxu0
    %v650 = vpop.f32.mrb[0].mxu0
    %651 = vdwg.mxu0
    %v652 = vadd.f32 %v610, %v647
    %s653 = scalar_lea.vmem [#allocation2], 72
    %v654 = vld [vmem:[%s653] sm:$0xff]
    %v655 = vpack.c.bf16 %v606, %v606
    %656 = vmatprep.subr.bf16.mxu0 0
    %657 = vmatpush1.bf16.msra.mxu0 %v269
    %658 = vmatprep.subr.bf16.mxu0 0
    %659 = vmatpush1.bf16.msra.mxu0 %v270
    %660 = vmatprep.subr.bf16.mxu0 0
    %661 = vmatpush1.bf16.msra.mxu0 %v271
    %662 = vmatprep.subr.bf16.mxu0 0
    %663 = vmatpush1.bf16.msra.mxu0 %v272
    %664 = vmatprep.subr.bf16.mxu0 0
    %665 = vmatpush1.bf16.msra.mxu0 %v273
    %666 = vmatprep.subr.bf16.mxu0 0
    %667 = vmatpush1.bf16.msra.mxu0 %v274
    %668 = vmatprep.subr.bf16.mxu0 0
    %669 = vmatpush1.bf16.msra.mxu0 %v275
    %670 = vmatprep.subr.bf16.mxu0 0
    %671 = vmatpush1.bf16.msra.mxu0 %v276
    %672 = vmatprep.subr.bf16.mxu0 0
    %673 = vmatpush1.bf16.msra.mxu0 0
    %674 = vmatprep.subr.bf16.mxu0 0
    %675 = vmatpush1.bf16.msra.mxu0 0
    %676 = vmatprep.subr.bf16.mxu0 0
    %677 = vmatpush1.bf16.msra.mxu0 0
    %678 = vmatprep.subr.bf16.mxu0 0
    %679 = vmatpush1.bf16.msra.mxu0 0
    %680 = vmatprep.subr.bf16.mxu0 0
    %681 = vmatpush1.bf16.msra.mxu0 0
    %682 = vmatprep.subr.bf16.mxu0 0
    %683 = vmatpush1.bf16.msra.mxu0 0
    %684 = vmatprep.subr.bf16.mxu0 0
    %685 = vmatpush1.bf16.msra.mxu0 0
    %686 = vmatprep.subr.bf16.mxu0 0
    %687 = vmatpush1.bf16.msra.mxu0 0
    %688 = vmatprep.mubr.bf16.mxu0 0
    %689 = vmatmul.mubr.bf16.gmra.mrb[0].mxu0 %v655
    %v690 = vpop.f32.mrb[0].mxu0
    %v691 = vadd.f32 0.0, %v690
    %v692 = vpop.f32.mrb[0].mxu0
    %v693 = vpop.f32.mrb[0].mxu0
    %v694 = vpop.f32.mrb[0].mxu0
    %695 = vdwg.mxu0
    %v696 = vadd.f32 %v654, %v691
    %v697 = vmax.f32 %v652, 0.0
    %v698 = vmax.f32 %v696, 0.0
    %699 = vst [vmem:[%s609] sm:$0xff] %v697
    %700 = vst [vmem:[%s653] sm:$0xff] %v698
    %s701 = scalar_lea.vmem [#allocation2], 80
    %v702 = vld [vmem:[%s701] sm:$0xff]
    %v703 = vpack.c.bf16 %v697, %v697
    %704 = vmatprep.subr.bf16.mxu0 0
    %705 = vmatpush1.bf16.msra.mxu0 %v269
    %706 = vmatprep.subr.bf16.mxu0 0
    %707 = vmatpush1.bf16.msra.mxu0 %v270
    %708 = vmatprep.subr.bf16.mxu0 0
    %709 = vmatpush1.bf16.msra.mxu0 %v271
    %710 = vmatprep.subr.bf16.mxu0 0
    %711 = vmatpush1.bf16.msra.mxu0 %v272
    %712 = vmatprep.subr.bf16.mxu0 0
    %713 = vmatpush1.bf16.msra.mxu0 %v273
    %714 = vmatprep.subr.bf16.mxu0 0
    %715 = vmatpush1.bf16.msra.mxu0 %v274
    %716 = vmatprep.subr.bf16.mxu0 0
    %717 = vmatpush1.bf16.msra.mxu0 %v275
    %718 = vmatprep.subr.bf16.mxu0 0
    %719 = vmatpush1.bf16.msra.mxu0 %v276
    %720 = vmatprep.subr.bf16.mxu0 0
    %721 = vmatpush1.bf16.msra.mxu0 0
    %722 = vmatprep.subr.bf16.mxu0 0
    %723 = vmatpush1.bf16.msra.mxu0 0
    %724 = vmatprep.subr.bf16.mxu0 0
    %725 = vmatpush1.bf16.msra.mxu0 0
    %726 = vmatprep.subr.bf16.mxu0 0
    %727 = vmatpush1.bf16.msra.mxu0 0
    %728 = vmatprep.subr.bf16.mxu0 0
    %729 = vmatpush1.bf16.msra.mxu0 0
    %730 = vmatprep.subr.bf16.mxu0 0
    %731 = vmatpush1.bf16.msra.mxu0 0
    %732 = vmatprep.subr.bf16.mxu0 0
    %733 = vmatpush1.bf16.msra.mxu0 0
    %734 = vmatprep.subr.bf16.mxu0 0
    %735 = vmatpush1.bf16.msra.mxu0 0
    %736 = vmatprep.mubr.bf16.mxu0 0
    %737 = vmatmul.mubr.bf16.gmra.mrb[0].mxu0 %v703
    %v738 = vpop.f32.mrb[0].mxu0
    %v739 = vadd.f32 0.0, %v738
    %v740 = vpop.f32.mrb[0].mxu0
    %v741 = vpop.f32.mrb[0].mxu0
    %v742 = vpop.f32.mrb[0].mxu0
    %743 = vdwg.mxu0
    %v744 = vadd.f32 %v702, %v739
    %s745 = scalar_lea.vmem [#allocation2], 88
    %v746 = vld [vmem:[%s745] sm:$0xff]
    %v747 = vpack.c.bf16 %v698, %v698
    %748 = vmatprep.subr.bf16.mxu0 0
    %749 = vmatpush1.bf16.msra.mxu0 %v269
    %750 = vmatprep.subr.bf16.mxu0 0
    %751 = vmatpush1.bf16.msra.mxu0 %v270
    %752 = vmatprep.subr.bf16.mxu0 0
    %753 = vmatpush1.bf16.msra.mxu0 %v271
    %754 = vmatprep.subr.bf16.mxu0 0
    %755 = vmatpush1.bf16.msra.mxu0 %v272
    %756 = vmatprep.subr.bf16.mxu0 0
    %757 = vmatpush1.bf16.msra.mxu0 %v273
    %758 = vmatprep.subr.bf16.mxu0 0
    %759 = vmatpush1.bf16.msra.mxu0 %v274
    %760 = vmatprep.subr.bf16.mxu0 0
    %761 = vmatpush1.bf16.msra.mxu0 %v275
    %762 = vmatprep.subr.bf16.mxu0 0
    %763 = vmatpush1.bf16.msra.mxu0 %v276
    %764 = vmatprep.subr.bf16.mxu0 0
    %765 = vmatpush1.bf16.msra.mxu0 0
    %766 = vmatprep.subr.bf16.mxu0 0
    %767 = vmatpush1.bf16.msra.mxu0 0
    %768 = vmatprep.subr.bf16.mxu0 0
    %769 = vmatpush1.bf16.msra.mxu0 0
    %770 = vmatprep.subr.bf16.mxu0 0
    %771 = vmatpush1.bf16.msra.mxu0 0
    %772 = vmatprep.subr.bf16.mxu0 0
    %773 = vmatpush1.bf16.msra.mxu0 0
    %774 = vmatprep.subr.bf16.mxu0 0
    %775 = vmatpush1.bf16.msra.mxu0 0
    %776 = vmatprep.subr.bf16.mxu0 0
    %777 = vmatpush1.bf16.msra.mxu0 0
    %778 = vmatprep.subr.bf16.mxu0 0
    %779 = vmatpush1.bf16.msra.mxu0 0
    %780 = vmatprep.mubr.bf16.mxu0 0
    %781 = vmatmul.mubr.bf16.gmra.mrb[0].mxu0 %v747
    %v782 = vpop.f32.mrb[0].mxu0
    %v783 = vadd.f32 0.0, %v782
    %v784 = vpop.f32.mrb[0].mxu0
    %v785 = vpop.f32.mrb[0].mxu0
    %v786 = vpop.f32.mrb[0].mxu0
    %787 = vdwg.mxu0
    %v788 = vadd.f32 %v746, %v783
    %v789 = vmax.f32 %v744, 0.0
    %v790 = vmax.f32 %v788, 0.0
    %791 = vst [vmem:[%s701] sm:$0xff] %v789
    %792 = vst [vmem:[%s745] sm:$0xff] %v790
    %s793 = scalar_lea.vmem [#allocation2], 96
    %v794 = vld [vmem:[%s793] sm:$0xff]
    %v795 = vpack.c.bf16 %v789, %v789
    %796 = vmatprep.subr.bf16.mxu0 0
    %797 = vmatpush1.bf16.msra.mxu0 %v269
    %798 = vmatprep.subr.bf16.mxu0 0
    %799 = vmatpush1.bf16.msra.mxu0 %v270
    %800 = vmatprep.subr.bf16.mxu0 0
    %801 = vmatpush1.bf16.msra.mxu0 %v271
    %802 = vmatprep.subr.bf16.mxu0 0
    %803 = vmatpush1.bf16.msra.mxu0 %v272
    %804 = vmatprep.subr.bf16.mxu0 0
    %805 = vmatpush1.bf16.msra.mxu0 %v273
    %806 = vmatprep.subr.bf16.mxu0 0
    %807 = vmatpush1.bf16.msra.mxu0 %v274
    %808 = vmatprep.subr.bf16.mxu0 0
    %809 = vmatpush1.bf16.msra.mxu0 %v275
    %810 = vmatprep.subr.bf16.mxu0 0
    %811 = vmatpush1.bf16.msra.mxu0 %v276
    %812 = vmatprep.subr.bf16.mxu0 0
    %813 = vmatpush1.bf16.msra.mxu0 0
    %814 = vmatprep.subr.bf16.mxu0 0
    %815 = vmatpush1.bf16.msra.mxu0 0
    %816 = vmatprep.subr.bf16.mxu0 0
    %817 = vmatpush1.bf16.msra.mxu0 0
    %818 = vmatprep.subr.bf16.mxu0 0
    %819 = vmatpush1.bf16.msra.mxu0 0
    %820 = vmatprep.subr.bf16.mxu0 0
    %821 = vmatpush1.bf16.msra.mxu0 0
    %822 = vmatprep.subr.bf16.mxu0 0
    %823 = vmatpush1.bf16.msra.mxu0 0
    %824 = vmatprep.subr.bf16.mxu0 0
    %825 = vmatpush1.bf16.msra.mxu0 0
    %826 = vmatprep.subr.bf16.mxu0 0
    %827 = vmatpush1.bf16.msra.mxu0 0
    %828 = vmatprep.mubr.bf16.mxu0 0
    %829 = vmatmul.mubr.bf16.gmra.mrb[0].mxu0 %v795
    %v830 = vpop.f32.mrb[0].mxu0
    %v831 = vadd.f32 0.0, %v830
    %v832 = vpop.f32.mrb[0].mxu0
    %v833 = vpop.f32.mrb[0].mxu0
    %v834 = vpop.f32.mrb[0].mxu0
    %835 = vdwg.mxu0
    %v836 = vadd.f32 %v794, %v831
    %s837 = scalar_lea.vmem [#allocation2], 104
    %v838 = vld [vmem:[%s837] sm:$0xff]
    %v839 = vpack.c.bf16 %v790, %v790
    %840 = vmatprep.subr.bf16.mxu0 0
    %841 = vmatpush1.bf16.msra.mxu0 %v269
    %842 = vmatprep.subr.bf16.mxu0 0
    %843 = vmatpush1.bf16.msra.mxu0 %v270
    %844 = vmatprep.subr.bf16.mxu0 0
    %845 = vmatpush1.bf16.msra.mxu0 %v271
    %846 = vmatprep.subr.bf16.mxu0 0
    %847 = vmatpush1.bf16.msra.mxu0 %v272
    %848 = vmatprep.subr.bf16.mxu0 0
    %849 = vmatpush1.bf16.msra.mxu0 %v273
    %850 = vmatprep.subr.bf16.mxu0 0
    %851 = vmatpush1.bf16.msra.mxu0 %v274
    %852 = vmatprep.subr.bf16.mxu0 0
    %853 = vmatpush1.bf16.msra.mxu0 %v275
    %854 = vmatprep.subr.bf16.mxu0 0
    %855 = vmatpush1.bf16.msra.mxu0 %v276
    %856 = vmatprep.subr.bf16.mxu0 0
    %857 = vmatpush1.bf16.msra.mxu0 0
    %858 = vmatprep.subr.bf16.mxu0 0
    %859 = vmatpush1.bf16.msra.mxu0 0
    %860 = vmatprep.subr.bf16.mxu0 0
    %861 = vmatpush1.bf16.msra.mxu0 0
    %862 = vmatprep.subr.bf16.mxu0 0
    %863 = vmatpush1.bf16.msra.mxu0 0
    %864 = vmatprep.subr.bf16.mxu0 0
    %865 = vmatpush1.bf16.msra.mxu0 0
    %866 = vmatprep.subr.bf16.mxu0 0
    %867 = vmatpush1.bf16.msra.mxu0 0
    %868 = vmatprep.subr.bf16.mxu0 0
    %869 = vmatpush1.bf16.msra.mxu0 0
    %870 = vmatprep.subr.bf16.mxu0 0
    %871 = vmatpush1.bf16.msra.mxu0 0
    %872 = vmatprep.mubr.bf16.mxu0 0
    %873 = vmatmul.mubr.bf16.gmra.mrb[0].mxu0 %v839
    %v874 = vpop.f32.mrb[0].mxu0
    %v875 = vadd.f32 0.0, %v874
    %v876 = vpop.f32.mrb[0].mxu0
    %v877 = vpop.f32.mrb[0].mxu0
    %v878 = vpop.f32.mrb[0].mxu0
    %879 = vdwg.mxu0
    %v880 = vadd.f32 %v838, %v875
    %v881 = vmax.f32 %v836, 0.0
    %v882 = vmax.f32 %v880, 0.0
    %883 = vst [vmem:[%s793] sm:$0xff] %v881
    %884 = vst [vmem:[%s837] sm:$0xff] %v882
    %s885 = scalar_lea.vmem [#allocation2], 112
    %v886 = vld [vmem:[%s885] sm:$0xff]
    %v887 = vpack.c.bf16 %v881, %v881
    %888 = vmatprep.subr.bf16.mxu0 0
    %889 = vmatpush1.bf16.msra.mxu0 %v269
    %890 = vmatprep.subr.bf16.mxu0 0
    %891 = vmatpush1.bf16.msra.mxu0 %v270
    %892 = vmatprep.subr.bf16.mxu0 0
    %893 = vmatpush1.bf16.msra.mxu0 %v271
    %894 = vmatprep.subr.bf16.mxu0 0
    %895 = vmatpush1.bf16.msra.mxu0 %v272
    %896 = vmatprep.subr.bf16.mxu0 0
    %897 = vmatpush1.bf16.msra.mxu0 %v273
    %898 = vmatprep.subr.bf16.mxu0 0
    %899 = vmatpush1.bf16.msra.mxu0 %v274
    %900 = vmatprep.subr.bf16.mxu0 0
    %901 = vmatpush1.bf16.msra.mxu0 %v275
    %902 = vmatprep.subr.bf16.mxu0 0
    %903 = vmatpush1.bf16.msra.mxu0 %v276
    %904 = vmatprep.subr.bf16.mxu0 0
    %905 = vmatpush1.bf16.msra.mxu0 0
    %906 = vmatprep.subr.bf16.mxu0 0
    %907 = vmatpush1.bf16.msra.mxu0 0
    %908 = vmatprep.subr.bf16.mxu0 0
    %909 = vmatpush1.bf16.msra.mxu0 0
    %910 = vmatprep.subr.bf16.mxu0 0
    %911 = vmatpush1.bf16.msra.mxu0 0
    %912 = vmatprep.subr.bf16.mxu0 0
    %913 = vmatpush1.bf16.msra.mxu0 0
    %914 = vmatprep.subr.bf16.mxu0 0
    %915 = vmatpush1.bf16.msra.mxu0 0
    %916 = vmatprep.subr.bf16.mxu0 0
    %917 = vmatpush1.bf16.msra.mxu0 0
    %918 = vmatprep.subr.bf16.mxu0 0
    %919 = vmatpush1.bf16.msra.mxu0 0
    %920 = vmatprep.mubr.bf16.mxu0 0
    %921 = vmatmul.mubr.bf16.gmra.mrb[0].mxu0 %v887
    %v922 = vpop.f32.mrb[0].mxu0
    %v923 = vadd.f32 0.0, %v922
    %v924 = vpop.f32.mrb[0].mxu0
    %v925 = vpop.f32.mrb[0].mxu0
    %v926 = vpop.f32.mrb[0].mxu0
    %927 = vdwg.mxu0
    %v928 = vadd.f32 %v886, %v923
    %s929 = scalar_lea.vmem [#allocation2], 120
    %v930 = vld [vmem:[%s929] sm:$0xff]
    %v931 = vpack.c.bf16 %v882, %v882
    %932 = vmatprep.subr.bf16.mxu0 0
    %933 = vmatpush1.bf16.msra.mxu0 %v269
    %934 = vmatprep.subr.bf16.mxu0 0
    %935 = vmatpush1.bf16.msra.mxu0 %v270
    %936 = vmatprep.subr.bf16.mxu0 0
    %937 = vmatpush1.bf16.msra.mxu0 %v271
    %938 = vmatprep.subr.bf16.mxu0 0
    %939 = vmatpush1.bf16.msra.mxu0 %v272
    %940 = vmatprep.subr.bf16.mxu0 0
    %941 = vmatpush1.bf16.msra.mxu0 %v273
    %942 = vmatprep.subr.bf16.mxu0 0
    %943 = vmatpush1.bf16.msra.mxu0 %v274
    %944 = vmatprep.subr.bf16.mxu0 0
    %945 = vmatpush1.bf16.msra.mxu0 %v275
    %946 = vmatprep.subr.bf16.mxu0 0
    %947 = vmatpush1.bf16.msra.mxu0 %v276
    %948 = vmatprep.subr.bf16.mxu0 0
    %949 = vmatpush1.bf16.msra.mxu0 0
    %950 = vmatprep.subr.bf16.mxu0 0
    %951 = vmatpush1.bf16.msra.mxu0 0
    %952 = vmatprep.subr.bf16.mxu0 0
    %953 = vmatpush1.bf16.msra.mxu0 0
    %954 = vmatprep.subr.bf16.mxu0 0
    %955 = vmatpush1.bf16.msra.mxu0 0
    %956 = vmatprep.subr.bf16.mxu0 0
    %957 = vmatpush1.bf16.msra.mxu0 0
    %958 = vmatprep.subr.bf16.mxu0 0
    %959 = vmatpush1.bf16.msra.mxu0 0
    %960 = vmatprep.subr.bf16.mxu0 0
    %961 = vmatpush1.bf16.msra.mxu0 0
    %962 = vmatprep.subr.bf16.mxu0 0
    %963 = vmatpush1.bf16.msra.mxu0 0
    %964 = vmatprep.mubr.bf16.mxu0 0
    %965 = vmatmul.mubr.bf16.gmra.mrb[0].mxu0 %v931
    %v966 = vpop.f32.mrb[0].mxu0
    %v967 = vadd.f32 0.0, %v966
    %v968 = vpop.f32.mrb[0].mxu0
    %v969 = vpop.f32.mrb[0].mxu0
    %v970 = vpop.f32.mrb[0].mxu0
    %971 = vdwg.mxu0
    %v972 = vadd.f32 %v930, %v967
    %v973 = vmax.f32 %v928, 0.0
    %v974 = vmax.f32 %v972, 0.0
    %975 = vst [vmem:[%s885] sm:$0xff] %v973
    %976 = vst [vmem:[%s929] sm:$0xff] %v974
    %v977 = vld [vmem:[%s4] sm:$0xf]
    %v978 = vld [vmem:[%s4 + $0x4] sm:$0xf]
    %v979 = vld [vmem:[%s4 + $0x8] sm:$0xf]
    %v980 = vld [vmem:[%s4 + $0xc] sm:$0xf]
    %v981 = vld [vmem:[%s4 + $0x10] sm:$0xf]
    %v982 = vld [vmem:[%s4 + $0x14] sm:$0xf]
    %v983 = vld [vmem:[%s4 + $0x18] sm:$0xf]
    %v984 = vld [vmem:[%s4 + $0x1c] sm:$0xf]
    %v985 = vld [vmem:[%s4 + $0x20] sm:$0xf]
    %v986 = vld [vmem:[%s4 + $0x24] sm:$0xf]
    %v987 = vld [vmem:[%s4 + $0x28] sm:$0xf]
    %v988 = vld [vmem:[%s4 + $0x2c] sm:$0xf]
    %v989 = vld [vmem:[%s4 + $0x30] sm:$0xf]
    %v990 = vld [vmem:[%s4 + $0x34] sm:$0xf]
    %v991 = vld [vmem:[%s4 + $0x38] sm:$0xf]
    %v992 = vld [vmem:[%s4 + $0x3c] sm:$0xf]
    %v993 = vld [vmem:[%s6] sm:$0x1]
    %v994 = vld [vmem:[#allocation2] sm:$0xff]
    %v995 = vld [vmem:[#allocation2 + $0x8] sm:$0xff]
    %v996 = vld [vmem:[#allocation2 + $0x10] sm:$0xff]
    %v997 = vld [vmem:[#allocation2 + $0x18] sm:$0xff]
    %v998 = vld [vmem:[#allocation2 + $0x20] sm:$0xff]
    %v999 = vld [vmem:[#allocation2 + $0x28] sm:$0xff]
    %v1000 = vld [vmem:[#allocation2 + $0x30] sm:$0xff]
    %v1001 = vld [vmem:[#allocation2 + $0x38] sm:$0xff]
    %v1002 = vld [vmem:[#allocation2 + $0x40] sm:$0xff]
    %v1003 = vld [vmem:[#allocation2 + $0x48] sm:$0xff]
    %v1004 = vld [vmem:[#allocation2 + $0x50] sm:$0xff]
    %v1005 = vld [vmem:[#allocation2 + $0x58] sm:$0xff]
    %v1006 = vld [vmem:[#allocation2 + $0x60] sm:$0xff]
    %v1007 = vld [vmem:[#allocation2 + $0x68] sm:$0xff]
    %v1008 = vld [vmem:[#allocation2 + $0x70] sm:$0xff]
    %v1009 = vld [vmem:[#allocation2 + $0x78] sm:$0xff]
    %v1010 = vpack.c.bf16 %v995, %v994
    %v1011 = vpack.c.bf16 %v997, %v996
    %v1012 = vpack.c.bf16 %v999, %v998
    %v1013 = vpack.c.bf16 %v1001, %v1000
    %v1014 = vpack.c.bf16 %v1003, %v1002
    %v1015 = vpack.c.bf16 %v1005, %v1004
    %v1016 = vpack.c.bf16 %v1007, %v1006
    %v1017 = vpack.c.bf16 %v1009, %v1008
    %v1019 = vlaneseq
    %v1020 = vshrl.u32 %v1019, 7
    %v1021 = vsub.s32 0, %v1020
    %v1022 = vrot.slane %v993, %v1021
    %v1040 = vunpack.c.l.b16 %v977
    %v1041 = vunpack.c.l.b16 %v978
    %v1042 = vunpack.c.l.b16 %v979
    %v1043 = vunpack.c.l.b16 %v980
    %v1044 = vunpack.c.l.b16 %v981
    %v1045 = vunpack.c.l.b16 %v982
    %v1046 = vunpack.c.l.b16 %v983
    %v1047 = vunpack.c.l.b16 %v984
    %v1048 = vunpack.c.l.b16 %v985
    %v1049 = vunpack.c.l.b16 %v986
    %v1050 = vunpack.c.l.b16 %v987
    %v1051 = vunpack.c.l.b16 %v988
    %v1052 = vunpack.c.l.b16 %v989
    %v1053 = vunpack.c.l.b16 %v990
    %v1054 = vunpack.c.l.b16 %v991
    %v1055 = vunpack.c.l.b16 %v992
    %v1056 = vpack.c.b16 %v1041, %v1040
    %v1057 = vpack.c.b16 %v1043, %v1042
    %v1058 = vpack.c.b16 %v1045, %v1044
    %v1059 = vpack.c.b16 %v1047, %v1046
    %v1060 = vpack.c.b16 %v1049, %v1048
    %v1061 = vpack.c.b16 %v1051, %v1050
    %v1062 = vpack.c.b16 %v1053, %v1052
    %v1063 = vpack.c.b16 %v1055, %v1054
    %1072 = vmatprep.subr.bf16.mxu0 0
    %1073 = vmatpush1.bf16.msra.mxu0 %v1056
    %1074 = vmatprep.subr.bf16.mxu0 0
    %1075 = vmatpush1.bf16.msra.mxu0 %v1057
    %1076 = vmatprep.subr.bf16.mxu0 0
    %1077 = vmatpush1.bf16.msra.mxu0 %v1058
    %1078 = vmatprep.subr.bf16.mxu0 0
    %1079 = vmatpush1.bf16.msra.mxu0 %v1059
    %1080 = vmatprep.subr.bf16.mxu0 0
    %1081 = vmatpush1.bf16.msra.mxu0 %v1060
    %1082 = vmatprep.subr.bf16.mxu0 0
    %1083 = vmatpush1.bf16.msra.mxu0 %v1061
    %1084 = vmatprep.subr.bf16.mxu0 0
    %1085 = vmatpush1.bf16.msra.mxu0 %v1062
    %1086 = vmatprep.subr.bf16.mxu0 0
    %1087 = vmatpush1.bf16.msra.mxu0 %v1063
    %1088 = vmatprep.subr.bf16.mxu0 0
    %1089 = vmatpush1.bf16.msra.mxu0 0
    %1090 = vmatprep.subr.bf16.mxu0 0
    %1091 = vmatpush1.bf16.msra.mxu0 0
    %1092 = vmatprep.subr.bf16.mxu0 0
    %1093 = vmatpush1.bf16.msra.mxu0 0
    %1094 = vmatprep.subr.bf16.mxu0 0
    %1095 = vmatpush1.bf16.msra.mxu0 0
    %1096 = vmatprep.subr.bf16.mxu0 0
    %1097 = vmatpush1.bf16.msra.mxu0 0
    %1098 = vmatprep.subr.bf16.mxu0 0
    %1099 = vmatpush1.bf16.msra.mxu0 0
    %1100 = vmatprep.subr.bf16.mxu0 0
    %1101 = vmatpush1.bf16.msra.mxu0 0
    %1102 = vmatprep.subr.bf16.mxu0 0
    %1103 = vmatpush1.bf16.msra.mxu0 0
    %1104 = vmatprep.mubr.bf16.mxu0 0
    %1105 = vmatmul.mubr.bf16.gmra.mrb[0].mxu0 %v1010
    %v1106 = vpop.f32.mrb[0].mxu0
    %v1107 = vadd.f32 %v1022, %v1106
    %v1108 = vpop.f32.mrb[0].mxu0
    %v1109 = vpop.f32.mrb[0].mxu0
    %v1110 = vadd.f32 %v1022, %v1109
    %v1111 = vpop.f32.mrb[0].mxu0
    %1112 = vmatprep.mubr.bf16.mxu0 0
    %1113 = vmatmul.mubr.bf16.gmra.mrb[0].mxu0 %v1011
    %v1114 = vpop.f32.mrb[0].mxu0
    %v1115 = vadd.f32 %v1022, %v1114
    %v1116 = vpop.f32.mrb[0].mxu0
    %v1117 = vpop.f32.mrb[0].mxu0
    %v1118 = vadd.f32 %v1022, %v1117
    %v1119 = vpop.f32.mrb[0].mxu0
    %1120 = vmatprep.mubr.bf16.mxu0 0
    %1121 = vmatmul.mubr.bf16.gmra.mrb[0].mxu0 %v1012
    %v1122 = vpop.f32.mrb[0].mxu0
    %v1123 = vadd.f32 %v1022, %v1122
    %v1124 = vpop.f32.mrb[0].mxu0
    %v1125 = vpop.f32.mrb[0].mxu0
    %v1126 = vadd.f32 %v1022, %v1125
    %v1127 = vpop.f32.mrb[0].mxu0
    %1128 = vmatprep.mubr.bf16.mxu0 0
    %1129 = vmatmul.mubr.bf16.gmra.mrb[0].mxu0 %v1013
    %v1130 = vpop.f32.mrb[0].mxu0
    %v1131 = vadd.f32 %v1022, %v1130
    %v1132 = vpop.f32.mrb[0].mxu0
    %v1133 = vpop.f32.mrb[0].mxu0
    %v1134 = vadd.f32 %v1022, %v1133
    %v1135 = vpop.f32.mrb[0].mxu0
    %1136 = vmatprep.mubr.bf16.mxu0 0
    %1137 = vmatmul.mubr.bf16.gmra.mrb[0].mxu0 %v1014
    %v1138 = vpop.f32.mrb[0].mxu0
    %v1139 = vadd.f32 %v1022, %v1138
    %v1140 = vpop.f32.mrb[0].mxu0
    %v1141 = vpop.f32.mrb[0].mxu0
    %v1142 = vadd.f32 %v1022, %v1141
    %v1143 = vpop.f32.mrb[0].mxu0
    %1144 = vmatprep.mubr.bf16.mxu0 0
    %1145 = vmatmul.mubr.bf16.gmra.mrb[0].mxu0 %v1015
    %v1146 = vpop.f32.mrb[0].mxu0
    %v1147 = vadd.f32 %v1022, %v1146
    %v1148 = vpop.f32.mrb[0].mxu0
    %v1149 = vpop.f32.mrb[0].mxu0
    %v1150 = vadd.f32 %v1022, %v1149
    %v1151 = vpop.f32.mrb[0].mxu0
    %1152 = vmatprep.mubr.bf16.mxu0 0
    %1153 = vmatmul.mubr.bf16.gmra.mrb[0].mxu0 %v1016
    %v1154 = vpop.f32.mrb[0].mxu0
    %v1155 = vadd.f32 %v1022, %v1154
    %v1156 = vpop.f32.mrb[0].mxu0
    %v1157 = vpop.f32.mrb[0].mxu0
    %v1158 = vadd.f32 %v1022, %v1157
    %v1159 = vpop.f32.mrb[0].mxu0
    %1160 = vmatprep.mubr.bf16.mxu0 0
    %1161 = vmatmul.mubr.bf16.gmra.mrb[0].mxu0 %v1017
    %v1162 = vpop.f32.mrb[0].mxu0
    %v1163 = vadd.f32 %v1022, %v1162
    %v1164 = vpop.f32.mrb[0].mxu0
    %v1165 = vpop.f32.mrb[0].mxu0
    %v1166 = vadd.f32 %v1022, %v1165
    %v1167 = vpop.f32.mrb[0].mxu0
    %1168 = vdwg.mxu0
    %1169 = vst [vmem:[#allocation2] sm:$0xff] %v1107
    %1170 = vst [vmem:[#allocation2 + $0x8] sm:$0xff] %v1110
    %1171 = vst [vmem:[#allocation2 + $0x10] sm:$0xff] %v1115
    %1172 = vst [vmem:[#allocation2 + $0x18] sm:$0xff] %v1118
    %1173 = vst [vmem:[#allocation2 + $0x20] sm:$0xff] %v1123
    %1174 = vst [vmem:[#allocation2 + $0x28] sm:$0xff] %v1126
    %1175 = vst [vmem:[#allocation2 + $0x30] sm:$0xff] %v1131
    %1176 = vst [vmem:[#allocation2 + $0x38] sm:$0xff] %v1134
    %1177 = vst [vmem:[#allocation2 + $0x40] sm:$0xff] %v1139
    %1178 = vst [vmem:[#allocation2 + $0x48] sm:$0xff] %v1142
    %1179 = vst [vmem:[#allocation2 + $0x50] sm:$0xff] %v1147
    %1180 = vst [vmem:[#allocation2 + $0x58] sm:$0xff] %v1150
    %1181 = vst [vmem:[#allocation2 + $0x60] sm:$0xff] %v1155
    %1182 = vst [vmem:[#allocation2 + $0x68] sm:$0xff] %v1158
    %1183 = vst [vmem:[#allocation2 + $0x70] sm:$0xff] %v1163
    %1184 = vst [vmem:[#allocation2 + $0x78] sm:$0xff] %v1166
    %v1185 = vld [vmem:[#allocation3] sm:$0xf]
    %v1186 = vld [vmem:[#allocation3 + $0x4] sm:$0xf]
    %v1187 = vld [vmem:[#allocation3 + $0x8] sm:$0xf]
    %v1188 = vld [vmem:[#allocation3 + $0xc] sm:$0xf]
    %v1189 = vld [vmem:[#allocation3 + $0x10] sm:$0xf]
    %v1190 = vld [vmem:[#allocation3 + $0x14] sm:$0xf]
    %v1191 = vld [vmem:[#allocation3 + $0x18] sm:$0xf]
    %v1192 = vld [vmem:[#allocation3 + $0x1c] sm:$0xf]
    %v1193 = vld [vmem:[#allocation3 + $0x20] sm:$0xf]
    %v1194 = vld [vmem:[#allocation3 + $0x24] sm:$0xf]
    %v1195 = vld [vmem:[#allocation3 + $0x28] sm:$0xf]
    %v1196 = vld [vmem:[#allocation3 + $0x2c] sm:$0xf]
    %v1197 = vld [vmem:[#allocation3 + $0x30] sm:$0xf]
    %v1198 = vld [vmem:[#allocation3 + $0x34] sm:$0xf]
    %v1199 = vld [vmem:[#allocation3 + $0x38] sm:$0xf]
    %v1200 = vld [vmem:[#allocation3 + $0x3c] sm:$0xf]
    %v1201 = vld [vmem:[#allocation2] sm:$0xff]
    %v1218 = vunpack.c.l.b16 %v1185
    %v1219 = vunpack.c.l.b16 %v1186
    %v1220 = vunpack.c.l.b16 %v1187
    %v1221 = vunpack.c.l.b16 %v1188
    %v1222 = vunpack.c.l.b16 %v1189
    %v1223 = vunpack.c.l.b16 %v1190
    %v1224 = vunpack.c.l.b16 %v1191
    %v1225 = vunpack.c.l.b16 %v1192
    %v1226 = vunpack.c.l.b16 %v1193
    %v1227 = vunpack.c.l.b16 %v1194
    %v1228 = vunpack.c.l.b16 %v1195
    %v1229 = vunpack.c.l.b16 %v1196
    %v1230 = vunpack.c.l.b16 %v1197
    %v1231 = vunpack.c.l.b16 %v1198
    %v1232 = vunpack.c.l.b16 %v1199
    %v1233 = vunpack.c.l.b16 %v1200
    %v1234 = vpack.c.b16 %v1219, %v1218
    %v1235 = vpack.c.b16 %v1221, %v1220
    %v1236 = vpack.c.b16 %v1223, %v1222
    %v1237 = vpack.c.b16 %v1225, %v1224
    %v1238 = vpack.c.b16 %v1227, %v1226
    %v1239 = vpack.c.b16 %v1229, %v1228
    %v1240 = vpack.c.b16 %v1231, %v1230
    %v1241 = vpack.c.b16 %v1233, %v1232
    %1250 = vmatprep.subr.bf16.mxu0 0
    %1251 = vmatpush1.bf16.msra.mxu0 %v1234
    %1252 = vmatprep.subr.bf16.mxu0 0
    %1253 = vmatpush1.bf16.msra.mxu0 %v1235
    %1254 = vmatprep.subr.bf16.mxu0 0
    %1255 = vmatpush1.bf16.msra.mxu0 %v1236
    %1256 = vmatprep.subr.bf16.mxu0 0
    %1257 = vmatpush1.bf16.msra.mxu0 %v1237
    %1258 = vmatprep.subr.bf16.mxu0 0
    %1259 = vmatpush1.bf16.msra.mxu0 %v1238
    %1260 = vmatprep.subr.bf16.mxu0 0
    %1261 = vmatpush1.bf16.msra.mxu0 %v1239
    %1262 = vmatprep.subr.bf16.mxu0 0
    %1263 = vmatpush1.bf16.msra.mxu0 %v1240
    %1264 = vmatprep.subr.bf16.mxu0 0
    %1265 = vmatpush1.bf16.msra.mxu0 %v1241
    %1266 = vmatprep.subr.bf16.mxu0 0
    %1267 = vmatpush1.bf16.msra.mxu0 0
    %1268 = vmatprep.subr.bf16.mxu0 0
    %1269 = vmatpush1.bf16.msra.mxu0 0
    %1270 = vmatprep.subr.bf16.mxu0 0
    %1271 = vmatpush1.bf16.msra.mxu0 0
    %1272 = vmatprep.subr.bf16.mxu0 0
    %1273 = vmatpush1.bf16.msra.mxu0 0
    %1274 = vmatprep.subr.bf16.mxu0 0
    %1275 = vmatpush1.bf16.msra.mxu0 0
    %1276 = vmatprep.subr.bf16.mxu0 0
    %1277 = vmatpush1.bf16.msra.mxu0 0
    %1278 = vmatprep.subr.bf16.mxu0 0
    %1279 = vmatpush1.bf16.msra.mxu0 0
    %1280 = vmatprep.subr.bf16.mxu0 0
    %1281 = vmatpush1.bf16.msra.mxu0 0
    %1282 = vmatprep.mubr.bf16.mxu0 0
    %1283 = vmatmul.mubr.bf16.gmra.mrb[0].mxu0 0
    %v1284 = vpop.f32.mrb[0].mxu0
    %v1285 = vadd.f32 0.0, %v1284
    %v1286 = vpop.f32.mrb[0].mxu0
    %v1287 = vpop.f32.mrb[0].mxu0
    %v1288 = vpop.f32.mrb[0].mxu0
    %1289 = vdwg.mxu0
    %v1290 = vadd.f32 %v1201, %v1285
    %v1291 = vld [vmem:[%s326] sm:$0xff]
    %v1292 = vadd.f32 %v1291, %v1285
    %v1293 = vmax.f32 %v1290, 0.0
    %v1294 = vmax.f32 %v1292, 0.0
    %v1295 = vld [vmem:[%s333] sm:$0xff]
    %v1296 = vpack.c.bf16 %v1293, %v1293
    %1297 = vmatprep.subr.bf16.mxu0 0
    %1298 = vmatpush1.bf16.msra.mxu0 %v1234
    %1299 = vmatprep.subr.bf16.mxu0 0
    %1300 = vmatpush1.bf16.msra.mxu0 %v1235
    %1301 = vmatprep.subr.bf16.mxu0 0
    %1302 = vmatpush1.bf16.msra.mxu0 %v1236
    %1303 = vmatprep.subr.bf16.mxu0 0
    %1304 = vmatpush1.bf16.msra.mxu0 %v1237
    %1305 = vmatprep.subr.bf16.mxu0 0
    %1306 = vmatpush1.bf16.msra.mxu0 %v1238
    %1307 = vmatprep.subr.bf16.mxu0 0
    %1308 = vmatpush1.bf16.msra.mxu0 %v1239
    %1309 = vmatprep.subr.bf16.mxu0 0
    %1310 = vmatpush1.bf16.msra.mxu0 %v1240
    %1311 = vmatprep.subr.bf16.mxu0 0
    %1312 = vmatpush1.bf16.msra.mxu0 %v1241
    %1313 = vmatprep.subr.bf16.mxu0 0
    %1314 = vmatpush1.bf16.msra.mxu0 0
    %1315 = vmatprep.subr.bf16.mxu0 0
    %1316 = vmatpush1.bf16.msra.mxu0 0
    %1317 = vmatprep.subr.bf16.mxu0 0
    %1318 = vmatpush1.bf16.msra.mxu0 0
    %1319 = vmatprep.subr.bf16.mxu0 0
    %1320 = vmatpush1.bf16.msra.mxu0 0
    %1321 = vmatprep.subr.bf16.mxu0 0
    %1322 = vmatpush1.bf16.msra.mxu0 0
    %1323 = vmatprep.subr.bf16.mxu0 0
    %1324 = vmatpush1.bf16.msra.mxu0 0
    %1325 = vmatprep.subr.bf16.mxu0 0
    %1326 = vmatpush1.bf16.msra.mxu0 0
    %1327 = vmatprep.subr.bf16.mxu0 0
    %1328 = vmatpush1.bf16.msra.mxu0 0
    %1329 = vmatprep.mubr.bf16.mxu0 0
    %1330 = vmatmul.mubr.bf16.gmra.mrb[0].mxu0 %v1296
    %v1331 = vpop.f32.mrb[0].mxu0
    %v1332 = vadd.f32 0.0, %v1331
    %v1333 = vpop.f32.mrb[0].mxu0
    %v1334 = vpop.f32.mrb[0].mxu0
    %v1335 = vpop.f32.mrb[0].mxu0
    %1336 = vdwg.mxu0
    %v1337 = vadd.f32 %v1295, %v1332
    %v1338 = vld [vmem:[%s377] sm:$0xff]
    %v1339 = vpack.c.bf16 %v1294, %v1294
    %1340 = vmatprep.subr.bf16.mxu0 0
    %1341 = vmatpush1.bf16.msra.mxu0 %v1234
    %1342 = vmatprep.subr.bf16.mxu0 0
    %1343 = vmatpush1.bf16.msra.mxu0 %v1235
    %1344 = vmatprep.subr.bf16.mxu0 0
    %1345 = vmatpush1.bf16.msra.mxu0 %v1236
    %1346 = vmatprep.subr.bf16.mxu0 0
    %1347 = vmatpush1.bf16.msra.mxu0 %v1237
    %1348 = vmatprep.subr.bf16.mxu0 0
    %1349 = vmatpush1.bf16.msra.mxu0 %v1238
    %1350 = vmatprep.subr.bf16.mxu0 0
    %1351 = vmatpush1.bf16.msra.mxu0 %v1239
    %1352 = vmatprep.subr.bf16.mxu0 0
    %1353 = vmatpush1.bf16.msra.mxu0 %v1240
    %1354 = vmatprep.subr.bf16.mxu0 0
    %1355 = vmatpush1.bf16.msra.mxu0 %v1241
    %1356 = vmatprep.subr.bf16.mxu0 0
    %1357 = vmatpush1.bf16.msra.mxu0 0
    %1358 = vmatprep.subr.bf16.mxu0 0
    %1359 = vmatpush1.bf16.msra.mxu0 0
    %1360 = vmatprep.subr.bf16.mxu0 0
    %1361 = vmatpush1.bf16.msra.mxu0 0
    %1362 = vmatprep.subr.bf16.mxu0 0
    %1363 = vmatpush1.bf16.msra.mxu0 0
    %1364 = vmatprep.subr.bf16.mxu0 0
    %1365 = vmatpush1.bf16.msra.mxu0 0
    %1366 = vmatprep.subr.bf16.mxu0 0
    %1367 = vmatpush1.bf16.msra.mxu0 0
    %1368 = vmatprep.subr.bf16.mxu0 0
    %1369 = vmatpush1.bf16.msra.mxu0 0
    %1370 = vmatprep.subr.bf16.mxu0 0
    %1371 = vmatpush1.bf16.msra.mxu0 0
    %1372 = vmatprep.mubr.bf16.mxu0 0
    %1373 = vmatmul.mubr.bf16.gmra.mrb[0].mxu0 %v1339
    %v1374 = vpop.f32.mrb[0].mxu0
    %v1375 = vadd.f32 0.0, %v1374
    %v1376 = vpop.f32.mrb[0].mxu0
    %v1377 = vpop.f32.mrb[0].mxu0
    %v1378 = vpop.f32.mrb[0].mxu0
    %1379 = vdwg.mxu0
    %v1380 = vadd.f32 %v1338, %v1375
    %v1381 = vmax.f32 %v1337, 0.0
    %v1382 = vmax.f32 %v1380, 0.0
    %v1383 = vld [vmem:[%s425] sm:$0xff]
    %v1384 = vpack.c.bf16 %v1381, %v1381
    %1385 = vmatprep.subr.bf16.mxu0 0
    %1386 = vmatpush1.bf16.msra.mxu0 %v1234
    %1387 = vmatprep.subr.bf16.mxu0 0
    %1388 = vmatpush1.bf16.msra.mxu0 %v1235
    %1389 = vmatprep.subr.bf16.mxu0 0
    %1390 = vmatpush1.bf16.msra.mxu0 %v1236
    %1391 = vmatprep.subr.bf16.mxu0 0
    %1392 = vmatpush1.bf16.msra.mxu0 %v1237
    %1393 = vmatprep.subr.bf16.mxu0 0
    %1394 = vmatpush1.bf16.msra.mxu0 %v1238
    %1395 = vmatprep.subr.bf16.mxu0 0
    %1396 = vmatpush1.bf16.msra.mxu0 %v1239
    %1397 = vmatprep.subr.bf16.mxu0 0
    %1398 = vmatpush1.bf16.msra.mxu0 %v1240
    %1399 = vmatprep.subr.bf16.mxu0 0
    %1400 = vmatpush1.bf16.msra.mxu0 %v1241
    %1401 = vmatprep.subr.bf16.mxu0 0
    %1402 = vmatpush1.bf16.msra.mxu0 0
    %1403 = vmatprep.subr.bf16.mxu0 0
    %1404 = vmatpush1.bf16.msra.mxu0 0
    %1405 = vmatprep.subr.bf16.mxu0 0
    %1406 = vmatpush1.bf16.msra.mxu0 0
    %1407 = vmatprep.subr.bf16.mxu0 0
    %1408 = vmatpush1.bf16.msra.mxu0 0
    %1409 = vmatprep.subr.bf16.mxu0 0
    %1410 = vmatpush1.bf16.msra.mxu0 0
    %1411 = vmatprep.subr.bf16.mxu0 0
    %1412 = vmatpush1.bf16.msra.mxu0 0
    %1413 = vmatprep.subr.bf16.mxu0 0
    %1414 = vmatpush1.bf16.msra.mxu0 0
    %1415 = vmatprep.subr.bf16.mxu0 0
    %1416 = vmatpush1.bf16.msra.mxu0 0
    %1417 = vmatprep.mubr.bf16.mxu0 0
    %1418 = vmatmul.mubr.bf16.gmra.mrb[0].mxu0 %v1384
    %v1419 = vpop.f32.mrb[0].mxu0
    %v1420 = vadd.f32 0.0, %v1419
    %v1421 = vpop.f32.mrb[0].mxu0
    %v1422 = vpop.f32.mrb[0].mxu0
    %v1423 = vpop.f32.mrb[0].mxu0
    %1424 = vdwg.mxu0
    %v1425 = vadd.f32 %v1383, %v1420
    %v1426 = vld [vmem:[%s469] sm:$0xff]
    %v1427 = vpack.c.bf16 %v1382, %v1382
    %1428 = vmatprep.subr.bf16.mxu0 0
    %1429 = vmatpush1.bf16.msra.mxu0 %v1234
    %1430 = vmatprep.subr.bf16.mxu0 0
    %1431 = vmatpush1.bf16.msra.mxu0 %v1235
    %1432 = vmatprep.subr.bf16.mxu0 0
    %1433 = vmatpush1.bf16.msra.mxu0 %v1236
    %1434 = vmatprep.subr.bf16.mxu0 0
    %1435 = vmatpush1.bf16.msra.mxu0 %v1237
    %1436 = vmatprep.subr.bf16.mxu0 0
    %1437 = vmatpush1.bf16.msra.mxu0 %v1238
    %1438 = vmatprep.subr.bf16.mxu0 0
    %1439 = vmatpush1.bf16.msra.mxu0 %v1239
    %1440 = vmatprep.subr.bf16.mxu0 0
    %1441 = vmatpush1.bf16.msra.mxu0 %v1240
    %1442 = vmatprep.subr.bf16.mxu0 0
    %1443 = vmatpush1.bf16.msra.mxu0 %v1241
    %1444 = vmatprep.subr.bf16.mxu0 0
    %1445 = vmatpush1.bf16.msra.mxu0 0
    %1446 = vmatprep.subr.bf16.mxu0 0
    %1447 = vmatpush1.bf16.msra.mxu0 0
    %1448 = vmatprep.subr.bf16.mxu0 0
    %1449 = vmatpush1.bf16.msra.mxu0 0
    %1450 = vmatprep.subr.bf16.mxu0 0
    %1451 = vmatpush1.bf16.msra.mxu0 0
    %1452 = vmatprep.subr.bf16.mxu0 0
    %1453 = vmatpush1.bf16.msra.mxu0 0
    %1454 = vmatprep.subr.bf16.mxu0 0
    %1455 = vmatpush1.bf16.msra.mxu0 0
    %1456 = vmatprep.subr.bf16.mxu0 0
    %1457 = vmatpush1.bf16.msra.mxu0 0
    %1458 = vmatprep.subr.bf16.mxu0 0
    %1459 = vmatpush1.bf16.msra.mxu0 0
    %1460 = vmatprep.mubr.bf16.mxu0 0
    %1461 = vmatmul.mubr.bf16.gmra.mrb[0].mxu0 %v1427
    %v1462 = vpop.f32.mrb[0].mxu0
    %v1463 = vadd.f32 0.0, %v1462
    %v1464 = vpop.f32.mrb[0].mxu0
    %v1465 = vpop.f32.mrb[0].mxu0
    %v1466 = vpop.f32.mrb[0].mxu0
    %1467 = vdwg.mxu0
    %v1468 = vadd.f32 %v1426, %v1463
    %v1469 = vmax.f32 %v1425, 0.0
    %v1470 = vmax.f32 %v1468, 0.0
    %v1471 = vld [vmem:[%s517] sm:$0xff]
    %v1472 = vpack.c.bf16 %v1469, %v1469
    %1473 = vmatprep.subr.bf16.mxu0 0
    %1474 = vmatpush1.bf16.msra.mxu0 %v1234
    %1475 = vmatprep.subr.bf16.mxu0 0
    %1476 = vmatpush1.bf16.msra.mxu0 %v1235
    %1477 = vmatprep.subr.bf16.mxu0 0
    %1478 = vmatpush1.bf16.msra.mxu0 %v1236
    %1479 = vmatprep.subr.bf16.mxu0 0
    %1480 = vmatpush1.bf16.msra.mxu0 %v1237
    %1481 = vmatprep.subr.bf16.mxu0 0
    %1482 = vmatpush1.bf16.msra.mxu0 %v1238
    %1483 = vmatprep.subr.bf16.mxu0 0
    %1484 = vmatpush1.bf16.msra.mxu0 %v1239
    %1485 = vmatprep.subr.bf16.mxu0 0
    %1486 = vmatpush1.bf16.msra.mxu0 %v1240
    %1487 = vmatprep.subr.bf16.mxu0 0
    %1488 = vmatpush1.bf16.msra.mxu0 %v1241
    %1489 = vmatprep.subr.bf16.mxu0 0
    %1490 = vmatpush1.bf16.msra.mxu0 0
    %1491 = vmatprep.subr.bf16.mxu0 0
    %1492 = vmatpush1.bf16.msra.mxu0 0
    %1493 = vmatprep.subr.bf16.mxu0 0
    %1494 = vmatpush1.bf16.msra.mxu0 0
    %1495 = vmatprep.subr.bf16.mxu0 0
    %1496 = vmatpush1.bf16.msra.mxu0 0
    %1497 = vmatprep.subr.bf16.mxu0 0
    %1498 = vmatpush1.bf16.msra.mxu0 0
    %1499 = vmatprep.subr.bf16.mxu0 0
    %1500 = vmatpush1.bf16.msra.mxu0 0
    %1501 = vmatprep.subr.bf16.mxu0 0
    %1502 = vmatpush1.bf16.msra.mxu0 0
    %1503 = vmatprep.subr.bf16.mxu0 0
    %1504 = vmatpush1.bf16.msra.mxu0 0
    %1505 = vmatprep.mubr.bf16.mxu0 0
    %1506 = vmatmul.mubr.bf16.gmra.mrb[0].mxu0 %v1472
    %v1507 = vpop.f32.mrb[0].mxu0
    %v1508 = vadd.f32 0.0, %v1507
    %v1509 = vpop.f32.mrb[0].mxu0
    %v1510 = vpop.f32.mrb[0].mxu0
    %v1511 = vpop.f32.mrb[0].mxu0
    %1512 = vdwg.mxu0
    %v1513 = vadd.f32 %v1471, %v1508
    %v1514 = vld [vmem:[%s561] sm:$0xff]
    %v1515 = vpack.c.bf16 %v1470, %v1470
    %1516 = vmatprep.subr.bf16.mxu0 0
    %1517 = vmatpush1.bf16.msra.mxu0 %v1234
    %1518 = vmatprep.subr.bf16.mxu0 0
    %1519 = vmatpush1.bf16.msra.mxu0 %v1235
    %1520 = vmatprep.subr.bf16.mxu0 0
    %1521 = vmatpush1.bf16.msra.mxu0 %v1236
    %1522 = vmatprep.subr.bf16.mxu0 0
    %1523 = vmatpush1.bf16.msra.mxu0 %v1237
    %1524 = vmatprep.subr.bf16.mxu0 0
    %1525 = vmatpush1.bf16.msra.mxu0 %v1238
    %1526 = vmatprep.subr.bf16.mxu0 0
    %1527 = vmatpush1.bf16.msra.mxu0 %v1239
    %1528 = vmatprep.subr.bf16.mxu0 0
    %1529 = vmatpush1.bf16.msra.mxu0 %v1240
    %1530 = vmatprep.subr.bf16.mxu0 0
    %1531 = vmatpush1.bf16.msra.mxu0 %v1241
    %1532 = vmatprep.subr.bf16.mxu0 0
    %1533 = vmatpush1.bf16.msra.mxu0 0
    %1534 = vmatprep.subr.bf16.mxu0 0
    %1535 = vmatpush1.bf16.msra.mxu0 0
    %1536 = vmatprep.subr.bf16.mxu0 0
    %1537 = vmatpush1.bf16.msra.mxu0 0
    %1538 = vmatprep.subr.bf16.mxu0 0
    %1539 = vmatpush1.bf16.msra.mxu0 0
    %1540 = vmatprep.subr.bf16.mxu0 0
    %1541 = vmatpush1.bf16.msra.mxu0 0
    %1542 = vmatprep.subr.bf16.mxu0 0
    %1543 = vmatpush1.bf16.msra.mxu0 0
    %1544 = vmatprep.subr.bf16.mxu0 0
    %1545 = vmatpush1.bf16.msra.mxu0 0
    %1546 = vmatprep.subr.bf16.mxu0 0
    %1547 = vmatpush1.bf16.msra.mxu0 0
    %1548 = vmatprep.mubr.bf16.mxu0 0
    %1549 = vmatmul.mubr.bf16.gmra.mrb[0].mxu0 %v1515
    %v1550 = vpop.f32.mrb[0].mxu0
    %v1551 = vadd.f32 0.0, %v1550
    %v1552 = vpop.f32.mrb[0].mxu0
    %v1553 = vpop.f32.mrb[0].mxu0
    %v1554 = vpop.f32.mrb[0].mxu0
    %1555 = vdwg.mxu0
    %v1556 = vadd.f32 %v1514, %v1551
    %v1557 = vmax.f32 %v1513, 0.0
    %v1558 = vmax.f32 %v1556, 0.0
    %v1559 = vld [vmem:[%s609] sm:$0xff]
    %v1560 = vpack.c.bf16 %v1557, %v1557
    %1561 = vmatprep.subr.bf16.mxu0 0
    %1562 = vmatpush1.bf16.msra.mxu0 %v1234
    %1563 = vmatprep.subr.bf16.mxu0 0
    %1564 = vmatpush1.bf16.msra.mxu0 %v1235
    %1565 = vmatprep.subr.bf16.mxu0 0
    %1566 = vmatpush1.bf16.msra.mxu0 %v1236
    %1567 = vmatprep.subr.bf16.mxu0 0
    %1568 = vmatpush1.bf16.msra.mxu0 %v1237
    %1569 = vmatprep.subr.bf16.mxu0 0
    %1570 = vmatpush1.bf16.msra.mxu0 %v1238
    %1571 = vmatprep.subr.bf16.mxu0 0
    %1572 = vmatpush1.bf16.msra.mxu0 %v1239
    %1573 = vmatprep.subr.bf16.mxu0 0
    %1574 = vmatpush1.bf16.msra.mxu0 %v1240
    %1575 = vmatprep.subr.bf16.mxu0 0
    %1576 = vmatpush1.bf16.msra.mxu0 %v1241
    %1577 = vmatprep.subr.bf16.mxu0 0
    %1578 = vmatpush1.bf16.msra.mxu0 0
    %1579 = vmatprep.subr.bf16.mxu0 0
    %1580 = vmatpush1.bf16.msra.mxu0 0
    %1581 = vmatprep.subr.bf16.mxu0 0
    %1582 = vmatpush1.bf16.msra.mxu0 0
    %1583 = vmatprep.subr.bf16.mxu0 0
    %1584 = vmatpush1.bf16.msra.mxu0 0
    %1585 = vmatprep.subr.bf16.mxu0 0
    %1586 = vmatpush1.bf16.msra.mxu0 0
    %1587 = vmatprep.subr.bf16.mxu0 0
    %1588 = vmatpush1.bf16.msra.mxu0 0
    %1589 = vmatprep.subr.bf16.mxu0 0
    %1590 = vmatpush1.bf16.msra.mxu0 0
    %1591 = vmatprep.subr.bf16.mxu0 0
    %1592 = vmatpush1.bf16.msra.mxu0 0
    %1593 = vmatprep.mubr.bf16.mxu0 0
    %1594 = vmatmul.mubr.bf16.gmra.mrb[0].mxu0 %v1560
    %v1595 = vpop.f32.mrb[0].mxu0
    %v1596 = vadd.f32 0.0, %v1595
    %v1597 = vpop.f32.mrb[0].mxu0
    %v1598 = vpop.f32.mrb[0].mxu0
    %v1599 = vpop.f32.mrb[0].mxu0
    %1600 = vdwg.mxu0
    %v1601 = vadd.f32 %v1559, %v1596
    %v1602 = vld [vmem:[%s653] sm:$0xff]
    %v1603 = vpack.c.bf16 %v1558, %v1558
    %1604 = vmatprep.subr.bf16.mxu0 0
    %1605 = vmatpush1.bf16.msra.mxu0 %v1234
    %1606 = vmatprep.subr.bf16.mxu0 0
    %1607 = vmatpush1.bf16.msra.mxu0 %v1235
    %1608 = vmatprep.subr.bf16.mxu0 0
    %1609 = vmatpush1.bf16.msra.mxu0 %v1236
    %1610 = vmatprep.subr.bf16.mxu0 0
    %1611 = vmatpush1.bf16.msra.mxu0 %v1237
    %1612 = vmatprep.subr.bf16.mxu0 0
    %1613 = vmatpush1.bf16.msra.mxu0 %v1238
    %1614 = vmatprep.subr.bf16.mxu0 0
    %1615 = vmatpush1.bf16.msra.mxu0 %v1239
    %1616 = vmatprep.subr.bf16.mxu0 0
    %1617 = vmatpush1.bf16.msra.mxu0 %v1240
    %1618 = vmatprep.subr.bf16.mxu0 0
    %1619 = vmatpush1.bf16.msra.mxu0 %v1241
    %1620 = vmatprep.subr.bf16.mxu0 0
    %1621 = vmatpush1.bf16.msra.mxu0 0
    %1622 = vmatprep.subr.bf16.mxu0 0
    %1623 = vmatpush1.bf16.msra.mxu0 0
    %1624 = vmatprep.subr.bf16.mxu0 0
    %1625 = vmatpush1.bf16.msra.mxu0 0
    %1626 = vmatprep.subr.bf16.mxu0 0
    %1627 = vmatpush1.bf16.msra.mxu0 0
    %1628 = vmatprep.subr.bf16.mxu0 0
    %1629 = vmatpush1.bf16.msra.mxu0 0
    %1630 = vmatprep.subr.bf16.mxu0 0
    %1631 = vmatpush1.bf16.msra.mxu0 0
    %1632 = vmatprep.subr.bf16.mxu0 0
    %1633 = vmatpush1.bf16.msra.mxu0 0
    %1634 = vmatprep.subr.bf16.mxu0 0
    %1635 = vmatpush1.bf16.msra.mxu0 0
    %1636 = vmatprep.mubr.bf16.mxu0 0
    %1637 = vmatmul.mubr.bf16.gmra.mrb[0].mxu0 %v1603
    %v1638 = vpop.f32.mrb[0].mxu0
    %v1639 = vadd.f32 0.0, %v1638
    %v1640 = vpop.f32.mrb[0].mxu0
    %v1641 = vpop.f32.mrb[0].mxu0
    %v1642 = vpop.f32.mrb[0].mxu0
    %1643 = vdwg.mxu0
    %v1644 = vadd.f32 %v1602, %v1639
    %v1645 = vmax.f32 %v1601, 0.0
    %v1646 = vmax.f32 %v1644, 0.0
    %v1647 = vld [vmem:[%s701] sm:$0xff]
    %v1648 = vpack.c.bf16 %v1645, %v1645
    %1649 = vmatprep.subr.bf16.mxu0 0
    %1650 = vmatpush1.bf16.msra.mxu0 %v1234
    %1651 = vmatprep.subr.bf16.mxu0 0
    %1652 = vmatpush1.bf16.msra.mxu0 %v1235
    %1653 = vmatprep.subr.bf16.mxu0 0
    %1654 = vmatpush1.bf16.msra.mxu0 %v1236
    %1655 = vmatprep.subr.bf16.mxu0 0
    %1656 = vmatpush1.bf16.msra.mxu0 %v1237
    %1657 = vmatprep.subr.bf16.mxu0 0
    %1658 = vmatpush1.bf16.msra.mxu0 %v1238
    %1659 = vmatprep.subr.bf16.mxu0 0
    %1660 = vmatpush1.bf16.msra.mxu0 %v1239
    %1661 = vmatprep.subr.bf16.mxu0 0
    %1662 = vmatpush1.bf16.msra.mxu0 %v1240
    %1663 = vmatprep.subr.bf16.mxu0 0
    %1664 = vmatpush1.bf16.msra.mxu0 %v1241
    %1665 = vmatprep.subr.bf16.mxu0 0
    %1666 = vmatpush1.bf16.msra.mxu0 0
    %1667 = vmatprep.subr.bf16.mxu0 0
    %1668 = vmatpush1.bf16.msra.mxu0 0
    %1669 = vmatprep.subr.bf16.mxu0 0
    %1670 = vmatpush1.bf16.msra.mxu0 0
    %1671 = vmatprep.subr.bf16.mxu0 0
    %1672 = vmatpush1.bf16.msra.mxu0 0
    %1673 = vmatprep.subr.bf16.mxu0 0
    %1674 = vmatpush1.bf16.msra.mxu0 0
    %1675 = vmatprep.subr.bf16.mxu0 0
    %1676 = vmatpush1.bf16.msra.mxu0 0
    %1677 = vmatprep.subr.bf16.mxu0 0
    %1678 = vmatpush1.bf16.msra.mxu0 0
    %1679 = vmatprep.subr.bf16.mxu0 0
    %1680 = vmatpush1.bf16.msra.mxu0 0
    %1681 = vmatprep.mubr.bf16.mxu0 0
    %1682 = vmatmul.mubr.bf16.gmra.mrb[0].mxu0 %v1648
    %v1683 = vpop.f32.mrb[0].mxu0
    %v1684 = vadd.f32 0.0, %v1683
    %v1685 = vpop.f32.mrb[0].mxu0
    %v1686 = vpop.f32.mrb[0].mxu0
    %v1687 = vpop.f32.mrb[0].mxu0
    %1688 = vdwg.mxu0
    %v1689 = vadd.f32 %v1647, %v1684
    %v1690 = vld [vmem:[%s745] sm:$0xff]
    %v1691 = vpack.c.bf16 %v1646, %v1646
    %1692 = vmatprep.subr.bf16.mxu0 0
    %1693 = vmatpush1.bf16.msra.mxu0 %v1234
    %1694 = vmatprep.subr.bf16.mxu0 0
    %1695 = vmatpush1.bf16.msra.mxu0 %v1235
    %1696 = vmatprep.subr.bf16.mxu0 0
    %1697 = vmatpush1.bf16.msra.mxu0 %v1236
    %1698 = vmatprep.subr.bf16.mxu0 0
    %1699 = vmatpush1.bf16.msra.mxu0 %v1237
    %1700 = vmatprep.subr.bf16.mxu0 0
    %1701 = vmatpush1.bf16.msra.mxu0 %v1238
    %1702 = vmatprep.subr.bf16.mxu0 0
    %1703 = vmatpush1.bf16.msra.mxu0 %v1239
    %1704 = vmatprep.subr.bf16.mxu0 0
    %1705 = vmatpush1.bf16.msra.mxu0 %v1240
    %1706 = vmatprep.subr.bf16.mxu0 0
    %1707 = vmatpush1.bf16.msra.mxu0 %v1241
    %1708 = vmatprep.subr.bf16.mxu0 0
    %1709 = vmatpush1.bf16.msra.mxu0 0
    %1710 = vmatprep.subr.bf16.mxu0 0
    %1711 = vmatpush1.bf16.msra.mxu0 0
    %1712 = vmatprep.subr.bf16.mxu0 0
    %1713 = vmatpush1.bf16.msra.mxu0 0
    %1714 = vmatprep.subr.bf16.mxu0 0
    %1715 = vmatpush1.bf16.msra.mxu0 0
    %1716 = vmatprep.subr.bf16.mxu0 0
    %1717 = vmatpush1.bf16.msra.mxu0 0
    %1718 = vmatprep.subr.bf16.mxu0 0
    %1719 = vmatpush1.bf16.msra.mxu0 0
    %1720 = vmatprep.subr.bf16.mxu0 0
    %1721 = vmatpush1.bf16.msra.mxu0 0
    %1722 = vmatprep.subr.bf16.mxu0 0
    %1723 = vmatpush1.bf16.msra.mxu0 0
    %1724 = vmatprep.mubr.bf16.mxu0 0
    %1725 = vmatmul.mubr.bf16.gmra.mrb[0].mxu0 %v1691
    %v1726 = vpop.f32.mrb[0].mxu0
    %v1727 = vadd.f32 0.0, %v1726
    %v1728 = vpop.f32.mrb[0].mxu0
    %v1729 = vpop.f32.mrb[0].mxu0
    %v1730 = vpop.f32.mrb[0].mxu0
    %1731 = vdwg.mxu0
    %v1732 = vadd.f32 %v1690, %v1727
    %v1733 = vmax.f32 %v1689, 0.0
    %v1734 = vmax.f32 %v1732, 0.0
    %v1735 = vld [vmem:[%s793] sm:$0xff]
    %v1736 = vpack.c.bf16 %v1733, %v1733
    %1737 = vmatprep.subr.bf16.mxu0 0
    %1738 = vmatpush1.bf16.msra.mxu0 %v1234
    %1739 = vmatprep.subr.bf16.mxu0 0
    %1740 = vmatpush1.bf16.msra.mxu0 %v1235
    %1741 = vmatprep.subr.bf16.mxu0 0
    %1742 = vmatpush1.bf16.msra.mxu0 %v1236
    %1743 = vmatprep.subr.bf16.mxu0 0
    %1744 = vmatpush1.bf16.msra.mxu0 %v1237
    %1745 = vmatprep.subr.bf16.mxu0 0
    %1746 = vmatpush1.bf16.msra.mxu0 %v1238
    %1747 = vmatprep.subr.bf16.mxu0 0
    %1748 = vmatpush1.bf16.msra.mxu0 %v1239
    %1749 = vmatprep.subr.bf16.mxu0 0
    %1750 = vmatpush1.bf16.msra.mxu0 %v1240
    %1751 = vmatprep.subr.bf16.mxu0 0
    %1752 = vmatpush1.bf16.msra.mxu0 %v1241
    %1753 = vmatprep.subr.bf16.mxu0 0
    %1754 = vmatpush1.bf16.msra.mxu0 0
    %1755 = vmatprep.subr.bf16.mxu0 0
    %1756 = vmatpush1.bf16.msra.mxu0 0
    %1757 = vmatprep.subr.bf16.mxu0 0
    %1758 = vmatpush1.bf16.msra.mxu0 0
    %1759 = vmatprep.subr.bf16.mxu0 0
    %1760 = vmatpush1.bf16.msra.mxu0 0
    %1761 = vmatprep.subr.bf16.mxu0 0
    %1762 = vmatpush1.bf16.msra.mxu0 0
    %1763 = vmatprep.subr.bf16.mxu0 0
    %1764 = vmatpush1.bf16.msra.mxu0 0
    %1765 = vmatprep.subr.bf16.mxu0 0
    %1766 = vmatpush1.bf16.msra.mxu0 0
    %1767 = vmatprep.subr.bf16.mxu0 0
    %1768 = vmatpush1.bf16.msra.mxu0 0
    %1769 = vmatprep.mubr.bf16.mxu0 0
    %1770 = vmatmul.mubr.bf16.gmra.mrb[0].mxu0 %v1736
    %v1771 = vpop.f32.mrb[0].mxu0
    %v1772 = vadd.f32 0.0, %v1771
    %v1773 = vpop.f32.mrb[0].mxu0
    %v1774 = vpop.f32.mrb[0].mxu0
    %v1775 = vpop.f32.mrb[0].mxu0
    %1776 = vdwg.mxu0
    %v1777 = vadd.f32 %v1735, %v1772
    %v1778 = vld [vmem:[%s837] sm:$0xff]
    %v1779 = vpack.c.bf16 %v1734, %v1734
    %1780 = vmatprep.subr.bf16.mxu0 0
    %1781 = vmatpush1.bf16.msra.mxu0 %v1234
    %1782 = vmatprep.subr.bf16.mxu0 0
    %1783 = vmatpush1.bf16.msra.mxu0 %v1235
    %1784 = vmatprep.subr.bf16.mxu0 0
    %1785 = vmatpush1.bf16.msra.mxu0 %v1236
    %1786 = vmatprep.subr.bf16.mxu0 0
    %1787 = vmatpush1.bf16.msra.mxu0 %v1237
    %1788 = vmatprep.subr.bf16.mxu0 0
    %1789 = vmatpush1.bf16.msra.mxu0 %v1238
    %1790 = vmatprep.subr.bf16.mxu0 0
    %1791 = vmatpush1.bf16.msra.mxu0 %v1239
    %1792 = vmatprep.subr.bf16.mxu0 0
    %1793 = vmatpush1.bf16.msra.mxu0 %v1240
    %1794 = vmatprep.subr.bf16.mxu0 0
    %1795 = vmatpush1.bf16.msra.mxu0 %v1241
    %1796 = vmatprep.subr.bf16.mxu0 0
    %1797 = vmatpush1.bf16.msra.mxu0 0
    %1798 = vmatprep.subr.bf16.mxu0 0
    %1799 = vmatpush1.bf16.msra.mxu0 0
    %1800 = vmatprep.subr.bf16.mxu0 0
    %1801 = vmatpush1.bf16.msra.mxu0 0
    %1802 = vmatprep.subr.bf16.mxu0 0
    %1803 = vmatpush1.bf16.msra.mxu0 0
    %1804 = vmatprep.subr.bf16.mxu0 0
    %1805 = vmatpush1.bf16.msra.mxu0 0
    %1806 = vmatprep.subr.bf16.mxu0 0
    %1807 = vmatpush1.bf16.msra.mxu0 0
    %1808 = vmatprep.subr.bf16.mxu0 0
    %1809 = vmatpush1.bf16.msra.mxu0 0
    %1810 = vmatprep.subr.bf16.mxu0 0
    %1811 = vmatpush1.bf16.msra.mxu0 0
    %1812 = vmatprep.mubr.bf16.mxu0 0
    %1813 = vmatmul.mubr.bf16.gmra.mrb[0].mxu0 %v1779
    %v1814 = vpop.f32.mrb[0].mxu0
    %v1815 = vadd.f32 0.0, %v1814
    %v1816 = vpop.f32.mrb[0].mxu0
    %v1817 = vpop.f32.mrb[0].mxu0
    %v1818 = vpop.f32.mrb[0].mxu0
    %1819 = vdwg.mxu0
    %v1820 = vadd.f32 %v1778, %v1815
    %v1821 = vmax.f32 %v1777, 0.0
    %v1822 = vmax.f32 %v1820, 0.0
    %v1823 = vld [vmem:[%s885] sm:$0xff]
    %v1824 = vpack.c.bf16 %v1821, %v1821
    %1825 = vmatprep.subr.bf16.mxu0 0
    %1826 = vmatpush1.bf16.msra.mxu0 %v1234
    %1827 = vmatprep.subr.bf16.mxu0 0
    %1828 = vmatpush1.bf16.msra.mxu0 %v1235
    %1829 = vmatprep.subr.bf16.mxu0 0
    %1830 = vmatpush1.bf16.msra.mxu0 %v1236
    %1831 = vmatprep.subr.bf16.mxu0 0
    %1832 = vmatpush1.bf16.msra.mxu0 %v1237
    %1833 = vmatprep.subr.bf16.mxu0 0
    %1834 = vmatpush1.bf16.msra.mxu0 %v1238
    %1835 = vmatprep.subr.bf16.mxu0 0
    %1836 = vmatpush1.bf16.msra.mxu0 %v1239
    %1837 = vmatprep.subr.bf16.mxu0 0
    %1838 = vmatpush1.bf16.msra.mxu0 %v1240
    %1839 = vmatprep.subr.bf16.mxu0 0
    %1840 = vmatpush1.bf16.msra.mxu0 %v1241
    %1841 = vmatprep.subr.bf16.mxu0 0
    %1842 = vmatpush1.bf16.msra.mxu0 0
    %1843 = vmatprep.subr.bf16.mxu0 0
    %1844 = vmatpush1.bf16.msra.mxu0 0
    %1845 = vmatprep.subr.bf16.mxu0 0
    %1846 = vmatpush1.bf16.msra.mxu0 0
    %1847 = vmatprep.subr.bf16.mxu0 0
    %1848 = vmatpush1.bf16.msra.mxu0 0
    %1849 = vmatprep.subr.bf16.mxu0 0
    %1850 = vmatpush1.bf16.msra.mxu0 0
    %1851 = vmatprep.subr.bf16.mxu0 0
    %1852 = vmatpush1.bf16.msra.mxu0 0
    %1853 = vmatprep.subr.bf16.mxu0 0
    %1854 = vmatpush1.bf16.msra.mxu0 0
    %1855 = vmatprep.subr.bf16.mxu0 0
    %1856 = vmatpush1.bf16.msra.mxu0 0
    %1857 = vmatprep.mubr.bf16.mxu0 0
    %1858 = vmatmul.mubr.bf16.gmra.mrb[0].mxu0 %v1824
    %v1859 = vpop.f32.mrb[0].mxu0
    %v1860 = vadd.f32 0.0, %v1859
    %v1861 = vpop.f32.mrb[0].mxu0
    %v1862 = vpop.f32.mrb[0].mxu0
    %v1863 = vpop.f32.mrb[0].mxu0
    %1864 = vdwg.mxu0
    %v1865 = vadd.f32 %v1823, %v1860
    %v1866 = vld [vmem:[%s929] sm:$0xff]
    %v1867 = vpack.c.bf16 %v1822, %v1822
    %1868 = vmatprep.subr.bf16.mxu0 0
    %1869 = vmatpush1.bf16.msra.mxu0 %v1234
    %1870 = vmatprep.subr.bf16.mxu0 0
    %1871 = vmatpush1.bf16.msra.mxu0 %v1235
    %1872 = vmatprep.subr.bf16.mxu0 0
    %1873 = vmatpush1.bf16.msra.mxu0 %v1236
    %1874 = vmatprep.subr.bf16.mxu0 0
    %1875 = vmatpush1.bf16.msra.mxu0 %v1237
    %1876 = vmatprep.subr.bf16.mxu0 0
    %1877 = vmatpush1.bf16.msra.mxu0 %v1238
    %1878 = vmatprep.subr.bf16.mxu0 0
    %1879 = vmatpush1.bf16.msra.mxu0 %v1239
    %1880 = vmatprep.subr.bf16.mxu0 0
    %1881 = vmatpush1.bf16.msra.mxu0 %v1240
    %1882 = vmatprep.subr.bf16.mxu0 0
    %1883 = vmatpush1.bf16.msra.mxu0 %v1241
    %1884 = vmatprep.subr.bf16.mxu0 0
    %1885 = vmatpush1.bf16.msra.mxu0 0
    %1886 = vmatprep.subr.bf16.mxu0 0
    %1887 = vmatpush1.bf16.msra.mxu0 0
    %1888 = vmatprep.subr.bf16.mxu0 0
    %1889 = vmatpush1.bf16.msra.mxu0 0
    %1890 = vmatprep.subr.bf16.mxu0 0
    %1891 = vmatpush1.bf16.msra.mxu0 0
    %1892 = vmatprep.subr.bf16.mxu0 0
    %1893 = vmatpush1.bf16.msra.mxu0 0
    %1894 = vmatprep.subr.bf16.mxu0 0
    %1895 = vmatpush1.bf16.msra.mxu0 0
    %1896 = vmatprep.subr.bf16.mxu0 0
    %1897 = vmatpush1.bf16.msra.mxu0 0
    %1898 = vmatprep.subr.bf16.mxu0 0
    %1899 = vmatpush1.bf16.msra.mxu0 0
    %1900 = vmatprep.mubr.bf16.mxu0 0
    %1901 = vmatmul.mubr.bf16.gmra.mrb[0].mxu0 %v1867
    %v1902 = vpop.f32.mrb[0].mxu0
    %v1903 = vadd.f32 0.0, %v1902
    %v1904 = vpop.f32.mrb[0].mxu0
    %v1905 = vpop.f32.mrb[0].mxu0
    %v1906 = vpop.f32.mrb[0].mxu0
    %1907 = vdwg.mxu0
    %v1908 = vadd.f32 %v1866, %v1903
    %v1909 = vmax.f32 %v1865, 0.0
    %v1910 = vmax.f32 %v1908, 0.0
    %v1911 = vld [vmem:[#allocation6] sm:$0xf]
    %v1912 = vld [vmem:[#allocation6 + $0x4] sm:$0xf]
    %v1913 = vld [vmem:[#allocation6 + $0x8] sm:$0xf]
    %v1914 = vld [vmem:[#allocation6 + $0xc] sm:$0xf]
    %v1915 = vld [vmem:[#allocation6 + $0x10] sm:$0xf]
    %v1916 = vld [vmem:[#allocation6 + $0x14] sm:$0xf]
    %v1917 = vld [vmem:[#allocation6 + $0x18] sm:$0xf]
    %v1918 = vld [vmem:[#allocation6 + $0x1c] sm:$0xf]
    %v1919 = vld [vmem:[#allocation6 + $0x20] sm:$0xf]
    %v1920 = vld [vmem:[#allocation6 + $0x24] sm:$0xf]
    %v1921 = vld [vmem:[#allocation6 + $0x28] sm:$0xf]
    %v1922 = vld [vmem:[#allocation6 + $0x2c] sm:$0xf]
    %v1923 = vld [vmem:[#allocation6 + $0x30] sm:$0xf]
    %v1924 = vld [vmem:[#allocation6 + $0x34] sm:$0xf]
    %v1925 = vld [vmem:[#allocation6 + $0x38] sm:$0xf]
    %v1926 = vld [vmem:[#allocation6 + $0x3c] sm:$0xf]
    %v1927 = vld [vmem:[%s8] sm:$0x1]
    %v1928 = vpack.c.bf16 %v1909, %v1909
    %v1930 = vlaneseq
    %v1931 = vshrl.u32 %v1930, 7
    %v1932 = vsub.s32 0, %v1931
    %v1933 = vrot.slane %v1927, %v1932
    %v1951 = vunpack.c.l.b16 %v1911
    %v1952 = vunpack.c.l.b16 %v1912
    %v1953 = vunpack.c.l.b16 %v1913
    %v1954 = vunpack.c.l.b16 %v1914
    %v1955 = vunpack.c.l.b16 %v1915
    %v1956 = vunpack.c.l.b16 %v1916
    %v1957 = vunpack.c.l.b16 %v1917
    %v1958 = vunpack.c.l.b16 %v1918
    %v1959 = vunpack.c.l.b16 %v1919
    %v1960 = vunpack.c.l.b16 %v1920
    %v1961 = vunpack.c.l.b16 %v1921
    %v1962 = vunpack.c.l.b16 %v1922
    %v1963 = vunpack.c.l.b16 %v1923
    %v1964 = vunpack.c.l.b16 %v1924
    %v1965 = vunpack.c.l.b16 %v1925
    %v1966 = vunpack.c.l.b16 %v1926
    %v1967 = vpack.c.b16 %v1952, %v1951
    %v1968 = vpack.c.b16 %v1954, %v1953
    %v1969 = vpack.c.b16 %v1956, %v1955
    %v1970 = vpack.c.b16 %v1958, %v1957
    %v1971 = vpack.c.b16 %v1960, %v1959
    %v1972 = vpack.c.b16 %v1962, %v1961
    %v1973 = vpack.c.b16 %v1964, %v1963
    %v1974 = vpack.c.b16 %v1966, %v1965
    %1983 = vmatprep.subr.bf16.mxu0 0
    %1984 = vmatpush1.bf16.msra.mxu0 %v1967
    %1985 = vmatprep.subr.bf16.mxu0 0
    %1986 = vmatpush1.bf16.msra.mxu0 %v1968
    %1987 = vmatprep.subr.bf16.mxu0 0
    %1988 = vmatpush1.bf16.msra.mxu0 %v1969
    %1989 = vmatprep.subr.bf16.mxu0 0
    %1990 = vmatpush1.bf16.msra.mxu0 %v1970
    %1991 = vmatprep.subr.bf16.mxu0 0
    %1992 = vmatpush1.bf16.msra.mxu0 %v1971
    %1993 = vmatprep.subr.bf16.mxu0 0
    %1994 = vmatpush1.bf16.msra.mxu0 %v1972
    %1995 = vmatprep.subr.bf16.mxu0 0
    %1996 = vmatpush1.bf16.msra.mxu0 %v1973
    %1997 = vmatprep.subr.bf16.mxu0 0
    %1998 = vmatpush1.bf16.msra.mxu0 %v1974
    %1999 = vmatprep.subr.bf16.mxu0 0
    %2000 = vmatpush1.bf16.msra.mxu0 0
    %2001 = vmatprep.subr.bf16.mxu0 0
    %2002 = vmatpush1.bf16.msra.mxu0 0
    %2003 = vmatprep.subr.bf16.mxu0 0
    %2004 = vmatpush1.bf16.msra.mxu0 0
    %2005 = vmatprep.subr.bf16.mxu0 0
    %2006 = vmatpush1.bf16.msra.mxu0 0
    %2007 = vmatprep.subr.bf16.mxu0 0
    %2008 = vmatpush1.bf16.msra.mxu0 0
    %2009 = vmatprep.subr.bf16.mxu0 0
    %2010 = vmatpush1.bf16.msra.mxu0 0
    %2011 = vmatprep.subr.bf16.mxu0 0
    %2012 = vmatpush1.bf16.msra.mxu0 0
    %2013 = vmatprep.subr.bf16.mxu0 0
    %2014 = vmatpush1.bf16.msra.mxu0 0
    %2015 = vmatprep.mubr.bf16.mxu0 0
    %2016 = vmatmul.mubr.bf16.gmra.mrb[0].mxu0 %v1928
    %v2017 = vpop.f32.mrb[0].mxu0
    %v2018 = vadd.f32 %v1933, %v2017
    %v2019 = vpop.f32.mrb[0].mxu0
    %v2020 = vpop.f32.mrb[0].mxu0
    %v2021 = vpop.f32.mrb[0].mxu0
    %2022 = vdwg.mxu0
    %v2023 = vmax.f32 %v2018, 0.0
    %v2024 = vlaneseq
    %v2025 = vand.u32 %v2024, 127
    %vm2026 = vcmp.lt.s32.totalorder %v2025, 4
    %v2027 = vsel %vm2026, %v2023, -1e+30
    %2028 = vmax.xlane.f32.xlu0 %v2027
    %v2029 = vpop.xlane.xlu0 %2028
    %v2030 = vsub.f32 %v2027, %v2029
    %v2031 = vmul.f32 %v2030, 1.442695
    %v2032 = vpow.pop %v2031
    %2033 = vadd.xlane.f32.xlu0 %v2032
    %v2034 = vpop.xlane.xlu0 %2033
    %v2035 = vlog2.pop %v2034
    %v2036 = vmul.f32 %v2035, 0.6931472
    %v2037 = vadd.f32 %v2029, %v2036
    %v2038 = vsub.f32 %v2027, %v2037
    %2039 = vst [vmem:[#allocation8] sm:$0xff] %v2038
    %v2040 = vpack.c.bf16 %v1910, %v1910
    %2041 = vmatprep.subr.bf16.mxu0 0
    %2042 = vmatpush1.bf16.msra.mxu0 %v1967
    %2043 = vmatprep.subr.bf16.mxu0 0
    %2044 = vmatpush1.bf16.msra.mxu0 %v1968
    %2045 = vmatprep.subr.bf16.mxu0 0
    %2046 = vmatpush1.bf16.msra.mxu0 %v1969
    %2047 = vmatprep.subr.bf16.mxu0 0
    %2048 = vmatpush1.bf16.msra.mxu0 %v1970
    %2049 = vmatprep.subr.bf16.mxu0 0
    %2050 = vmatpush1.bf16.msra.mxu0 %v1971
    %2051 = vmatprep.subr.bf16.mxu0 0
    %2052 = vmatpush1.bf16.msra.mxu0 %v1972
    %2053 = vmatprep.subr.bf16.mxu0 0
    %2054 = vmatpush1.bf16.msra.mxu0 %v1973
    %2055 = vmatprep.subr.bf16.mxu0 0
    %2056 = vmatpush1.bf16.msra.mxu0 %v1974
    %2057 = vmatprep.subr.bf16.mxu0 0
    %2058 = vmatpush1.bf16.msra.mxu0 0
    %2059 = vmatprep.subr.bf16.mxu0 0
    %2060 = vmatpush1.bf16.msra.mxu0 0
    %2061 = vmatprep.subr.bf16.mxu0 0
    %2062 = vmatpush1.bf16.msra.mxu0 0
    %2063 = vmatprep.subr.bf16.mxu0 0
    %2064 = vmatpush1.bf16.msra.mxu0 0
    %2065 = vmatprep.subr.bf16.mxu0 0
    %2066 = vmatpush1.bf16.msra.mxu0 0
    %2067 = vmatprep.subr.bf16.mxu0 0
    %2068 = vmatpush1.bf16.msra.mxu0 0
    %2069 = vmatprep.subr.bf16.mxu0 0
    %2070 = vmatpush1.bf16.msra.mxu0 0
    %2071 = vmatprep.subr.bf16.mxu0 0
    %2072 = vmatpush1.bf16.msra.mxu0 0
    %2073 = vmatprep.mubr.bf16.mxu0 0
    %2074 = vmatmul.mubr.bf16.gmra.mrb[0].mxu0 %v2040
    %v2075 = vpop.f32.mrb[0].mxu0
    %v2076 = vadd.f32 %v1933, %v2075
    %v2077 = vpop.f32.mrb[0].mxu0
    %v2078 = vpop.f32.mrb[0].mxu0
    %v2079 = vpop.f32.mrb[0].mxu0
    %2080 = vdwg.mxu0
    %v2081 = vmax.f32 %v2076, 0.0
    %v2082 = vsel %vm2026, %v2081, -1e+30
    %2083 = vmax.xlane.f32.xlu0 %v2082
    %v2084 = vpop.xlane.xlu0 %2083
    %v2085 = vsub.f32 %v2082, %v2084
    %v2086 = vmul.f32 %v2085, 1.442695
    %v2087 = vpow.pop %v2086
    %2088 = vadd.xlane.f32.xlu0 %v2087
    %v2089 = vpop.xlane.xlu0 %2088
    %v2090 = vlog2.pop %v2089
    %v2091 = vmul.f32 %v2090, 0.6931472
    %v2092 = vadd.f32 %v2084, %v2091
    %v2093 = vsub.f32 %v2082, %v2092
    %2094 = vst [vmem:[#allocation8 + $0x8] sm:$0xff] %v2093
    // Predicated region
    $region46: #{tpu_custom_call.1} parent=1 // pred_check
      _
    $region47: #{tpu_custom_call.1} parent=1 // pred_check_branch
      %2096 = sbr.rel (0) target = $region49
    $region48: #{tpu_custom_call.1} parent=1 // pred_region
      %s2098 = ssub.s32 256, 256
      %2099 = vsyncadd [#allocation5], %s2098
      %s2100 = sshll.u32 [#allocation8], 4
      %s2101 = int_to_ptr.vmem [resolvable:$true] %s2100
      %2106 = dma.vmem_to_hbm [thread:$0]  %s2101, 256, %s9, [#allocation5], 128, 128, 8
    $region49: #{tpu_custom_call.1} parent=1 // pred_fallthru
      _
    // Predicated region
    $region50: #{tpu_custom_call.1} parent=1 // pred_check
      _
    $region51: #{tpu_custom_call.1} parent=1 // pred_check_branch
      %2108 = sbr.rel (0) target = $region53
    $region52: #{tpu_custom_call.1} parent=1 // pred_region
      %2109 = dma.done [#allocation5], 256
    $region53: #{tpu_custom_call.1} parent=1 // pred_fallthru
      _
    %2110 = vsyncpa [#allocation4], 1
    %2111 = vsyncpa [#allocation7], 1
    %2112 = vsyncpa [#allocation5], 1

// kernel: tpu_custom_call.1
$region0: #{tpu_custom_call.1}
  #allocation0 [shape = 'u32[]', space=smem, size = 0x4, offset = 0x4, fixed_abs, tag = 'smem constant byte address 0x4 - core index']
  #allocation1 [shape = 'u32[144,128]{1,0:T(1,128)}', space=vmem, size = 0x12000, scoped, tag = 'internal scratch']
  #allocation2 [shape = 'f32[128,128]{1,0:T(8,128)}', space=vmem, size = 0x10000, scoped, tag = 'scratch operand']
  %s0 = inlined_call_operand.vmem [shape: f32[128,1], index: 0, kind: input, shape index: {}]
  %s1 = inlined_call_operand.vmem [shape: f32[1,128], index: 1, kind: input, shape index: {}]
  %s2 = inlined_call_operand.vmem [shape: bf16[128,128], index: 2, kind: input, shape index: {}]
  %s3 = inlined_call_operand.vmem [shape: f32[1,128], index: 3, kind: input, shape index: {}]
  %s4 = inlined_call_operand.vmem [shape: bf16[128,128], index: 4, kind: input, shape index: {}]
  %s5 = inlined_call_operand.hbm [shape: bf16[128,128], index: 5, kind: input, shape index: {}]
  %s6 = inlined_call_operand.vmem [shape: f32[1,128], index: 6, kind: input, shape index: {}]
  %s7 = inlined_call_operand.hbm [shape: bf16[128,128], index: 7, kind: input, shape index: {}]
  %s8 = inlined_call_operand.vmem [shape: f32[1,128], index: 8, kind: input, shape index: {}]
  %s9 = inlined_call_operand.hbm [shape: f32[16,128], index: 9, kind: output, shape index: {}]
  %s10 = sld [smem:[#allocation0]]
  $region54: #{tpu_custom_call.1} parent=0
    _
  %s12 = ssub.s32 1, %s10
  %s13 = scalar_select 0, %s12, %s10
  $region1: #{tpu_custom_call.1} parent=0
    #allocation3 [shape = 'u8[32768]{0}', space=vmem, size = 0x8000, scoped, tag = 'input window, operand 5, single buffered']
    #allocation4 [shape = 's32[1]{0}', space=sflag, size = 0x4, scoped, tag = 'scoped memory for tpu_custom_call.1']
    #allocation5 [shape = 's32[1]{0}', space=sflag, size = 0x4, scoped, tag = 'scoped memory for tpu_custom_call.1']
    #allocation6 [shape = 'u8[32768]{0}', space=vmem, size = 0x8000, scoped, tag = 'input window, operand 7, single buffered']
    #allocation7 [shape = 's32[1]{0}', space=sflag, size = 0x4, scoped, tag = 'scoped memory for tpu_custom_call.1']
    #allocation8 [shape = 'u8[8192]{0}', space=vmem, size = 0x2000, scoped, tag = 'output window, operand 0, single buffered']
    %14 = vsyncpa [#allocation4], 0
    %15 = vsyncpa [#allocation7], 0
    %16 = vsyncpa [#allocation5], 0
    // Predicated region
    $region2: #{tpu_custom_call.1} parent=1 // pred_check
      _
    $region3: #{tpu_custom_call.1} parent=1 // pred_check_branch
      %18 = sbr.rel (0) target = $region5
    $region4: #{tpu_custom_call.1} parent=1 // pred_region
      _
    $region5: #{tpu_custom_call.1} parent=1 // pred_fallthru
      _
    // Predicated region
    $region6: #{tpu_custom_call.1} parent=1 // pred_check
      _
    $region7: #{tpu_custom_call.1} parent=1 // pred_check_branch
      %20 = sbr.rel (0) target = $region9
    $region8: #{tpu_custom_call.1} parent=1 // pred_region
      _
    $region9: #{tpu_custom_call.1} parent=1 // pred_fallthru
      _
    // Predicated region
    $region10: #{tpu_custom_call.1} parent=1 // pred_check
      _
    $region11: #{tpu_custom_call.1} parent=1 // pred_check_branch
      %22 = sbr.rel (0) target = $region13
    $region12: #{tpu_custom_call.1} parent=1 // pred_region
      _
    $region13: #{tpu_custom_call.1} parent=1 // pred_fallthru
      _
    // Predicated region
    $region14: #{tpu_custom_call.1} parent=1 // pred_check
      _
    $region15: #{tpu_custom_call.1} parent=1 // pred_check_branch
      %24 = sbr.rel (0) target = $region17
    $region16: #{tpu_custom_call.1} parent=1 // pred_region
      _
    $region17: #{tpu_custom_call.1} parent=1 // pred_fallthru
      _
    // Predicated region
    $region18: #{tpu_custom_call.1} parent=1 // pred_check
      _
    $region19: #{tpu_custom_call.1} parent=1 // pred_check_branch
      %26 = sbr.rel (0) target = $region21
    $region20: #{tpu_custom_call.1} parent=1 // pred_region
      _
    $region21: #{tpu_custom_call.1} parent=1 // pred_fallthru
      _
    // Predicated region
    $region22: #{tpu_custom_call.1} parent=1 // pred_check
      _
    $region23: #{tpu_custom_call.1} parent=1 // pred_check_branch
      %28 = sbr.rel (0) target = $region25
    $region24: #{tpu_custom_call.1} parent=1 // pred_region
      %s30 = ssub.s32 1024, 1024
      %31 = vsyncadd [#allocation4], %s30
      %s32 = sshll.u32 [#allocation3], 4
      %s33 = int_to_ptr.vmem [resolvable:$true] %s32
      %38 = dma.hbm_to_vmem [thread:$0]  %s5, 1024, %s33, [#allocation4], 64, 64, 4
    $region25: #{tpu_custom_call.1} parent=1 // pred_fallthru
      _
    // Predicated region
    $region26: #{tpu_custom_call.1} parent=1 // pred_check
      _
    $region27: #{tpu_custom_call.1} parent=1 // pred_check_branch
      %40 = sbr.rel (0) target = $region29
    $region28: #{tpu_custom_call.1} parent=1 // pred_region
      _
    $region29: #{tpu_custom_call.1} parent=1 // pred_fallthru
      _
    // Predicated region
    $region30: #{tpu_custom_call.1} parent=1 // pred_check
      _
    $region31: #{tpu_custom_call.1} parent=1 // pred_check_branch
      %42 = sbr.rel (0) target = $region33
    $region32: #{tpu_custom_call.1} parent=1 // pred_region
      %s44 = ssub.s32 1024, 1024
      %45 = vsyncadd [#allocation7], %s44
      %s46 = sshll.u32 [#allocation6], 4
      %s47 = int_to_ptr.vmem [resolvable:$true] %s46
      %52 = dma.hbm_to_vmem [thread:$0]  %s7, 1024, %s47, [#allocation7], 64, 64, 4
    $region33: #{tpu_custom_call.1} parent=1 // pred_fallthru
      _
    // Predicated region
    $region34: #{tpu_custom_call.1} parent=1 // pred_check
      _
    $region35: #{tpu_custom_call.1} parent=1 // pred_check_branch
      %54 = sbr.rel (0) target = $region37
    $region36: #{tpu_custom_call.1} parent=1 // pred_region
      _
    $region37: #{tpu_custom_call.1} parent=1 // pred_fallthru
      _
    // Predicated region
    $region38: #{tpu_custom_call.1} parent=1 // pred_check
      _
    $region39: #{tpu_custom_call.1} parent=1 // pred_check_branch
      %56 = sbr.rel (0) target = $region41
    $region40: #{tpu_custom_call.1} parent=1 // pred_region
      %57 = dma.done [#allocation4], 1024
    $region41: #{tpu_custom_call.1} parent=1 // pred_fallthru
      _
    // Predicated region
    $region42: #{tpu_custom_call.1} parent=1 // pred_check
      _
    $region43: #{tpu_custom_call.1} parent=1 // pred_check_branch
      %59 = sbr.rel (0) target = $region45
    $region44: #{tpu_custom_call.1} parent=1 // pred_region
      %60 = dma.done [#allocation7], 1024
    $region45: #{tpu_custom_call.1} parent=1 // pred_fallthru
      _
    %v62 = vld [vmem:[%s0] sm:$0xff]
    %v63 = vld [vmem:[%s0 + $0x8] sm:$0xff]
    %v64 = vld [vmem:[%s0 + $0x10] sm:$0xff]
    %v65 = vld [vmem:[%s0 + $0x18] sm:$0xff]
    %v66 = vld [vmem:[%s0 + $0x20] sm:$0xff]
    %v67 = vld [vmem:[%s0 + $0x28] sm:$0xff]
    %v68 = vld [vmem:[%s0 + $0x30] sm:$0xff]
    %v69 = vld [vmem:[%s0 + $0x38] sm:$0xff]
    %v70 = vld [vmem:[%s0 + $0x40] sm:$0xff]
    %v71 = vld [vmem:[%s0 + $0x48] sm:$0xff]
    %v72 = vld [vmem:[%s0 + $0x50] sm:$0xff]
    %v73 = vld [vmem:[%s0 + $0x58] sm:$0xff]
    %v74 = vld [vmem:[%s0 + $0x60] sm:$0xff]
    %v75 = vld [vmem:[%s0 + $0x68] sm:$0xff]
    %v76 = vld [vmem:[%s0 + $0x70] sm:$0xff]
    %v77 = vld [vmem:[%s0 + $0x78] sm:$0xff]
    %v78 = vld [vmem:[%s1] sm:$0x1]
    %80 = vset.pattern.permute.xlu0 0
    %81 = vperm.xlu0 %80, %v62
    %v82 = vpop.permute.xlu0 %81
    %85 = vset.pattern.permute.xlu0 0
    %86 = vperm.xlu0 %85, %v63
    %v87 = vpop.permute.xlu0 %86
    %90 = vset.pattern.permute.xlu0 0
    %91 = vperm.xlu0 %90, %v64
    %v92 = vpop.permute.xlu0 %91
    %95 = vset.pattern.permute.xlu0 0
    %96 = vperm.xlu0 %95, %v65
    %v97 = vpop.permute.xlu0 %96
    %100 = vset.pattern.permute.xlu0 0
    %101 = vperm.xlu0 %100, %v66
    %v102 = vpop.permute.xlu0 %101
    %105 = vset.pattern.permute.xlu0 0
    %106 = vperm.xlu0 %105, %v67
    %v107 = vpop.permute.xlu0 %106
    %110 = vset.pattern.permute.xlu0 0
    %111 = vperm.xlu0 %110, %v68
    %v112 = vpop.permute.xlu0 %111
    %115 = vset.pattern.permute.xlu0 0
    %116 = vperm.xlu0 %115, %v69
    %v117 = vpop.permute.xlu0 %116
    %120 = vset.pattern.permute.xlu0 0
    %121 = vperm.xlu0 %120, %v70
    %v122 = vpop.permute.xlu0 %121
    %125 = vset.pattern.permute.xlu0 0
    %126 = vperm.xlu0 %125, %v71
    %v127 = vpop.permute.xlu0 %126
    %130 = vset.pattern.permute.xlu0 0
    %131 = vperm.xlu0 %130, %v72
    %v132 = vpop.permute.xlu0 %131
    %135 = vset.pattern.permute.xlu0 0
    %136 = vperm.xlu0 %135, %v73
    %v137 = vpop.permute.xlu0 %136
    %140 = vset.pattern.permute.xlu0 0
    %141 = vperm.xlu0 %140, %v74
    %v142 = vpop.permute.xlu0 %141
    %145 = vset.pattern.permute.xlu0 0
    %146 = vperm.xlu0 %145, %v75
    %v147 = vpop.permute.xlu0 %146
    %150 = vset.pattern.permute.xlu0 0
    %151 = vperm.xlu0 %150, %v76
    %v152 = vpop.permute.xlu0 %151
    %155 = vset.pattern.permute.xlu0 0
    %156 = vperm.xlu0 %155, %v77
    %v157 = vpop.permute.xlu0 %156
    %v160 = vlaneseq
    %v161 = vshrl.u32 %v160, 7
    %v162 = vsub.s32 0, %v161
    %v163 = vrot.slane %v78, %v162
    %v165 = vmul.f32 %v82, %v163
    %v166 = vmul.f32 %v87, %v163
    %v167 = vmul.f32 %v92, %v163
    %v168 = vmul.f32 %v97, %v163
    %v169 = vmul.f32 %v102, %v163
    %v170 = vmul.f32 %v107, %v163
    %v171 = vmul.f32 %v112, %v163
    %v172 = vmul.f32 %v117, %v163
    %v173 = vmul.f32 %v122, %v163
    %v174 = vmul.f32 %v127, %v163
    %v175 = vmul.f32 %v132, %v163
    %v176 = vmul.f32 %v137, %v163
    %v177 = vmul.f32 %v142, %v163
    %v178 = vmul.f32 %v147, %v163
    %v179 = vmul.f32 %v152, %v163
    %v180 = vmul.f32 %v157, %v163
    %v181 = vld [vmem:[%s3] sm:$0x1]
    %v183 = vlaneseq
    %v184 = vshrl.u32 %v183, 7
    %v185 = vsub.s32 0, %v184
    %v186 = vrot.slane %v181, %v185
    %v188 = vadd.f32 %v165, %v186
    %v189 = vadd.f32 %v166, %v186
    %v190 = vadd.f32 %v167, %v186
    %v191 = vadd.f32 %v168, %v186
    %v192 = vadd.f32 %v169, %v186
    %v193 = vadd.f32 %v170, %v186
    %v194 = vadd.f32 %v171, %v186
    %v195 = vadd.f32 %v172, %v186
    %v196 = vadd.f32 %v173, %v186
    %v197 = vadd.f32 %v174, %v186
    %v198 = vadd.f32 %v175, %v186
    %v199 = vadd.f32 %v176, %v186
    %v200 = vadd.f32 %v177, %v186
    %v201 = vadd.f32 %v178, %v186
    %v202 = vadd.f32 %v179, %v186
    %v203 = vadd.f32 %v180, %v186
    %204 = vst [vmem:[#allocation2] sm:$0xff] %v188
    %205 = vst [vmem:[#allocation2 + $0x8] sm:$0xff] %v189
    %206 = vst [vmem:[#allocation2 + $0x10] sm:$0xff] %v190
    %207 = vst [vmem:[#allocation2 + $0x18] sm:$0xff] %v191
    %208 = vst [vmem:[#allocation2 + $0x20] sm:$0xff] %v192
    %209 = vst [vmem:[#allocation2 + $0x28] sm:$0xff] %v193
    %210 = vst [vmem:[#allocation2 + $0x30] sm:$0xff] %v194
    %211 = vst [vmem:[#allocation2 + $0x38] sm:$0xff] %v195
    %212 = vst [vmem:[#allocation2 + $0x40] sm:$0xff] %v196
    %213 = vst [vmem:[#allocation2 + $0x48] sm:$0xff] %v197
    %214 = vst [vmem:[#allocation2 + $0x50] sm:$0xff] %v198
    %215 = vst [vmem:[#allocation2 + $0x58] sm:$0xff] %v199
    %216 = vst [vmem:[#allocation2 + $0x60] sm:$0xff] %v200
    %217 = vst [vmem:[#allocation2 + $0x68] sm:$0xff] %v201
    %218 = vst [vmem:[#allocation2 + $0x70] sm:$0xff] %v202
    %219 = vst [vmem:[#allocation2 + $0x78] sm:$0xff] %v203
    %v220 = vld [vmem:[%s2] sm:$0xf]
    %v221 = vld [vmem:[%s2 + $0x4] sm:$0xf]
    %v222 = vld [vmem:[%s2 + $0x8] sm:$0xf]
    %v223 = vld [vmem:[%s2 + $0xc] sm:$0xf]
    %v224 = vld [vmem:[%s2 + $0x10] sm:$0xf]
    %v225 = vld [vmem:[%s2 + $0x14] sm:$0xf]
    %v226 = vld [vmem:[%s2 + $0x18] sm:$0xf]
    %v227 = vld [vmem:[%s2 + $0x1c] sm:$0xf]
    %v228 = vld [vmem:[%s2 + $0x20] sm:$0xf]
    %v229 = vld [vmem:[%s2 + $0x24] sm:$0xf]
    %v230 = vld [vmem:[%s2 + $0x28] sm:$0xf]
    %v231 = vld [vmem:[%s2 + $0x2c] sm:$0xf]
    %v232 = vld [vmem:[%s2 + $0x30] sm:$0xf]
    %v233 = vld [vmem:[%s2 + $0x34] sm:$0xf]
    %v234 = vld [vmem:[%s2 + $0x38] sm:$0xf]
    %v235 = vld [vmem:[%s2 + $0x3c] sm:$0xf]
    %v236 = vld [vmem:[#allocation2] sm:$0xff]
    %v253 = vunpack.c.l.b16 %v220
    %v254 = vunpack.c.l.b16 %v221
    %v255 = vunpack.c.l.b16 %v222
    %v256 = vunpack.c.l.b16 %v223
    %v257 = vunpack.c.l.b16 %v224
    %v258 = vunpack.c.l.b16 %v225
    %v259 = vunpack.c.l.b16 %v226
    %v260 = vunpack.c.l.b16 %v227
    %v261 = vunpack.c.l.b16 %v228
    %v262 = vunpack.c.l.b16 %v229
    %v263 = vunpack.c.l.b16 %v230
    %v264 = vunpack.c.l.b16 %v231
    %v265 = vunpack.c.l.b16 %v232
    %v266 = vunpack.c.l.b16 %v233
    %v267 = vunpack.c.l.b16 %v234
    %v268 = vunpack.c.l.b16 %v235
    %v269 = vpack.c.b16 %v254, %v253
    %v270 = vpack.c.b16 %v256, %v255
    %v271 = vpack.c.b16 %v258, %v257
    %v272 = vpack.c.b16 %v260, %v259
    %v273 = vpack.c.b16 %v262, %v261
    %v274 = vpack.c.b16 %v264, %v263
    %v275 = vpack.c.b16 %v266, %v265
    %v276 = vpack.c.b16 %v268, %v267
    %285 = vmatprep.subr.bf16.mxu0 0
    %286 = vmatpush1.bf16.msra.mxu0 %v269
    %287 = vmatprep.subr.bf16.mxu0 0
    %288 = vmatpush1.bf16.msra.mxu0 %v270
    %289 = vmatprep.subr.bf16.mxu0 0
    %290 = vmatpush1.bf16.msra.mxu0 %v271
    %291 = vmatprep.subr.bf16.mxu0 0
    %292 = vmatpush1.bf16.msra.mxu0 %v272
    %293 = vmatprep.subr.bf16.mxu0 0
    %294 = vmatpush1.bf16.msra.mxu0 %v273
    %295 = vmatprep.subr.bf16.mxu0 0
    %296 = vmatpush1.bf16.msra.mxu0 %v274
    %297 = vmatprep.subr.bf16.mxu0 0
    %298 = vmatpush1.bf16.msra.mxu0 %v275
    %299 = vmatprep.subr.bf16.mxu0 0
    %300 = vmatpush1.bf16.msra.mxu0 %v276
    %301 = vmatprep.subr.bf16.mxu0 0
    %302 = vmatpush1.bf16.msra.mxu0 0
    %303 = vmatprep.subr.bf16.mxu0 0
    %304 = vmatpush1.bf16.msra.mxu0 0
    %305 = vmatprep.subr.bf16.mxu0 0
    %306 = vmatpush1.bf16.msra.mxu0 0
    %307 = vmatprep.subr.bf16.mxu0 0
    %308 = vmatpush1.bf16.msra.mxu0 0
    %309 = vmatprep.subr.bf16.mxu0 0
    %310 = vmatpush1.bf16.msra.mxu0 0
    %311 = vmatprep.subr.bf16.mxu0 0
    %312 = vmatpush1.bf16.msra.mxu0 0
    %313 = vmatprep.subr.bf16.mxu0 0
    %314 = vmatpush1.bf16.msra.mxu0 0
    %315 = vmatprep.subr.bf16.mxu0 0
    %316 = vmatpush1.bf16.msra.mxu0 0
    %317 = vmatprep.mubr.bf16.mxu0 0
    %318 = vmatmul.mubr.bf16.gmra.mrb[0].mxu0 0
    %v319 = vpop.f32.mrb[0].mxu0
    %v320 = vadd.f32 0.0, %v319
    %v321 = vpop.f32.mrb[0].mxu0
    %v322 = vpop.f32.mrb[0].mxu0
    %v323 = vpop.f32.mrb[0].mxu0
    %324 = vdwg.mxu0
    %v325 = vadd.f32 %v236, %v320
    %s326 = scalar_lea.vmem [#allocation2], 8
    %v327 = vld [vmem:[%s326] sm:$0xff]
    %v328 = vadd.f32 %v327, %v320
    %v329 = vmax.f32 %v325, 0.0
    %v330 = vmax.f32 %v328, 0.0
    %331 = vst [vmem:[#allocation2] sm:$0xff] %v329
    %332 = vst [vmem:[%s326] sm:$0xff] %v330
    %s333 = scalar_lea.vmem [#allocation2], 16
    %v334 = vld [vmem:[%s333] sm:$0xff]
    %v335 = vpack.c.bf16 %v329, %v329
    %336 = vmatprep.subr.bf16.mxu0 0
    %337 = vmatpush1.bf16.msra.mxu0 %v269
    %338 = vmatprep.subr.bf16.mxu0 0
    %339 = vmatpush1.bf16.msra.mxu0 %v270
    %340 = vmatprep.subr.bf16.mxu0 0
    %341 = vmatpush1.bf16.msra.mxu0 %v271
    %342 = vmatprep.subr.bf16.mxu0 0
    %343 = vmatpush1.bf16.msra.mxu0 %v272
    %344 = vmatprep.subr.bf16.mxu0 0
    %345 = vmatpush1.bf16.msra.mxu0 %v273
    %346 = vmatprep.subr.bf16.mxu0 0
    %347 = vmatpush1.bf16.msra.mxu0 %v274
    %348 = vmatprep.subr.bf16.mxu0 0
    %349 = vmatpush1.bf16.msra.mxu0 %v275
    %350 = vmatprep.subr.bf16.mxu0 0
    %351 = vmatpush1.bf16.msra.mxu0 %v276
    %352 = vmatprep.subr.bf16.mxu0 0
    %353 = vmatpush1.bf16.msra.mxu0 0
    %354 = vmatprep.subr.bf16.mxu0 0
    %355 = vmatpush1.bf16.msra.mxu0 0
    %356 = vmatprep.subr.bf16.mxu0 0
    %357 = vmatpush1.bf16.msra.mxu0 0
    %358 = vmatprep.subr.bf16.mxu0 0
    %359 = vmatpush1.bf16.msra.mxu0 0
    %360 = vmatprep.subr.bf16.mxu0 0
    %361 = vmatpush1.bf16.msra.mxu0 0
    %362 = vmatprep.subr.bf16.mxu0 0
    %363 = vmatpush1.bf16.msra.mxu0 0
    %364 = vmatprep.subr.bf16.mxu0 0
    %365 = vmatpush1.bf16.msra.mxu0 0
    %366 = vmatprep.subr.bf16.mxu0 0
    %367 = vmatpush1.bf16.msra.mxu0 0
    %368 = vmatprep.mubr.bf16.mxu0 0
    %369 = vmatmul.mubr.bf16.gmra.mrb[0].mxu0 %v335
    %v370 = vpop.f32.mrb[0].mxu0
    %v371 = vadd.f32 0.0, %v370
    %v372 = vpop.f32.mrb[0].mxu0
    %v373 = vpop.f32.mrb[0].mxu0
    %v374 = vpop.f32.mrb[0].mxu0
    %375 = vdwg.mxu0
    %v376 = vadd.f32 %v334, %v371
    %s377 = scalar_lea.vmem [#allocation2], 24
    %v378 = vld [vmem:[%s377] sm:$0xff]
    %v379 = vpack.c.bf16 %v330, %v330
    %380 = vmatprep.subr.bf16.mxu0 0
    %381 = vmatpush1.bf16.msra.mxu0 %v269
    %382 = vmatprep.subr.bf16.mxu0 0
    %383 = vmatpush1.bf16.msra.mxu0 %v270
    %384 = vmatprep.subr.bf16.mxu0 0
    %385 = vmatpush1.bf16.msra.mxu0 %v271
    %386 = vmatprep.subr.bf16.mxu0 0
    %387 = vmatpush1.bf16.msra.mxu0 %v272
    %388 = vmatprep.subr.bf16.mxu0 0
    %389 = vmatpush1.bf16.msra.mxu0 %v273
    %390 = vmatprep.subr.bf16.mxu0 0
    %391 = vmatpush1.bf16.msra.mxu0 %v274
    %392 = vmatprep.subr.bf16.mxu0 0
    %393 = vmatpush1.bf16.msra.mxu0 %v275
    %394 = vmatprep.subr.bf16.mxu0 0
    %395 = vmatpush1.bf16.msra.mxu0 %v276
    %396 = vmatprep.subr.bf16.mxu0 0
    %397 = vmatpush1.bf16.msra.mxu0 0
    %398 = vmatprep.subr.bf16.mxu0 0
    %399 = vmatpush1.bf16.msra.mxu0 0
    %400 = vmatprep.subr.bf16.mxu0 0
    %401 = vmatpush1.bf16.msra.mxu0 0
    %402 = vmatprep.subr.bf16.mxu0 0
    %403 = vmatpush1.bf16.msra.mxu0 0
    %404 = vmatprep.subr.bf16.mxu0 0
    %405 = vmatpush1.bf16.msra.mxu0 0
    %406 = vmatprep.subr.bf16.mxu0 0
    %407 = vmatpush1.bf16.msra.mxu0 0
    %408 = vmatprep.subr.bf16.mxu0 0
    %409 = vmatpush1.bf16.msra.mxu0 0
    %410 = vmatprep.subr.bf16.mxu0 0
    %411 = vmatpush1.bf16.msra.mxu0 0
    %412 = vmatprep.mubr.bf16.mxu0 0
    %413 = vmatmul.mubr.bf16.gmra.mrb[0].mxu0 %v379
    %v414 = vpop.f32.mrb[0].mxu0
    %v415 = vadd.f32 0.0, %v414
    %v416 = vpop.f32.mrb[0].mxu0
    %v417 = vpop.f32.mrb[0].mxu0
    %v418 = vpop.f32.mrb[0].mxu0
    %419 = vdwg.mxu0
    %v420 = vadd.f32 %v378, %v415
    %v421 = vmax.f32 %v376, 0.0
    %v422 = vmax.f32 %v420, 0.0
    %423 = vst [vmem:[%s333] sm:$0xff] %v421
    %424 = vst [vmem:[%s377] sm:$0xff] %v422
    %s425 = scalar_lea.vmem [#allocation2], 32
    %v426 = vld [vmem:[%s425] sm:$0xff]
    %v427 = vpack.c.bf16 %v421, %v421
    %428 = vmatprep.subr.bf16.mxu0 0
    %429 = vmatpush1.bf16.msra.mxu0 %v269
    %430 = vmatprep.subr.bf16.mxu0 0
    %431 = vmatpush1.bf16.msra.mxu0 %v270
    %432 = vmatprep.subr.bf16.mxu0 0
    %433 = vmatpush1.bf16.msra.mxu0 %v271
    %434 = vmatprep.subr.bf16.mxu0 0
    %435 = vmatpush1.bf16.msra.mxu0 %v272
    %436 = vmatprep.subr.bf16.mxu0 0
    %437 = vmatpush1.bf16.msra.mxu0 %v273
    %438 = vmatprep.subr.bf16.mxu0 0
    %439 = vmatpush1.bf16.msra.mxu0 %v274
    %440 = vmatprep.subr.bf16.mxu0 0
    %441 = vmatpush1.bf16.msra.mxu0 %v275
    %442 = vmatprep.subr.bf16.mxu0 0
    %443 = vmatpush1.bf16.msra.mxu0 %v276
    %444 = vmatprep.subr.bf16.mxu0 0
    %445 = vmatpush1.bf16.msra.mxu0 0
    %446 = vmatprep.subr.bf16.mxu0 0
    %447 = vmatpush1.bf16.msra.mxu0 0
    %448 = vmatprep.subr.bf16.mxu0 0
    %449 = vmatpush1.bf16.msra.mxu0 0
    %450 = vmatprep.subr.bf16.mxu0 0
    %451 = vmatpush1.bf16.msra.mxu0 0
    %452 = vmatprep.subr.bf16.mxu0 0
    %453 = vmatpush1.bf16.msra.mxu0 0
    %454 = vmatprep.subr.bf16.mxu0 0
    %455 = vmatpush1.bf16.msra.mxu0 0
    %456 = vmatprep.subr.bf16.mxu0 0
    %457 = vmatpush1.bf16.msra.mxu0 0
    %458 = vmatprep.subr.bf16.mxu0 0
    %459 = vmatpush1.bf16.msra.mxu0 0
    %460 = vmatprep.mubr.bf16.mxu0 0
    %461 = vmatmul.mubr.bf16.gmra.mrb[0].mxu0 %v427
    %v462 = vpop.f32.mrb[0].mxu0
    %v463 = vadd.f32 0.0, %v462
    %v464 = vpop.f32.mrb[0].mxu0
    %v465 = vpop.f32.mrb[0].mxu0
    %v466 = vpop.f32.mrb[0].mxu0
    %467 = vdwg.mxu0
    %v468 = vadd.f32 %v426, %v463
    %s469 = scalar_lea.vmem [#allocation2], 40
    %v470 = vld [vmem:[%s469] sm:$0xff]
    %v471 = vpack.c.bf16 %v422, %v422
    %472 = vmatprep.subr.bf16.mxu0 0
    %473 = vmatpush1.bf16.msra.mxu0 %v269
    %474 = vmatprep.subr.bf16.mxu0 0
    %475 = vmatpush1.bf16.msra.mxu0 %v270
    %476 = vmatprep.subr.bf16.mxu0 0
    %477 = vmatpush1.bf16.msra.mxu0 %v271
    %478 = vmatprep.subr.bf16.mxu0 0
    %479 = vmatpush1.bf16.msra.mxu0 %v272
    %480 = vmatprep.subr.bf16.mxu0 0
    %481 = vmatpush1.bf16.msra.mxu0 %v273
    %482 = vmatprep.subr.bf16.mxu0 0
    %483 = vmatpush1.bf16.msra.mxu0 %v274
    %484 = vmatprep.subr.bf16.mxu0 0
    %485 = vmatpush1.bf16.msra.mxu0 %v275
    %486 = vmatprep.subr.bf16.mxu0 0
    %487 = vmatpush1.bf16.msra.mxu0 %v276
    %488 = vmatprep.subr.bf16.mxu0 0
    %489 = vmatpush1.bf16.msra.mxu0 0
    %490 = vmatprep.subr.bf16.mxu0 0
    %491 = vmatpush1.bf16.msra.mxu0 0
    %492 = vmatprep.subr.bf16.mxu0 0
    %493 = vmatpush1.bf16.msra.mxu0 0
    %494 = vmatprep.subr.bf16.mxu0 0
    %495 = vmatpush1.bf16.msra.mxu0 0
    %496 = vmatprep.subr.bf16.mxu0 0
    %497 = vmatpush1.bf16.msra.mxu0 0
    %498 = vmatprep.subr.bf16.mxu0 0
    %499 = vmatpush1.bf16.msra.mxu0 0
    %500 = vmatprep.subr.bf16.mxu0 0
    %501 = vmatpush1.bf16.msra.mxu0 0
    %502 = vmatprep.subr.bf16.mxu0 0
    %503 = vmatpush1.bf16.msra.mxu0 0
    %504 = vmatprep.mubr.bf16.mxu0 0
    %505 = vmatmul.mubr.bf16.gmra.mrb[0].mxu0 %v471
    %v506 = vpop.f32.mrb[0].mxu0
    %v507 = vadd.f32 0.0, %v506
    %v508 = vpop.f32.mrb[0].mxu0
    %v509 = vpop.f32.mrb[0].mxu0
    %v510 = vpop.f32.mrb[0].mxu0
    %511 = vdwg.mxu0
    %v512 = vadd.f32 %v470, %v507
    %v513 = vmax.f32 %v468, 0.0
    %v514 = vmax.f32 %v512, 0.0
    %515 = vst [vmem:[%s425] sm:$0xff] %v513
    %516 = vst [vmem:[%s469] sm:$0xff] %v514
    %s517 = scalar_lea.vmem [#allocation2], 48
    %v518 = vld [vmem:[%s517] sm:$0xff]
    %v519 = vpack.c.bf16 %v513, %v513
    %520 = vmatprep.subr.bf16.mxu0 0
    %521 = vmatpush1.bf16.msra.mxu0 %v269
    %522 = vmatprep.subr.bf16.mxu0 0
    %523 = vmatpush1.bf16.msra.mxu0 %v270
    %524 = vmatprep.subr.bf16.mxu0 0
    %525 = vmatpush1.bf16.msra.mxu0 %v271
    %526 = vmatprep.subr.bf16.mxu0 0
    %527 = vmatpush1.bf16.msra.mxu0 %v272
    %528 = vmatprep.subr.bf16.mxu0 0
    %529 = vmatpush1.bf16.msra.mxu0 %v273
    %530 = vmatprep.subr.bf16.mxu0 0
    %531 = vmatpush1.bf16.msra.mxu0 %v274
    %532 = vmatprep.subr.bf16.mxu0 0
    %533 = vmatpush1.bf16.msra.mxu0 %v275
    %534 = vmatprep.subr.bf16.mxu0 0
    %535 = vmatpush1.bf16.msra.mxu0 %v276
    %536 = vmatprep.subr.bf16.mxu0 0
    %537 = vmatpush1.bf16.msra.mxu0 0
    %538 = vmatprep.subr.bf16.mxu0 0
    %539 = vmatpush1.bf16.msra.mxu0 0
    %540 = vmatprep.subr.bf16.mxu0 0
    %541 = vmatpush1.bf16.msra.mxu0 0
    %542 = vmatprep.subr.bf16.mxu0 0
    %543 = vmatpush1.bf16.msra.mxu0 0
    %544 = vmatprep.subr.bf16.mxu0 0
    %545 = vmatpush1.bf16.msra.mxu0 0
    %546 = vmatprep.subr.bf16.mxu0 0
    %547 = vmatpush1.bf16.msra.mxu0 0
    %548 = vmatprep.subr.bf16.mxu0 0
    %549 = vmatpush1.bf16.msra.mxu0 0
    %550 = vmatprep.subr.bf16.mxu0 0
    %551 = vmatpush1.bf16.msra.mxu0 0
    %552 = vmatprep.mubr.bf16.mxu0 0
    %553 = vmatmul.mubr.bf16.gmra.mrb[0].mxu0 %v519
    %v554 = vpop.f32.mrb[0].mxu0
    %v555 = vadd.f32 0.0, %v554
    %v556 = vpop.f32.mrb[0].mxu0
    %v557 = vpop.f32.mrb[0].mxu0
    %v558 = vpop.f32.mrb[0].mxu0
    %559 = vdwg.mxu0
    %v560 = vadd.f32 %v518, %v555
    %s561 = scalar_lea.vmem [#allocation2], 56
    %v562 = vld [vmem:[%s561] sm:$0xff]
    %v563 = vpack.c.bf16 %v514, %v514
    %564 = vmatprep.subr.bf16.mxu0 0
    %565 = vmatpush1.bf16.msra.mxu0 %v269
    %566 = vmatprep.subr.bf16.mxu0 0
    %567 = vmatpush1.bf16.msra.mxu0 %v270
    %568 = vmatprep.subr.bf16.mxu0 0
    %569 = vmatpush1.bf16.msra.mxu0 %v271
    %570 = vmatprep.subr.bf16.mxu0 0
    %571 = vmatpush1.bf16.msra.mxu0 %v272
    %572 = vmatprep.subr.bf16.mxu0 0
    %573 = vmatpush1.bf16.msra.mxu0 %v273
    %574 = vmatprep.subr.bf16.mxu0 0
    %575 = vmatpush1.bf16.msra.mxu0 %v274
    %576 = vmatprep.subr.bf16.mxu0 0
    %577 = vmatpush1.bf16.msra.mxu0 %v275
    %578 = vmatprep.subr.bf16.mxu0 0
    %579 = vmatpush1.bf16.msra.mxu0 %v276
    %580 = vmatprep.subr.bf16.mxu0 0
    %581 = vmatpush1.bf16.msra.mxu0 0
    %582 = vmatprep.subr.bf16.mxu0 0
    %583 = vmatpush1.bf16.msra.mxu0 0
    %584 = vmatprep.subr.bf16.mxu0 0
    %585 = vmatpush1.bf16.msra.mxu0 0
    %586 = vmatprep.subr.bf16.mxu0 0
    %587 = vmatpush1.bf16.msra.mxu0 0
    %588 = vmatprep.subr.bf16.mxu0 0
    %589 = vmatpush1.bf16.msra.mxu0 0
    %590 = vmatprep.subr.bf16.mxu0 0
    %591 = vmatpush1.bf16.msra.mxu0 0
    %592 = vmatprep.subr.bf16.mxu0 0
    %593 = vmatpush1.bf16.msra.mxu0 0
    %594 = vmatprep.subr.bf16.mxu0 0
    %595 = vmatpush1.bf16.msra.mxu0 0
    %596 = vmatprep.mubr.bf16.mxu0 0
    %597 = vmatmul.mubr.bf16.gmra.mrb[0].mxu0 %v563
    %v598 = vpop.f32.mrb[0].mxu0
    %v599 = vadd.f32 0.0, %v598
    %v600 = vpop.f32.mrb[0].mxu0
    %v601 = vpop.f32.mrb[0].mxu0
    %v602 = vpop.f32.mrb[0].mxu0
    %603 = vdwg.mxu0
    %v604 = vadd.f32 %v562, %v599
    %v605 = vmax.f32 %v560, 0.0
    %v606 = vmax.f32 %v604, 0.0
    %607 = vst [vmem:[%s517] sm:$0xff] %v605
    %608 = vst [vmem:[%s561] sm:$0xff] %v606
    %s609 = scalar_lea.vmem [#allocation2], 64
    %v610 = vld [vmem:[%s609] sm:$0xff]
    %v611 = vpack.c.bf16 %v605, %v605
    %612 = vmatprep.subr.bf16.mxu0 0
    %613 = vmatpush1.bf16.msra.mxu0 %v269
    %614 = vmatprep.subr.bf16.mxu0 0
    %615 = vmatpush1.bf16.msra.mxu0 %v270
    %616 = vmatprep.subr.bf16.mxu0 0
    %617 = vmatpush1.bf16.msra.mxu0 %v271
    %618 = vmatprep.subr.bf16.mxu0 0
    %619 = vmatpush1.bf16.msra.mxu0 %v272
    %620 = vmatprep.subr.bf16.mxu0 0
    %621 = vmatpush1.bf16.msra.mxu0 %v273
    %622 = vmatprep.subr.bf16.mxu0 0
    %623 = vmatpush1.bf16.msra.mxu0 %v274
    %624 = vmatprep.subr.bf16.mxu0 0
    %625 = vmatpush1.bf16.msra.mxu0 %v275
    %626 = vmatprep.subr.bf16.mxu0 0
    %627 = vmatpush1.bf16.msra.mxu0 %v276
    %628 = vmatprep.subr.bf16.mxu0 0
    %629 = vmatpush1.bf16.msra.mxu0 0
    %630 = vmatprep.subr.bf16.mxu0 0
    %631 = vmatpush1.bf16.msra.mxu0 0
    %632 = vmatprep.subr.bf16.mxu0 0
    %633 = vmatpush1.bf16.msra.mxu0 0
    %634 = vmatprep.subr.bf16.mxu0 0
    %635 = vmatpush1.bf16.msra.mxu0 0
    %636 = vmatprep.subr.bf16.mxu0 0
    %637 = vmatpush1.bf16.msra.mxu0 0
    %638 = vmatprep.subr.bf16.mxu0 0
    %639 = vmatpush1.bf16.msra.mxu0 0
    %640 = vmatprep.subr.bf16.mxu0 0
    %641 = vmatpush1.bf16.msra.mxu0 0
    %642 = vmatprep.subr.bf16.mxu0 0
    %643 = vmatpush1.bf16.msra.mxu0 0
    %644 = vmatprep.mubr.bf16.mxu0 0
    %645 = vmatmul.mubr.bf16.gmra.mrb[0].mxu0 %v611
    %v646 = vpop.f32.mrb[0].mxu0
    %v647 = vadd.f32 0.0, %v646
    %v648 = vpop.f32.mrb[0].mxu0
    %v649 = vpop.f32.mrb[0].mxu0
    %v650 = vpop.f32.mrb[0].mxu0
    %651 = vdwg.mxu0
    %v652 = vadd.f32 %v610, %v647
    %s653 = scalar_lea.vmem [#allocation2], 72
    %v654 = vld [vmem:[%s653] sm:$0xff]
    %v655 = vpack.c.bf16 %v606, %v606
    %656 = vmatprep.subr.bf16.mxu0 0
    %657 = vmatpush1.bf16.msra.mxu0 %v269
    %658 = vmatprep.subr.bf16.mxu0 0
    %659 = vmatpush1.bf16.msra.mxu0 %v270
    %660 = vmatprep.subr.bf16.mxu0 0
    %661 = vmatpush1.bf16.msra.mxu0 %v271
    %662 = vmatprep.subr.bf16.mxu0 0
    %663 = vmatpush1.bf16.msra.mxu0 %v272
    %664 = vmatprep.subr.bf16.mxu0 0
    %665 = vmatpush1.bf16.msra.mxu0 %v273
    %666 = vmatprep.subr.bf16.mxu0 0
    %667 = vmatpush1.bf16.msra.mxu0 %v274
    %668 = vmatprep.subr.bf16.mxu0 0
    %669 = vmatpush1.bf16.msra.mxu0 %v275
    %670 = vmatprep.subr.bf16.mxu0 0
    %671 = vmatpush1.bf16.msra.mxu0 %v276
    %672 = vmatprep.subr.bf16.mxu0 0
    %673 = vmatpush1.bf16.msra.mxu0 0
    %674 = vmatprep.subr.bf16.mxu0 0
    %675 = vmatpush1.bf16.msra.mxu0 0
    %676 = vmatprep.subr.bf16.mxu0 0
    %677 = vmatpush1.bf16.msra.mxu0 0
    %678 = vmatprep.subr.bf16.mxu0 0
    %679 = vmatpush1.bf16.msra.mxu0 0
    %680 = vmatprep.subr.bf16.mxu0 0
    %681 = vmatpush1.bf16.msra.mxu0 0
    %682 = vmatprep.subr.bf16.mxu0 0
    %683 = vmatpush1.bf16.msra.mxu0 0
    %684 = vmatprep.subr.bf16.mxu0 0
    %685 = vmatpush1.bf16.msra.mxu0 0
    %686 = vmatprep.subr.bf16.mxu0 0
    %687 = vmatpush1.bf16.msra.mxu0 0
    %688 = vmatprep.mubr.bf16.mxu0 0
    %689 = vmatmul.mubr.bf16.gmra.mrb[0].mxu0 %v655
    %v690 = vpop.f32.mrb[0].mxu0
    %v691 = vadd.f32 0.0, %v690
    %v692 = vpop.f32.mrb[0].mxu0
    %v693 = vpop.f32.mrb[0].mxu0
    %v694 = vpop.f32.mrb[0].mxu0
    %695 = vdwg.mxu0
    %v696 = vadd.f32 %v654, %v691
    %v697 = vmax.f32 %v652, 0.0
    %v698 = vmax.f32 %v696, 0.0
    %699 = vst [vmem:[%s609] sm:$0xff] %v697
    %700 = vst [vmem:[%s653] sm:$0xff] %v698
    %s701 = scalar_lea.vmem [#allocation2], 80
    %v702 = vld [vmem:[%s701] sm:$0xff]
    %v703 = vpack.c.bf16 %v697, %v697
    %704 = vmatprep.subr.bf16.mxu0 0
    %705 = vmatpush1.bf16.msra.mxu0 %v269
    %706 = vmatprep.subr.bf16.mxu0 0
    %707 = vmatpush1.bf16.msra.mxu0 %v270
    %708 = vmatprep.subr.bf16.mxu0 0
    %709 = vmatpush1.bf16.msra.mxu0 %v271
    %710 = vmatprep.subr.bf16.mxu0 0
    %711 = vmatpush1.bf16.msra.mxu0 %v272
    %712 = vmatprep.subr.bf16.mxu0 0
    %713 = vmatpush1.bf16.msra.mxu0 %v273
    %714 = vmatprep.subr.bf16.mxu0 0
    %715 = vmatpush1.bf16.msra.mxu0 %v274
    %716 = vmatprep.subr.bf16.mxu0 0
    %717 = vmatpush1.bf16.msra.mxu0 %v275
    %718 = vmatprep.subr.bf16.mxu0 0
    %719 = vmatpush1.bf16.msra.mxu0 %v276
    %720 = vmatprep.subr.bf16.mxu0 0
    %721 = vmatpush1.bf16.msra.mxu0 0
    %722 = vmatprep.subr.bf16.mxu0 0
    %723 = vmatpush1.bf16.msra.mxu0 0
    %724 = vmatprep.subr.bf16.mxu0 0
    %725 = vmatpush1.bf16.msra.mxu0 0
    %726 = vmatprep.subr.bf16.mxu0 0
    %727 = vmatpush1.bf16.msra.mxu0 0
    %728 = vmatprep.subr.bf16.mxu0 0
    %729 = vmatpush1.bf16.msra.mxu0 0
    %730 = vmatprep.subr.bf16.mxu0 0
    %731 = vmatpush1.bf16.msra.mxu0 0
    %732 = vmatprep.subr.bf16.mxu0 0
    %733 = vmatpush1.bf16.msra.mxu0 0
    %734 = vmatprep.subr.bf16.mxu0 0
    %735 = vmatpush1.bf16.msra.mxu0 0
    %736 = vmatprep.mubr.bf16.mxu0 0
    %737 = vmatmul.mubr.bf16.gmra.mrb[0].mxu0 %v703
    %v738 = vpop.f32.mrb[0].mxu0
    %v739 = vadd.f32 0.0, %v738
    %v740 = vpop.f32.mrb[0].mxu0
    %v741 = vpop.f32.mrb[0].mxu0
    %v742 = vpop.f32.mrb[0].mxu0
    %743 = vdwg.mxu0
    %v744 = vadd.f32 %v702, %v739
    %s745 = scalar_lea.vmem [#allocation2], 88
    %v746 = vld [vmem:[%s745] sm:$0xff]
    %v747 = vpack.c.bf16 %v698, %v698
    %748 = vmatprep.subr.bf16.mxu0 0
    %749 = vmatpush1.bf16.msra.mxu0 %v269
    %750 = vmatprep.subr.bf16.mxu0 0
    %751 = vmatpush1.bf16.msra.mxu0 %v270
    %752 = vmatprep.subr.bf16.mxu0 0
    %753 = vmatpush1.bf16.msra.mxu0 %v271
    %754 = vmatprep.subr.bf16.mxu0 0
    %755 = vmatpush1.bf16.msra.mxu0 %v272
    %756 = vmatprep.subr.bf16.mxu0 0
    %757 = vmatpush1.bf16.msra.mxu0 %v273
    %758 = vmatprep.subr.bf16.mxu0 0
    %759 = vmatpush1.bf16.msra.mxu0 %v274
    %760 = vmatprep.subr.bf16.mxu0 0
    %761 = vmatpush1.bf16.msra.mxu0 %v275
    %762 = vmatprep.subr.bf16.mxu0 0
    %763 = vmatpush1.bf16.msra.mxu0 %v276
    %764 = vmatprep.subr.bf16.mxu0 0
    %765 = vmatpush1.bf16.msra.mxu0 0
    %766 = vmatprep.subr.bf16.mxu0 0
    %767 = vmatpush1.bf16.msra.mxu0 0
    %768 = vmatprep.subr.bf16.mxu0 0
    %769 = vmatpush1.bf16.msra.mxu0 0
    %770 = vmatprep.subr.bf16.mxu0 0
    %771 = vmatpush1.bf16.msra.mxu0 0
    %772 = vmatprep.subr.bf16.mxu0 0
    %773 = vmatpush1.bf16.msra.mxu0 0
    %774 = vmatprep.subr.bf16.mxu0 0
    %775 = vmatpush1.bf16.msra.mxu0 0
    %776 = vmatprep.subr.bf16.mxu0 0
    %777 = vmatpush1.bf16.msra.mxu0 0
    %778 = vmatprep.subr.bf16.mxu0 0
    %779 = vmatpush1.bf16.msra.mxu0 0
    %780 = vmatprep.mubr.bf16.mxu0 0
    %781 = vmatmul.mubr.bf16.gmra.mrb[0].mxu0 %v747
    %v782 = vpop.f32.mrb[0].mxu0
    %v783 = vadd.f32 0.0, %v782
    %v784 = vpop.f32.mrb[0].mxu0
    %v785 = vpop.f32.mrb[0].mxu0
    %v786 = vpop.f32.mrb[0].mxu0
    %787 = vdwg.mxu0
    %v788 = vadd.f32 %v746, %v783
    %v789 = vmax.f32 %v744, 0.0
    %v790 = vmax.f32 %v788, 0.0
    %791 = vst [vmem:[%s701] sm:$0xff] %v789
    %792 = vst [vmem:[%s745] sm:$0xff] %v790
    %s793 = scalar_lea.vmem [#allocation2], 96
    %v794 = vld [vmem:[%s793] sm:$0xff]
    %v795 = vpack.c.bf16 %v789, %v789
    %796 = vmatprep.subr.bf16.mxu0 0
    %797 = vmatpush1.bf16.msra.mxu0 %v269
    %798 = vmatprep.subr.bf16.mxu0 0
    %799 = vmatpush1.bf16.msra.mxu0 %v270
    %800 = vmatprep.subr.bf16.mxu0 0
    %801 = vmatpush1.bf16.msra.mxu0 %v271
    %802 = vmatprep.subr.bf16.mxu0 0
    %803 = vmatpush1.bf16.msra.mxu0 %v272
    %804 = vmatprep.subr.bf16.mxu0 0
    %805 = vmatpush1.bf16.msra.mxu0 %v273
    %806 = vmatprep.subr.bf16.mxu0 0
    %807 = vmatpush1.bf16.msra.mxu0 %v274
    %808 = vmatprep.subr.bf16.mxu0 0
    %809 = vmatpush1.bf16.msra.mxu0 %v275
    %810 = vmatprep.subr.bf16.mxu0 0
    %811 = vmatpush1.bf16.msra.mxu0 %v276
    %812 = vmatprep.subr.bf16.mxu0 0
    %813 = vmatpush1.bf16.msra.mxu0 0
    %814 = vmatprep.subr.bf16.mxu0 0
    %815 = vmatpush1.bf16.msra.mxu0 0
    %816 = vmatprep.subr.bf16.mxu0 0
    %817 = vmatpush1.bf16.msra.mxu0 0
    %818 = vmatprep.subr.bf16.mxu0 0
    %819 = vmatpush1.bf16.msra.mxu0 0
    %820 = vmatprep.subr.bf16.mxu0 0
    %821 = vmatpush1.bf16.msra.mxu0 0
    %822 = vmatprep.subr.bf16.mxu0 0
    %823 = vmatpush1.bf16.msra.mxu0 0
    %824 = vmatprep.subr.bf16.mxu0 0
    %825 = vmatpush1.bf16.msra.mxu0 0
    %826 = vmatprep.subr.bf16.mxu0 0
    %827 = vmatpush1.bf16.msra.mxu0 0
    %828 = vmatprep.mubr.bf16.mxu0 0
    %829 = vmatmul.mubr.bf16.gmra.mrb[0].mxu0 %v795
    %v830 = vpop.f32.mrb[0].mxu0
    %v831 = vadd.f32 0.0, %v830
    %v832 = vpop.f32.mrb[0].mxu0
    %v833 = vpop.f32.mrb[0].mxu0
    %v834 = vpop.f32.mrb[0].mxu0
    %835 = vdwg.mxu0
    %v836 = vadd.f32 %v794, %v831
    %s837 = scalar_lea.vmem [#allocation2], 104
    %v838 = vld [vmem:[%s837] sm:$0xff]
    %v839 = vpack.c.bf16 %v790, %v790
    %840 = vmatprep.subr.bf16.mxu0 0
    %841 = vmatpush1.bf16.msra.mxu0 %v269
    %842 = vmatprep.subr.bf16.mxu0 0
    %843 = vmatpush1.bf16.msra.mxu0 %v270
    %844 = vmatprep.subr.bf16.mxu0 0
    %845 = vmatpush1.bf16.msra.mxu0 %v271
    %846 = vmatprep.subr.bf16.mxu0 0
    %847 = vmatpush1.bf16.msra.mxu0 %v272
    %848 = vmatprep.subr.bf16.mxu0 0
    %849 = vmatpush1.bf16.msra.mxu0 %v273
    %850 = vmatprep.subr.bf16.mxu0 0
    %851 = vmatpush1.bf16.msra.mxu0 %v274
    %852 = vmatprep.subr.bf16.mxu0 0
    %853 = vmatpush1.bf16.msra.mxu0 %v275
    %854 = vmatprep.subr.bf16.mxu0 0
    %855 = vmatpush1.bf16.msra.mxu0 %v276
    %856 = vmatprep.subr.bf16.mxu0 0
    %857 = vmatpush1.bf16.msra.mxu0 0
    %858 = vmatprep.subr.bf16.mxu0 0
    %859 = vmatpush1.bf16.msra.mxu0 0
    %860 = vmatprep.subr.bf16.mxu0 0
    %861 = vmatpush1.bf16.msra.mxu0 0
    %862 = vmatprep.subr.bf16.mxu0 0
    %863 = vmatpush1.bf16.msra.mxu0 0
    %864 = vmatprep.subr.bf16.mxu0 0
    %865 = vmatpush1.bf16.msra.mxu0 0
    %866 = vmatprep.subr.bf16.mxu0 0
    %867 = vmatpush1.bf16.msra.mxu0 0
    %868 = vmatprep.subr.bf16.mxu0 0
    %869 = vmatpush1.bf16.msra.mxu0 0
    %870 = vmatprep.subr.bf16.mxu0 0
    %871 = vmatpush1.bf16.msra.mxu0 0
    %872 = vmatprep.mubr.bf16.mxu0 0
    %873 = vmatmul.mubr.bf16.gmra.mrb[0].mxu0 %v839
    %v874 = vpop.f32.mrb[0].mxu0
    %v875 = vadd.f32 0.0, %v874
    %v876 = vpop.f32.mrb[0].mxu0
    %v877 = vpop.f32.mrb[0].mxu0
    %v878 = vpop.f32.mrb[0].mxu0
    %879 = vdwg.mxu0
    %v880 = vadd.f32 %v838, %v875
    %v881 = vmax.f32 %v836, 0.0
    %v882 = vmax.f32 %v880, 0.0
    %883 = vst [vmem:[%s793] sm:$0xff] %v881
    %884 = vst [vmem:[%s837] sm:$0xff] %v882
    %s885 = scalar_lea.vmem [#allocation2], 112
    %v886 = vld [vmem:[%s885] sm:$0xff]
    %v887 = vpack.c.bf16 %v881, %v881
    %888 = vmatprep.subr.bf16.mxu0 0
    %889 = vmatpush1.bf16.msra.mxu0 %v269
    %890 = vmatprep.subr.bf16.mxu0 0
    %891 = vmatpush1.bf16.msra.mxu0 %v270
    %892 = vmatprep.subr.bf16.mxu0 0
    %893 = vmatpush1.bf16.msra.mxu0 %v271
    %894 = vmatprep.subr.bf16.mxu0 0
    %895 = vmatpush1.bf16.msra.mxu0 %v272
    %896 = vmatprep.subr.bf16.mxu0 0
    %897 = vmatpush1.bf16.msra.mxu0 %v273
    %898 = vmatprep.subr.bf16.mxu0 0
    %899 = vmatpush1.bf16.msra.mxu0 %v274
    %900 = vmatprep.subr.bf16.mxu0 0
    %901 = vmatpush1.bf16.msra.mxu0 %v275
    %902 = vmatprep.subr.bf16.mxu0 0
    %903 = vmatpush1.bf16.msra.mxu0 %v276
    %904 = vmatprep.subr.bf16.mxu0 0
    %905 = vmatpush1.bf16.msra.mxu0 0
    %906 = vmatprep.subr.bf16.mxu0 0
    %907 = vmatpush1.bf16.msra.mxu0 0
    %908 = vmatprep.subr.bf16.mxu0 0
    %909 = vmatpush1.bf16.msra.mxu0 0
    %910 = vmatprep.subr.bf16.mxu0 0
    %911 = vmatpush1.bf16.msra.mxu0 0
    %912 = vmatprep.subr.bf16.mxu0 0
    %913 = vmatpush1.bf16.msra.mxu0 0
    %914 = vmatprep.subr.bf16.mxu0 0
    %915 = vmatpush1.bf16.msra.mxu0 0
    %916 = vmatprep.subr.bf16.mxu0 0
    %917 = vmatpush1.bf16.msra.mxu0 0
    %918 = vmatprep.subr.bf16.mxu0 0
    %919 = vmatpush1.bf16.msra.mxu0 0
    %920 = vmatprep.mubr.bf16.mxu0 0
    %921 = vmatmul.mubr.bf16.gmra.mrb[0].mxu0 %v887
    %v922 = vpop.f32.mrb[0].mxu0
    %v923 = vadd.f32 0.0, %v922
    %v924 = vpop.f32.mrb[0].mxu0
    %v925 = vpop.f32.mrb[0].mxu0
    %v926 = vpop.f32.mrb[0].mxu0
    %927 = vdwg.mxu0
    %v928 = vadd.f32 %v886, %v923
    %s929 = scalar_lea.vmem [#allocation2], 120
    %v930 = vld [vmem:[%s929] sm:$0xff]
    %v931 = vpack.c.bf16 %v882, %v882
    %932 = vmatprep.subr.bf16.mxu0 0
    %933 = vmatpush1.bf16.msra.mxu0 %v269
    %934 = vmatprep.subr.bf16.mxu0 0
    %935 = vmatpush1.bf16.msra.mxu0 %v270
    %936 = vmatprep.subr.bf16.mxu0 0
    %937 = vmatpush1.bf16.msra.mxu0 %v271
    %938 = vmatprep.subr.bf16.mxu0 0
    %939 = vmatpush1.bf16.msra.mxu0 %v272
    %940 = vmatprep.subr.bf16.mxu0 0
    %941 = vmatpush1.bf16.msra.mxu0 %v273
    %942 = vmatprep.subr.bf16.mxu0 0
    %943 = vmatpush1.bf16.msra.mxu0 %v274
    %944 = vmatprep.subr.bf16.mxu0 0
    %945 = vmatpush1.bf16.msra.mxu0 %v275
    %946 = vmatprep.subr.bf16.mxu0 0
    %947 = vmatpush1.bf16.msra.mxu0 %v276
    %948 = vmatprep.subr.bf16.mxu0 0
    %949 = vmatpush1.bf16.msra.mxu0 0
    %950 = vmatprep.subr.bf16.mxu0 0
    %951 = vmatpush1.bf16.msra.mxu0 0
    %952 = vmatprep.subr.bf16.mxu0 0
    %953 = vmatpush1.bf16.msra.mxu0 0
    %954 = vmatprep.subr.bf16.mxu0 0
    %955 = vmatpush1.bf16.msra.mxu0 0
    %956 = vmatprep.subr.bf16.mxu0 0
    %957 = vmatpush1.bf16.msra.mxu0 0
    %958 = vmatprep.subr.bf16.mxu0 0
    %959 = vmatpush1.bf16.msra.mxu0 0
    %960 = vmatprep.subr.bf16.mxu0 0
    %961 = vmatpush1.bf16.msra.mxu0 0
    %962 = vmatprep.subr.bf16.mxu0 0
    %963 = vmatpush1.bf16.msra.mxu0 0
    %964 = vmatprep.mubr.bf16.mxu0 0
    %965 = vmatmul.mubr.bf16.gmra.mrb[0].mxu0 %v931
    %v966 = vpop.f32.mrb[0].mxu0
    %v967 = vadd.f32 0.0, %v966
    %v968 = vpop.f32.mrb[0].mxu0
    %v969 = vpop.f32.mrb[0].mxu0
    %v970 = vpop.f32.mrb[0].mxu0
    %971 = vdwg.mxu0
    %v972 = vadd.f32 %v930, %v967
    %v973 = vmax.f32 %v928, 0.0
    %v974 = vmax.f32 %v972, 0.0
    %975 = vst [vmem:[%s885] sm:$0xff] %v973
    %976 = vst [vmem:[%s929] sm:$0xff] %v974
    %v977 = vld [vmem:[%s4] sm:$0xf]
    %v978 = vld [vmem:[%s4 + $0x4] sm:$0xf]
    %v979 = vld [vmem:[%s4 + $0x8] sm:$0xf]
    %v980 = vld [vmem:[%s4 + $0xc] sm:$0xf]
    %v981 = vld [vmem:[%s4 + $0x10] sm:$0xf]
    %v982 = vld [vmem:[%s4 + $0x14] sm:$0xf]
    %v983 = vld [vmem:[%s4 + $0x18] sm:$0xf]
    %v984 = vld [vmem:[%s4 + $0x1c] sm:$0xf]
    %v985 = vld [vmem:[%s4 + $0x20] sm:$0xf]
    %v986 = vld [vmem:[%s4 + $0x24] sm:$0xf]
    %v987 = vld [vmem:[%s4 + $0x28] sm:$0xf]
    %v988 = vld [vmem:[%s4 + $0x2c] sm:$0xf]
    %v989 = vld [vmem:[%s4 + $0x30] sm:$0xf]
    %v990 = vld [vmem:[%s4 + $0x34] sm:$0xf]
    %v991 = vld [vmem:[%s4 + $0x38] sm:$0xf]
    %v992 = vld [vmem:[%s4 + $0x3c] sm:$0xf]
    %v993 = vld [vmem:[%s6] sm:$0x1]
    %v994 = vld [vmem:[#allocation2] sm:$0xff]
    %v995 = vld [vmem:[#allocation2 + $0x8] sm:$0xff]
    %v996 = vld [vmem:[#allocation2 + $0x10] sm:$0xff]
    %v997 = vld [vmem:[#allocation2 + $0x18] sm:$0xff]
    %v998 = vld [vmem:[#allocation2 + $0x20] sm:$0xff]
    %v999 = vld [vmem:[#allocation2 + $0x28] sm:$0xff]
    %v1000 = vld [vmem:[#allocation2 + $0x30] sm:$0xff]
    %v1001 = vld [vmem:[#allocation2 + $0x38] sm:$0xff]
    %v1002 = vld [vmem:[#allocation2 + $0x40] sm:$0xff]
    %v1003 = vld [vmem:[#allocation2 + $0x48] sm:$0xff]
    %v1004 = vld [vmem:[#allocation2 + $0x50] sm:$0xff]
    %v1005 = vld [vmem:[#allocation2 + $0x58] sm:$0xff]
    %v1006 = vld [vmem:[#allocation2 + $0x60] sm:$0xff]
    %v1007 = vld [vmem:[#allocation2 + $0x68] sm:$0xff]
    %v1008 = vld [vmem:[#allocation2 + $0x70] sm:$0xff]
    %v1009 = vld [vmem:[#allocation2 + $0x78] sm:$0xff]
    %v1010 = vpack.c.bf16 %v995, %v994
    %v1011 = vpack.c.bf16 %v997, %v996
    %v1012 = vpack.c.bf16 %v999, %v998
    %v1013 = vpack.c.bf16 %v1001, %v1000
    %v1014 = vpack.c.bf16 %v1003, %v1002
    %v1015 = vpack.c.bf16 %v1005, %v1004
    %v1016 = vpack.c.bf16 %v1007, %v1006
    %v1017 = vpack.c.bf16 %v1009, %v1008
    %v1019 = vlaneseq
    %v1020 = vshrl.u32 %v1019, 7
    %v1021 = vsub.s32 0, %v1020
    %v1022 = vrot.slane %v993, %v1021
    %v1040 = vunpack.c.l.b16 %v977
    %v1041 = vunpack.c.l.b16 %v978
    %v1042 = vunpack.c.l.b16 %v979
    %v1043 = vunpack.c.l.b16 %v980
    %v1044 = vunpack.c.l.b16 %v981
    %v1045 = vunpack.c.l.b16 %v982
    %v1046 = vunpack.c.l.b16 %v983
    %v1047 = vunpack.c.l.b16 %v984
    %v1048 = vunpack.c.l.b16 %v985
    %v1049 = vunpack.c.l.b16 %v986
    %v1050 = vunpack.c.l.b16 %v987
    %v1051 = vunpack.c.l.b16 %v988
    %v1052 = vunpack.c.l.b16 %v989
    %v1053 = vunpack.c.l.b16 %v990
    %v1054 = vunpack.c.l.b16 %v991
    %v1055 = vunpack.c.l.b16 %v992
    %v1056 = vpack.c.b16 %v1041, %v1040
    %v1057 = vpack.c.b16 %v1043, %v1042
    %v1058 = vpack.c.b16 %v1045, %v1044
    %v1059 = vpack.c.b16 %v1047, %v1046
    %v1060 = vpack.c.b16 %v1049, %v1048
    %v1061 = vpack.c.b16 %v1051, %v1050
    %v1062 = vpack.c.b16 %v1053, %v1052
    %v1063 = vpack.c.b16 %v1055, %v1054
    %1072 = vmatprep.subr.bf16.mxu0 0
    %1073 = vmatpush1.bf16.msra.mxu0 %v1056
    %1074 = vmatprep.subr.bf16.mxu0 0
    %1075 = vmatpush1.bf16.msra.mxu0 %v1057
    %1076 = vmatprep.subr.bf16.mxu0 0
    %1077 = vmatpush1.bf16.msra.mxu0 %v1058
    %1078 = vmatprep.subr.bf16.mxu0 0
    %1079 = vmatpush1.bf16.msra.mxu0 %v1059
    %1080 = vmatprep.subr.bf16.mxu0 0
    %1081 = vmatpush1.bf16.msra.mxu0 %v1060
    %1082 = vmatprep.subr.bf16.mxu0 0
    %1083 = vmatpush1.bf16.msra.mxu0 %v1061
    %1084 = vmatprep.subr.bf16.mxu0 0
    %1085 = vmatpush1.bf16.msra.mxu0 %v1062
    %1086 = vmatprep.subr.bf16.mxu0 0
    %1087 = vmatpush1.bf16.msra.mxu0 %v1063
    %1088 = vmatprep.subr.bf16.mxu0 0
    %1089 = vmatpush1.bf16.msra.mxu0 0
    %1090 = vmatprep.subr.bf16.mxu0 0
    %1091 = vmatpush1.bf16.msra.mxu0 0
    %1092 = vmatprep.subr.bf16.mxu0 0
    %1093 = vmatpush1.bf16.msra.mxu0 0
    %1094 = vmatprep.subr.bf16.mxu0 0
    %1095 = vmatpush1.bf16.msra.mxu0 0
    %1096 = vmatprep.subr.bf16.mxu0 0
    %1097 = vmatpush1.bf16.msra.mxu0 0
    %1098 = vmatprep.subr.bf16.mxu0 0
    %1099 = vmatpush1.bf16.msra.mxu0 0
    %1100 = vmatprep.subr.bf16.mxu0 0
    %1101 = vmatpush1.bf16.msra.mxu0 0
    %1102 = vmatprep.subr.bf16.mxu0 0
    %1103 = vmatpush1.bf16.msra.mxu0 0
    %1104 = vmatprep.mubr.bf16.mxu0 0
    %1105 = vmatmul.mubr.bf16.gmra.mrb[0].mxu0 %v1010
    %v1106 = vpop.f32.mrb[0].mxu0
    %v1107 = vadd.f32 %v1022, %v1106
    %v1108 = vpop.f32.mrb[0].mxu0
    %v1109 = vpop.f32.mrb[0].mxu0
    %v1110 = vadd.f32 %v1022, %v1109
    %v1111 = vpop.f32.mrb[0].mxu0
    %1112 = vmatprep.mubr.bf16.mxu0 0
    %1113 = vmatmul.mubr.bf16.gmra.mrb[0].mxu0 %v1011
    %v1114 = vpop.f32.mrb[0].mxu0
    %v1115 = vadd.f32 %v1022, %v1114
    %v1116 = vpop.f32.mrb[0].mxu0
    %v1117 = vpop.f32.mrb[0].mxu0
    %v1118 = vadd.f32 %v1022, %v1117
    %v1119 = vpop.f32.mrb[0].mxu0
    %1120 = vmatprep.mubr.bf16.mxu0 0
    %1121 = vmatmul.mubr.bf16.gmra.mrb[0].mxu0 %v1012
    %v1122 = vpop.f32.mrb[0].mxu0
    %v1123 = vadd.f32 %v1022, %v1122
    %v1124 = vpop.f32.mrb[0].mxu0
    %v1125 = vpop.f32.mrb[0].mxu0
    %v1126 = vadd.f32 %v1022, %v1125
    %v1127 = vpop.f32.mrb[0].mxu0
    %1128 = vmatprep.mubr.bf16.mxu0 0
    %1129 = vmatmul.mubr.bf16.gmra.mrb[0].mxu0 %v1013
    %v1130 = vpop.f32.mrb[0].mxu0
    %v1131 = vadd.f32 %v1022, %v1130
    %v1132 = vpop.f32.mrb[0].mxu0
    %v1133 = vpop.f32.mrb[0].mxu0
    %v1134 = vadd.f32 %v1022, %v1133
    %v1135 = vpop.f32.mrb[0].mxu0
    %1136 = vmatprep.mubr.bf16.mxu0 0
    %1137 = vmatmul.mubr.bf16.gmra.mrb[0].mxu0 %v1014
    %v1138 = vpop.f32.mrb[0].mxu0
    %v1139 = vadd.f32 %v1022, %v1138
    %v1140 = vpop.f32.mrb[0].mxu0
    %v1141 = vpop.f32.mrb[0].mxu0
    %v1142 = vadd.f32 %v1022, %v1141
    %v1143 = vpop.f32.mrb[0].mxu0
    %1144 = vmatprep.mubr.bf16.mxu0 0
    %1145 = vmatmul.mubr.bf16.gmra.mrb[0].mxu0 %v1015
    %v1146 = vpop.f32.mrb[0].mxu0
    %v1147 = vadd.f32 %v1022, %v1146
    %v1148 = vpop.f32.mrb[0].mxu0
    %v1149 = vpop.f32.mrb[0].mxu0
    %v1150 = vadd.f32 %v1022, %v1149
    %v1151 = vpop.f32.mrb[0].mxu0
    %1152 = vmatprep.mubr.bf16.mxu0 0
    %1153 = vmatmul.mubr.bf16.gmra.mrb[0].mxu0 %v1016
    %v1154 = vpop.f32.mrb[0].mxu0
    %v1155 = vadd.f32 %v1022, %v1154
    %v1156 = vpop.f32.mrb[0].mxu0
    %v1157 = vpop.f32.mrb[0].mxu0
    %v1158 = vadd.f32 %v1022, %v1157
    %v1159 = vpop.f32.mrb[0].mxu0
    %1160 = vmatprep.mubr.bf16.mxu0 0
    %1161 = vmatmul.mubr.bf16.gmra.mrb[0].mxu0 %v1017
    %v1162 = vpop.f32.mrb[0].mxu0
    %v1163 = vadd.f32 %v1022, %v1162
    %v1164 = vpop.f32.mrb[0].mxu0
    %v1165 = vpop.f32.mrb[0].mxu0
    %v1166 = vadd.f32 %v1022, %v1165
    %v1167 = vpop.f32.mrb[0].mxu0
    %1168 = vdwg.mxu0
    %1169 = vst [vmem:[#allocation2] sm:$0xff] %v1107
    %1170 = vst [vmem:[#allocation2 + $0x8] sm:$0xff] %v1110
    %1171 = vst [vmem:[#allocation2 + $0x10] sm:$0xff] %v1115
    %1172 = vst [vmem:[#allocation2 + $0x18] sm:$0xff] %v1118
    %1173 = vst [vmem:[#allocation2 + $0x20] sm:$0xff] %v1123
    %1174 = vst [vmem:[#allocation2 + $0x28] sm:$0xff] %v1126
    %1175 = vst [vmem:[#allocation2 + $0x30] sm:$0xff] %v1131
    %1176 = vst [vmem:[#allocation2 + $0x38] sm:$0xff] %v1134
    %1177 = vst [vmem:[#allocation2 + $0x40] sm:$0xff] %v1139
    %1178 = vst [vmem:[#allocation2 + $0x48] sm:$0xff] %v1142
    %1179 = vst [vmem:[#allocation2 + $0x50] sm:$0xff] %v1147
    %1180 = vst [vmem:[#allocation2 + $0x58] sm:$0xff] %v1150
    %1181 = vst [vmem:[#allocation2 + $0x60] sm:$0xff] %v1155
    %1182 = vst [vmem:[#allocation2 + $0x68] sm:$0xff] %v1158
    %1183 = vst [vmem:[#allocation2 + $0x70] sm:$0xff] %v1163
    %1184 = vst [vmem:[#allocation2 + $0x78] sm:$0xff] %v1166
    %v1185 = vld [vmem:[#allocation3] sm:$0xf]
    %v1186 = vld [vmem:[#allocation3 + $0x4] sm:$0xf]
    %v1187 = vld [vmem:[#allocation3 + $0x8] sm:$0xf]
    %v1188 = vld [vmem:[#allocation3 + $0xc] sm:$0xf]
    %v1189 = vld [vmem:[#allocation3 + $0x10] sm:$0xf]
    %v1190 = vld [vmem:[#allocation3 + $0x14] sm:$0xf]
    %v1191 = vld [vmem:[#allocation3 + $0x18] sm:$0xf]
    %v1192 = vld [vmem:[#allocation3 + $0x1c] sm:$0xf]
    %v1193 = vld [vmem:[#allocation3 + $0x20] sm:$0xf]
    %v1194 = vld [vmem:[#allocation3 + $0x24] sm:$0xf]
    %v1195 = vld [vmem:[#allocation3 + $0x28] sm:$0xf]
    %v1196 = vld [vmem:[#allocation3 + $0x2c] sm:$0xf]
    %v1197 = vld [vmem:[#allocation3 + $0x30] sm:$0xf]
    %v1198 = vld [vmem:[#allocation3 + $0x34] sm:$0xf]
    %v1199 = vld [vmem:[#allocation3 + $0x38] sm:$0xf]
    %v1200 = vld [vmem:[#allocation3 + $0x3c] sm:$0xf]
    %v1201 = vld [vmem:[#allocation2] sm:$0xff]
    %v1218 = vunpack.c.l.b16 %v1185
    %v1219 = vunpack.c.l.b16 %v1186
    %v1220 = vunpack.c.l.b16 %v1187
    %v1221 = vunpack.c.l.b16 %v1188
    %v1222 = vunpack.c.l.b16 %v1189
    %v1223 = vunpack.c.l.b16 %v1190
    %v1224 = vunpack.c.l.b16 %v1191
    %v1225 = vunpack.c.l.b16 %v1192
    %v1226 = vunpack.c.l.b16 %v1193
    %v1227 = vunpack.c.l.b16 %v1194
    %v1228 = vunpack.c.l.b16 %v1195
    %v1229 = vunpack.c.l.b16 %v1196
    %v1230 = vunpack.c.l.b16 %v1197
    %v1231 = vunpack.c.l.b16 %v1198
    %v1232 = vunpack.c.l.b16 %v1199
    %v1233 = vunpack.c.l.b16 %v1200
    %v1234 = vpack.c.b16 %v1219, %v1218
    %v1235 = vpack.c.b16 %v1221, %v1220
    %v1236 = vpack.c.b16 %v1223, %v1222
    %v1237 = vpack.c.b16 %v1225, %v1224
    %v1238 = vpack.c.b16 %v1227, %v1226
    %v1239 = vpack.c.b16 %v1229, %v1228
    %v1240 = vpack.c.b16 %v1231, %v1230
    %v1241 = vpack.c.b16 %v1233, %v1232
    %1250 = vmatprep.subr.bf16.mxu0 0
    %1251 = vmatpush1.bf16.msra.mxu0 %v1234
    %1252 = vmatprep.subr.bf16.mxu0 0
    %1253 = vmatpush1.bf16.msra.mxu0 %v1235
    %1254 = vmatprep.subr.bf16.mxu0 0
    %1255 = vmatpush1.bf16.msra.mxu0 %v1236
    %1256 = vmatprep.subr.bf16.mxu0 0
    %1257 = vmatpush1.bf16.msra.mxu0 %v1237
    %1258 = vmatprep.subr.bf16.mxu0 0
    %1259 = vmatpush1.bf16.msra.mxu0 %v1238
    %1260 = vmatprep.subr.bf16.mxu0 0
    %1261 = vmatpush1.bf16.msra.mxu0 %v1239
    %1262 = vmatprep.subr.bf16.mxu0 0
    %1263 = vmatpush1.bf16.msra.mxu0 %v1240
    %1264 = vmatprep.subr.bf16.mxu0 0
    %1265 = vmatpush1.bf16.msra.mxu0 %v1241
    %1266 = vmatprep.subr.bf16.mxu0 0
    %1267 = vmatpush1.bf16.msra.mxu0 0
    %1268 = vmatprep.subr.bf16.mxu0 0
    %1269 = vmatpush1.bf16.msra.mxu0 0
    %1270 = vmatprep.subr.bf16.mxu0 0
    %1271 = vmatpush1.bf16.msra.mxu0 0
    %1272 = vmatprep.subr.bf16.mxu0 0
    %1273 = vmatpush1.bf16.msra.mxu0 0
    %1274 = vmatprep.subr.bf16.mxu0 0
    %1275 = vmatpush1.bf16.msra.mxu0 0
    %1276 = vmatprep.subr.bf16.mxu0 0
    %1277 = vmatpush1.bf16.msra.mxu0 0
    %1278 = vmatprep.subr.bf16.mxu0 0
    %1279 = vmatpush1.bf16.msra.mxu0 0
    %1280 = vmatprep.subr.bf16.mxu0 0
    %1281 = vmatpush1.bf16.msra.mxu0 0
    %1282 = vmatprep.mubr.bf16.mxu0 0
    %1283 = vmatmul.mubr.bf16.gmra.mrb[0].mxu0 0
    %v1284 = vpop.f32.mrb[0].mxu0
    %v1285 = vadd.f32 0.0, %v1284
    %v1286 = vpop.f32.mrb[0].mxu0
    %v1287 = vpop.f32.mrb[0].mxu0
    %v1288 = vpop.f32.mrb[0].mxu0
    %1289 = vdwg.mxu0
    %v1290 = vadd.f32 %v1201, %v1285
    %v1291 = vld [vmem:[%s326] sm:$0xff]
    %v1292 = vadd.f32 %v1291, %v1285
    %v1293 = vmax.f32 %v1290, 0.0
    %v1294 = vmax.f32 %v1292, 0.0
    %v1295 = vld [vmem:[%s333] sm:$0xff]
    %v1296 = vpack.c.bf16 %v1293, %v1293
    %1297 = vmatprep.subr.bf16.mxu0 0
    %1298 = vmatpush1.bf16.msra.mxu0 %v1234
    %1299 = vmatprep.subr.bf16.mxu0 0
    %1300 = vmatpush1.bf16.msra.mxu0 %v1235
    %1301 = vmatprep.subr.bf16.mxu0 0
    %1302 = vmatpush1.bf16.msra.mxu0 %v1236
    %1303 = vmatprep.subr.bf16.mxu0 0
    %1304 = vmatpush1.bf16.msra.mxu0 %v1237
    %1305 = vmatprep.subr.bf16.mxu0 0
    %1306 = vmatpush1.bf16.msra.mxu0 %v1238
    %1307 = vmatprep.subr.bf16.mxu0 0
    %1308 = vmatpush1.bf16.msra.mxu0 %v1239
    %1309 = vmatprep.subr.bf16.mxu0 0
    %1310 = vmatpush1.bf16.msra.mxu0 %v1240
    %1311 = vmatprep.subr.bf16.mxu0 0
    %1312 = vmatpush1.bf16.msra.mxu0 %v1241
    %1313 = vmatprep.subr.bf16.mxu0 0
    %1314 = vmatpush1.bf16.msra.mxu0 0
    %1315 = vmatprep.subr.bf16.mxu0 0
    %1316 = vmatpush1.bf16.msra.mxu0 0
    %1317 = vmatprep.subr.bf16.mxu0 0
    %1318 = vmatpush1.bf16.msra.mxu0 0
    %1319 = vmatprep.subr.bf16.mxu0 0
    %1320 = vmatpush1.bf16.msra.mxu0 0
    %1321 = vmatprep.subr.bf16.mxu0 0
    %1322 = vmatpush1.bf16.msra.mxu0 0
    %1323 = vmatprep.subr.bf16.mxu0 0
    %1324 = vmatpush1.bf16.msra.mxu0 0
    %1325 = vmatprep.subr.bf16.mxu0 0
    %1326 = vmatpush1.bf16.msra.mxu0 0
    %1327 = vmatprep.subr.bf16.mxu0 0
    %1328 = vmatpush1.bf16.msra.mxu0 0
    %1329 = vmatprep.mubr.bf16.mxu0 0
    %1330 = vmatmul.mubr.bf16.gmra.mrb[0].mxu0 %v1296
    %v1331 = vpop.f32.mrb[0].mxu0
    %v1332 = vadd.f32 0.0, %v1331
    %v1333 = vpop.f32.mrb[0].mxu0
    %v1334 = vpop.f32.mrb[0].mxu0
    %v1335 = vpop.f32.mrb[0].mxu0
    %1336 = vdwg.mxu0
    %v1337 = vadd.f32 %v1295, %v1332
    %v1338 = vld [vmem:[%s377] sm:$0xff]
    %v1339 = vpack.c.bf16 %v1294, %v1294
    %1340 = vmatprep.subr.bf16.mxu0 0
    %1341 = vmatpush1.bf16.msra.mxu0 %v1234
    %1342 = vmatprep.subr.bf16.mxu0 0
    %1343 = vmatpush1.bf16.msra.mxu0 %v1235
    %1344 = vmatprep.subr.bf16.mxu0 0
    %1345 = vmatpush1.bf16.msra.mxu0 %v1236
    %1346 = vmatprep.subr.bf16.mxu0 0
    %1347 = vmatpush1.bf16.msra.mxu0 %v1237
    %1348 = vmatprep.subr.bf16.mxu0 0
    %1349 = vmatpush1.bf16.msra.mxu0 %v1238
    %1350 = vmatprep.subr.bf16.mxu0 0
    %1351 = vmatpush1.bf16.msra.mxu0 %v1239
    %1352 = vmatprep.subr.bf16.mxu0 0
    %1353 = vmatpush1.bf16.msra.mxu0 %v1240
    %1354 = vmatprep.subr.bf16.mxu0 0
    %1355 = vmatpush1.bf16.msra.mxu0 %v1241
    %1356 = vmatprep.subr.bf16.mxu0 0
    %1357 = vmatpush1.bf16.msra.mxu0 0
    %1358 = vmatprep.subr.bf16.mxu0 0
    %1359 = vmatpush1.bf16.msra.mxu0 0
    %1360 = vmatprep.subr.bf16.mxu0 0
    %1361 = vmatpush1.bf16.msra.mxu0 0
    %1362 = vmatprep.subr.bf16.mxu0 0
    %1363 = vmatpush1.bf16.msra.mxu0 0
    %1364 = vmatprep.subr.bf16.mxu0 0
    %1365 = vmatpush1.bf16.msra.mxu0 0
    %1366 = vmatprep.subr.bf16.mxu0 0
    %1367 = vmatpush1.bf16.msra.mxu0 0
    %1368 = vmatprep.subr.bf16.mxu0 0
    %1369 = vmatpush1.bf16.msra.mxu0 0
    %1370 = vmatprep.subr.bf16.mxu0 0
    %1371 = vmatpush1.bf16.msra.mxu0 0
    %1372 = vmatprep.mubr.bf16.mxu0 0
    %1373 = vmatmul.mubr.bf16.gmra.mrb[0].mxu0 %v1339
    %v1374 = vpop.f32.mrb[0].mxu0
    %v1375 = vadd.f32 0.0, %v1374
    %v1376 = vpop.f32.mrb[0].mxu0
    %v1377 = vpop.f32.mrb[0].mxu0
    %v1378 = vpop.f32.mrb[0].mxu0
    %1379 = vdwg.mxu0
    %v1380 = vadd.f32 %v1338, %v1375
    %v1381 = vmax.f32 %v1337, 0.0
    %v1382 = vmax.f32 %v1380, 0.0
    %v1383 = vld [vmem:[%s425] sm:$0xff]
    %v1384 = vpack.c.bf16 %v1381, %v1381
    %1385 = vmatprep.subr.bf16.mxu0 0
    %1386 = vmatpush1.bf16.msra.mxu0 %v1234
    %1387 = vmatprep.subr.bf16.mxu0 0
    %1388 = vmatpush1.bf16.msra.mxu0 %v1235
    %1389 = vmatprep.subr.bf16.mxu0 0
    %1390 = vmatpush1.bf16.msra.mxu0 %v1236
    %1391 = vmatprep.subr.bf16.mxu0 0
    %1392 = vmatpush1.bf16.msra.mxu0 %v1237
    %1393 = vmatprep.subr.bf16.mxu0 0
    %1394 = vmatpush1.bf16.msra.mxu0 %v1238
    %1395 = vmatprep.subr.bf16.mxu0 0
    %1396 = vmatpush1.bf16.msra.mxu0 %v1239
    %1397 = vmatprep.subr.bf16.mxu0 0
    %1398 = vmatpush1.bf16.msra.mxu0 %v1240
    %1399 = vmatprep.subr.bf16.mxu0 0
    %1400 = vmatpush1.bf16.msra.mxu0 %v1241
    %1401 = vmatprep.subr.bf16.mxu0 0
    %1402 = vmatpush1.bf16.msra.mxu0 0
    %1403 = vmatprep.subr.bf16.mxu0 0
    %1404 = vmatpush1.bf16.msra.mxu0 0
    %1405 = vmatprep.subr.bf16.mxu0 0
    %1406 = vmatpush1.bf16.msra.mxu0 0
    %1407 = vmatprep.subr.bf16.mxu0 0
    %1408 = vmatpush1.bf16.msra.mxu0 0
    %1409 = vmatprep.subr.bf16.mxu0 0
    %1410 = vmatpush1.bf16.msra.mxu0 0
    %1411 = vmatprep.subr.bf16.mxu0 0
    %1412 = vmatpush1.bf16.msra.mxu0 0
    %1413 = vmatprep.subr.bf16.mxu0 0
    %1414 = vmatpush1.bf16.msra.mxu0 0
    %1415 = vmatprep.subr.bf16.mxu0 0
    %1416 = vmatpush1.bf16.msra.mxu0 0
    %1417 = vmatprep.mubr.bf16.mxu0 0
    %1418 = vmatmul.mubr.bf16.gmra.mrb[0].mxu0 %v1384
    %v1419 = vpop.f32.mrb[0].mxu0
    %v1420 = vadd.f32 0.0, %v1419
    %v1421 = vpop.f32.mrb[0].mxu0
    %v1422 = vpop.f32.mrb[0].mxu0
    %v1423 = vpop.f32.mrb[0].mxu0
    %1424 = vdwg.mxu0
    %v1425 = vadd.f32 %v1383, %v1420
    %v1426 = vld [vmem:[%s469] sm:$0xff]
    %v1427 = vpack.c.bf16 %v1382, %v1382
    %1428 = vmatprep.subr.bf16.mxu0 0
    %1429 = vmatpush1.bf16.msra.mxu0 %v1234
    %1430 = vmatprep.subr.bf16.mxu0 0
    %1431 = vmatpush1.bf16.msra.mxu0 %v1235
    %1432 = vmatprep.subr.bf16.mxu0 0
    %1433 = vmatpush1.bf16.msra.mxu0 %v1236
    %1434 = vmatprep.subr.bf16.mxu0 0
    %1435 = vmatpush1.bf16.msra.mxu0 %v1237
    %1436 = vmatprep.subr.bf16.mxu0 0
    %1437 = vmatpush1.bf16.msra.mxu0 %v1238
    %1438 = vmatprep.subr.bf16.mxu0 0
    %1439 = vmatpush1.bf16.msra.mxu0 %v1239
    %1440 = vmatprep.subr.bf16.mxu0 0
    %1441 = vmatpush1.bf16.msra.mxu0 %v1240
    %1442 = vmatprep.subr.bf16.mxu0 0
    %1443 = vmatpush1.bf16.msra.mxu0 %v1241
    %1444 = vmatprep.subr.bf16.mxu0 0
    %1445 = vmatpush1.bf16.msra.mxu0 0
    %1446 = vmatprep.subr.bf16.mxu0 0
    %1447 = vmatpush1.bf16.msra.mxu0 0
    %1448 = vmatprep.subr.bf16.mxu0 0
    %1449 = vmatpush1.bf16.msra.mxu0 0
    %1450 = vmatprep.subr.bf16.mxu0 0
    %1451 = vmatpush1.bf16.msra.mxu0 0
    %1452 = vmatprep.subr.bf16.mxu0 0
    %1453 = vmatpush1.bf16.msra.mxu0 0
    %1454 = vmatprep.subr.bf16.mxu0 0
    %1455 = vmatpush1.bf16.msra.mxu0 0
    %1456 = vmatprep.subr.bf16.mxu0 0
    %1457 = vmatpush1.bf16.msra.mxu0 0
    %1458 = vmatprep.subr.bf16.mxu0 0
    %1459 = vmatpush1.bf16.msra.mxu0 0
    %1460 = vmatprep.mubr.bf16.mxu0 0
    %1461 = vmatmul.mubr.bf16.gmra.mrb[0].mxu0 %v1427
    %v1462 = vpop.f32.mrb[0].mxu0
    %v1463 = vadd.f32 0.0, %v1462
    %v1464 = vpop.f32.mrb[0].mxu0
    %v1465 = vpop.f32.mrb[0].mxu0
    %v1466 = vpop.f32.mrb[0].mxu0
    %1467 = vdwg.mxu0
    %v1468 = vadd.f32 %v1426, %v1463
    %v1469 = vmax.f32 %v1425, 0.0
    %v1470 = vmax.f32 %v1468, 0.0
    %v1471 = vld [vmem:[%s517] sm:$0xff]
    %v1472 = vpack.c.bf16 %v1469, %v1469
    %1473 = vmatprep.subr.bf16.mxu0 0
    %1474 = vmatpush1.bf16.msra.mxu0 %v1234
    %1475 = vmatprep.subr.bf16.mxu0 0
    %1476 = vmatpush1.bf16.msra.mxu0 %v1235
    %1477 = vmatprep.subr.bf16.mxu0 0
    %1478 = vmatpush1.bf16.msra.mxu0 %v1236
    %1479 = vmatprep.subr.bf16.mxu0 0
    %1480 = vmatpush1.bf16.msra.mxu0 %v1237
    %1481 = vmatprep.subr.bf16.mxu0 0
    %1482 = vmatpush1.bf16.msra.mxu0 %v1238
    %1483 = vmatprep.subr.bf16.mxu0 0
    %1484 = vmatpush1.bf16.msra.mxu0 %v1239
    %1485 = vmatprep.subr.bf16.mxu0 0
    %1486 = vmatpush1.bf16.msra.mxu0 %v1240
    %1487 = vmatprep.subr.bf16.mxu0 0
    %1488 = vmatpush1.bf16.msra.mxu0 %v1241
    %1489 = vmatprep.subr.bf16.mxu0 0
    %1490 = vmatpush1.bf16.msra.mxu0 0
    %1491 = vmatprep.subr.bf16.mxu0 0
    %1492 = vmatpush1.bf16.msra.mxu0 0
    %1493 = vmatprep.subr.bf16.mxu0 0
    %1494 = vmatpush1.bf16.msra.mxu0 0
    %1495 = vmatprep.subr.bf16.mxu0 0
    %1496 = vmatpush1.bf16.msra.mxu0 0
    %1497 = vmatprep.subr.bf16.mxu0 0
    %1498 = vmatpush1.bf16.msra.mxu0 0
    %1499 = vmatprep.subr.bf16.mxu0 0
    %1500 = vmatpush1.bf16.msra.mxu0 0
    %1501 = vmatprep.subr.bf16.mxu0 0
    %1502 = vmatpush1.bf16.msra.mxu0 0
    %1503 = vmatprep.subr.bf16.mxu0 0
    %1504 = vmatpush1.bf16.msra.mxu0 0
    %1505 = vmatprep.mubr.bf16.mxu0 0
    %1506 = vmatmul.mubr.bf16.gmra.mrb[0].mxu0 %v1472
    %v1507 = vpop.f32.mrb[0].mxu0
    %v1508 = vadd.f32 0.0, %v1507
    %v1509 = vpop.f32.mrb[0].mxu0
    %v1510 = vpop.f32.mrb[0].mxu0
    %v1511 = vpop.f32.mrb[0].mxu0
    %1512 = vdwg.mxu0
    %v1513 = vadd.f32 %v1471, %v1508
    %v1514 = vld [vmem:[%s561] sm:$0xff]
    %v1515 = vpack.c.bf16 %v1470, %v1470
    %1516 = vmatprep.subr.bf16.mxu0 0
    %1517 = vmatpush1.bf16.msra.mxu0 %v1234
    %1518 = vmatprep.subr.bf16.mxu0 0
    %1519 = vmatpush1.bf16.msra.mxu0 %v1235
    %1520 = vmatprep.subr.bf16.mxu0 0
    %1521 = vmatpush1.bf16.msra.mxu0 %v1236
    %1522 = vmatprep.subr.bf16.mxu0 0
    %1523 = vmatpush1.bf16.msra.mxu0 %v1237
    %1524 = vmatprep.subr.bf16.mxu0 0
    %1525 = vmatpush1.bf16.msra.mxu0 %v1238
    %1526 = vmatprep.subr.bf16.mxu0 0
    %1527 = vmatpush1.bf16.msra.mxu0 %v1239
    %1528 = vmatprep.subr.bf16.mxu0 0
    %1529 = vmatpush1.bf16.msra.mxu0 %v1240
    %1530 = vmatprep.subr.bf16.mxu0 0
    %1531 = vmatpush1.bf16.msra.mxu0 %v1241
    %1532 = vmatprep.subr.bf16.mxu0 0
    %1533 = vmatpush1.bf16.msra.mxu0 0
    %1534 = vmatprep.subr.bf16.mxu0 0
    %1535 = vmatpush1.bf16.msra.mxu0 0
    %1536 = vmatprep.subr.bf16.mxu0 0
    %1537 = vmatpush1.bf16.msra.mxu0 0
    %1538 = vmatprep.subr.bf16.mxu0 0
    %1539 = vmatpush1.bf16.msra.mxu0 0
    %1540 = vmatprep.subr.bf16.mxu0 0
    %1541 = vmatpush1.bf16.msra.mxu0 0
    %1542 = vmatprep.subr.bf16.mxu0 0
    %1543 = vmatpush1.bf16.msra.mxu0 0
    %1544 = vmatprep.subr.bf16.mxu0 0
    %1545 = vmatpush1.bf16.msra.mxu0 0
    %1546 = vmatprep.subr.bf16.mxu0 0
    %1547 = vmatpush1.bf16.msra.mxu0 0
    %1548 = vmatprep.mubr.bf16.mxu0 0
    %1549 = vmatmul.mubr.bf16.gmra.mrb[0].mxu0 %v1515
    %v1550 = vpop.f32.mrb[0].mxu0
    %v1551 = vadd.f32 0.0, %v1550
    %v1552 = vpop.f32.mrb[0].mxu0
    %v1553 = vpop.f32.mrb[0].mxu0
    %v1554 = vpop.f32.mrb[0].mxu0
    %1555 = vdwg.mxu0
    %v1556 = vadd.f32 %v1514, %v1551
    %v1557 = vmax.f32 %v1513, 0.0
    %v1558 = vmax.f32 %v1556, 0.0
    %v1559 = vld [vmem:[%s609] sm:$0xff]
    %v1560 = vpack.c.bf16 %v1557, %v1557
    %1561 = vmatprep.subr.bf16.mxu0 0
    %1562 = vmatpush1.bf16.msra.mxu0 %v1234
    %1563 = vmatprep.subr.bf16.mxu0 0
    %1564 = vmatpush1.bf16.msra.mxu0 %v1235
    %1565 = vmatprep.subr.bf16.mxu0 0
    %1566 = vmatpush1.bf16.msra.mxu0 %v1236
    %1567 = vmatprep.subr.bf16.mxu0 0
    %1568 = vmatpush1.bf16.msra.mxu0 %v1237
    %1569 = vmatprep.subr.bf16.mxu0 0
    %1570 = vmatpush1.bf16.msra.mxu0 %v1238
    %1571 = vmatprep.subr.bf16.mxu0 0
    %1572 = vmatpush1.bf16.msra.mxu0 %v1239
    %1573 = vmatprep.subr.bf16.mxu0 0
    %1574 = vmatpush1.bf16.msra.mxu0 %v1240
    %1575 = vmatprep.subr.bf16.mxu0 0
    %1576 = vmatpush1.bf16.msra.mxu0 %v1241
    %1577 = vmatprep.subr.bf16.mxu0 0
    %1578 = vmatpush1.bf16.msra.mxu0 0
    %1579 = vmatprep.subr.bf16.mxu0 0
    %1580 = vmatpush1.bf16.msra.mxu0 0
    %1581 = vmatprep.subr.bf16.mxu0 0
    %1582 = vmatpush1.bf16.msra.mxu0 0
    %1583 = vmatprep.subr.bf16.mxu0 0
    %1584 = vmatpush1.bf16.msra.mxu0 0
    %1585 = vmatprep.subr.bf16.mxu0 0
    %1586 = vmatpush1.bf16.msra.mxu0 0
    %1587 = vmatprep.subr.bf16.mxu0 0
    %1588 = vmatpush1.bf16.msra.mxu0 0
    %1589 = vmatprep.subr.bf16.mxu0 0
    %1590 = vmatpush1.bf16.msra.mxu0 0
    %1591 = vmatprep.subr.bf16.mxu0 0
    %1592 = vmatpush1.bf16.msra.mxu0 0
    %1593 = vmatprep.mubr.bf16.mxu0 0
    %1594 = vmatmul.mubr.bf16.gmra.mrb[0].mxu0 %v1560
    %v1595 = vpop.f32.mrb[0].mxu0
    %v1596 = vadd.f32 0.0, %v1595
    %v1597 = vpop.f32.mrb[0].mxu0
    %v1598 = vpop.f32.mrb[0].mxu0
    %v1599 = vpop.f32.mrb[0].mxu0
    %1600 = vdwg.mxu0
    %v1601 = vadd.f32 %v1559, %v1596
    %v1602 = vld [vmem:[%s653] sm:$0xff]
    %v1603 = vpack.c.bf16 %v1558, %v1558
    %1604 = vmatprep.subr.bf16.mxu0 0
    %1605 = vmatpush1.bf16.msra.mxu0 %v1234
    %1606 = vmatprep.subr.bf16.mxu0 0
    %1607 = vmatpush1.bf16.msra.mxu0 %v1235
    %1608 = vmatprep.subr.bf16.mxu0 0
    %1609 = vmatpush1.bf16.msra.mxu0 %v1236
    %1610 = vmatprep.subr.bf16.mxu0 0
    %1611 = vmatpush1.bf16.msra.mxu0 %v1237
    %1612 = vmatprep.subr.bf16.mxu0 0
    %1613 = vmatpush1.bf16.msra.mxu0 %v1238
    %1614 = vmatprep.subr.bf16.mxu0 0
    %1615 = vmatpush1.bf16.msra.mxu0 %v1239
    %1616 = vmatprep.subr.bf16.mxu0 0
    %1617 = vmatpush1.bf16.msra.mxu0 %v1240
    %1618 = vmatprep.subr.bf16.mxu0 0
    %1619 = vmatpush1.bf16.msra.mxu0 %v1241
    %1620 = vmatprep.subr.bf16.mxu0 0
    %1621 = vmatpush1.bf16.msra.mxu0 0
    %1622 = vmatprep.subr.bf16.mxu0 0
    %1623 = vmatpush1.bf16.msra.mxu0 0
    %1624 = vmatprep.subr.bf16.mxu0 0
    %1625 = vmatpush1.bf16.msra.mxu0 0
    %1626 = vmatprep.subr.bf16.mxu0 0
    %1627 = vmatpush1.bf16.msra.mxu0 0
    %1628 = vmatprep.subr.bf16.mxu0 0
    %1629 = vmatpush1.bf16.msra.mxu0 0
    %1630 = vmatprep.subr.bf16.mxu0 0
    %1631 = vmatpush1.bf16.msra.mxu0 0
    %1632 = vmatprep.subr.bf16.mxu0 0
    %1633 = vmatpush1.bf16.msra.mxu0 0
    %1634 = vmatprep.subr.bf16.mxu0 0
    %1635 = vmatpush1.bf16.msra.mxu0 0
    %1636 = vmatprep.mubr.bf16.mxu0 0
    %1637 = vmatmul.mubr.bf16.gmra.mrb[0].mxu0 %v1603
    %v1638 = vpop.f32.mrb[0].mxu0
    %v1639 = vadd.f32 0.0, %v1638
    %v1640 = vpop.f32.mrb[0].mxu0
    %v1641 = vpop.f32.mrb[0].mxu0
    %v1642 = vpop.f32.mrb[0].mxu0
    %1643 = vdwg.mxu0
    %v1644 = vadd.f32 %v1602, %v1639
    %v1645 = vmax.f32 %v1601, 0.0
    %v1646 = vmax.f32 %v1644, 0.0
    %v1647 = vld [vmem:[%s701] sm:$0xff]
    %v1648 = vpack.c.bf16 %v1645, %v1645
    %1649 = vmatprep.subr.bf16.mxu0 0
    %1650 = vmatpush1.bf16.msra.mxu0 %v1234
    %1651 = vmatprep.subr.bf16.mxu0 0
    %1652 = vmatpush1.bf16.msra.mxu0 %v1235
    %1653 = vmatprep.subr.bf16.mxu0 0
    %1654 = vmatpush1.bf16.msra.mxu0 %v1236
    %1655 = vmatprep.subr.bf16.mxu0 0
    %1656 = vmatpush1.bf16.msra.mxu0 %v1237
    %1657 = vmatprep.subr.bf16.mxu0 0
    %1658 = vmatpush1.bf16.msra.mxu0 %v1238
    %1659 = vmatprep.subr.bf16.mxu0 0
    %1660 = vmatpush1.bf16.msra.mxu0 %v1239
    %1661 = vmatprep.subr.bf16.mxu0 0
    %1662 = vmatpush1.bf16.msra.mxu0 %v1240
    %1663 = vmatprep.subr.bf16.mxu0 0
    %1664 = vmatpush1.bf16.msra.mxu0 %v1241
    %1665 = vmatprep.subr.bf16.mxu0 0
    %1666 = vmatpush1.bf16.msra.mxu0 0
    %1667 = vmatprep.subr.bf16.mxu0 0
    %1668 = vmatpush1.bf16.msra.mxu0 0
    %1669 = vmatprep.subr.bf16.mxu0 0
    %1670 = vmatpush1.bf16.msra.mxu0 0
    %1671 = vmatprep.subr.bf16.mxu0 0
    %1672 = vmatpush1.bf16.msra.mxu0 0
    %1673 = vmatprep.subr.bf16.mxu0 0
    %1674 = vmatpush1.bf16.msra.mxu0 0
    %1675 = vmatprep.subr.bf16.mxu0 0
    %1676 = vmatpush1.bf16.msra.mxu0 0
    %1677 = vmatprep.subr.bf16.mxu0 0
    %1678 = vmatpush1.bf16.msra.mxu0 0
    %1679 = vmatprep.subr.bf16.mxu0 0
    %1680 = vmatpush1.bf16.msra.mxu0 0
    %1681 = vmatprep.mubr.bf16.mxu0 0
    %1682 = vmatmul.mubr.bf16.gmra.mrb[0].mxu0 %v1648
    %v1683 = vpop.f32.mrb[0].mxu0
    %v1684 = vadd.f32 0.0, %v1683
    %v1685 = vpop.f32.mrb[0].mxu0
    %v1686 = vpop.f32.mrb[0].mxu0
    %v1687 = vpop.f32.mrb[0].mxu0
    %1688 = vdwg.mxu0
    %v1689 = vadd.f32 %v1647, %v1684
    %v1690 = vld [vmem:[%s745] sm:$0xff]
    %v1691 = vpack.c.bf16 %v1646, %v1646
    %1692 = vmatprep.subr.bf16.mxu0 0
    %1693 = vmatpush1.bf16.msra.mxu0 %v1234
    %1694 = vmatprep.subr.bf16.mxu0 0
    %1695 = vmatpush1.bf16.msra.mxu0 %v1235
    %1696 = vmatprep.subr.bf16.mxu0 0
    %1697 = vmatpush1.bf16.msra.mxu0 %v1236
    %1698 = vmatprep.subr.bf16.mxu0 0
    %1699 = vmatpush1.bf16.msra.mxu0 %v1237
    %1700 = vmatprep.subr.bf16.mxu0 0
    %1701 = vmatpush1.bf16.msra.mxu0 %v1238
    %1702 = vmatprep.subr.bf16.mxu0 0
    %1703 = vmatpush1.bf16.msra.mxu0 %v1239
    %1704 = vmatprep.subr.bf16.mxu0 0
    %1705 = vmatpush1.bf16.msra.mxu0 %v1240
    %1706 = vmatprep.subr.bf16.mxu0 0
    %1707 = vmatpush1.bf16.msra.mxu0 %v1241
    %1708 = vmatprep.subr.bf16.mxu0 0
    %1709 = vmatpush1.bf16.msra.mxu0 0
    %1710 = vmatprep.subr.bf16.mxu0 0
    %1711 = vmatpush1.bf16.msra.mxu0 0
    %1712 = vmatprep.subr.bf16.mxu0 0
    %1713 = vmatpush1.bf16.msra.mxu0 0
    %1714 = vmatprep.subr.bf16.mxu0 0
    %1715 = vmatpush1.bf16.msra.mxu0 0
    %1716 = vmatprep.subr.bf16.mxu0 0
    %1717 = vmatpush1.bf16.msra.mxu0 0
    %1718 = vmatprep.subr.bf16.mxu0 0
    %1719 = vmatpush1.bf16.msra.mxu0 0
    %1720 = vmatprep.subr.bf16.mxu0 0
    %1721 = vmatpush1.bf16.msra.mxu0 0
    %1722 = vmatprep.subr.bf16.mxu0 0
    %1723 = vmatpush1.bf16.msra.mxu0 0
    %1724 = vmatprep.mubr.bf16.mxu0 0
    %1725 = vmatmul.mubr.bf16.gmra.mrb[0].mxu0 %v1691
    %v1726 = vpop.f32.mrb[0].mxu0
    %v1727 = vadd.f32 0.0, %v1726
    %v1728 = vpop.f32.mrb[0].mxu0
    %v1729 = vpop.f32.mrb[0].mxu0
    %v1730 = vpop.f32.mrb[0].mxu0
    %1731 = vdwg.mxu0
    %v1732 = vadd.f32 %v1690, %v1727
    %v1733 = vmax.f32 %v1689, 0.0
    %v1734 = vmax.f32 %v1732, 0.0
    %v1735 = vld [vmem:[%s793] sm:$0xff]
    %v1736 = vpack.c.bf16 %v1733, %v1733
    %1737 = vmatprep.subr.bf16.mxu0 0
    %1738 = vmatpush1.bf16.msra.mxu0 %v1234
    %1739 = vmatprep.subr.bf16.mxu0 0
    %1740 = vmatpush1.bf16.msra.mxu0 %v1235
    %1741 = vmatprep.subr.bf16.mxu0 0
    %1742 = vmatpush1.bf16.msra.mxu0 %v1236
    %1743 = vmatprep.subr.bf16.mxu0 0
    %1744 = vmatpush1.bf16.msra.mxu0 %v1237
    %1745 = vmatprep.subr.bf16.mxu0 0
    %1746 = vmatpush1.bf16.msra.mxu0 %v1238
    %1747 = vmatprep.subr.bf16.mxu0 0
    %1748 = vmatpush1.bf16.msra.mxu0 %v1239
    %1749 = vmatprep.subr.bf16.mxu0 0
    %1750 = vmatpush1.bf16.msra.mxu0 %v1240
    %1751 = vmatprep.subr.bf16.mxu0 0
    %1752 = vmatpush1.bf16.msra.mxu0 %v1241
    %1753 = vmatprep.subr.bf16.mxu0 0
    %1754 = vmatpush1.bf16.msra.mxu0 0
    %1755 = vmatprep.subr.bf16.mxu0 0
    %1756 = vmatpush1.bf16.msra.mxu0 0
    %1757 = vmatprep.subr.bf16.mxu0 0
    %1758 = vmatpush1.bf16.msra.mxu0 0
    %1759 = vmatprep.subr.bf16.mxu0 0
    %1760 = vmatpush1.bf16.msra.mxu0 0
    %1761 = vmatprep.subr.bf16.mxu0 0
    %1762 = vmatpush1.bf16.msra.mxu0 0
    %1763 = vmatprep.subr.bf16.mxu0 0
    %1764 = vmatpush1.bf16.msra.mxu0 0
    %1765 = vmatprep.subr.bf16.mxu0 0
    %1766 = vmatpush1.bf16.msra.mxu0 0
    %1767 = vmatprep.subr.bf16.mxu0 0
    %1768 = vmatpush1.bf16.msra.mxu0 0
    %1769 = vmatprep.mubr.bf16.mxu0 0
    %1770 = vmatmul.mubr.bf16.gmra.mrb[0].mxu0 %v1736
    %v1771 = vpop.f32.mrb[0].mxu0
    %v1772 = vadd.f32 0.0, %v1771
    %v1773 = vpop.f32.mrb[0].mxu0
    %v1774 = vpop.f32.mrb[0].mxu0
    %v1775 = vpop.f32.mrb[0].mxu0
    %1776 = vdwg.mxu0
    %v1777 = vadd.f32 %v1735, %v1772
    %v1778 = vld [vmem:[%s837] sm:$0xff]
    %v1779 = vpack.c.bf16 %v1734, %v1734
    %1780 = vmatprep.subr.bf16.mxu0 0
    %1781 = vmatpush1.bf16.msra.mxu0 %v1234
    %1782 = vmatprep.subr.bf16.mxu0 0
    %1783 = vmatpush1.bf16.msra.mxu0 %v1235
    %1784 = vmatprep.subr.bf16.mxu0 0
    %1785 = vmatpush1.bf16.msra.mxu0 %v1236
    %1786 = vmatprep.subr.bf16.mxu0 0
    %1787 = vmatpush1.bf16.msra.mxu0 %v1237
    %1788 = vmatprep.subr.bf16.mxu0 0
    %1789 = vmatpush1.bf16.msra.mxu0 %v1238
    %1790 = vmatprep.subr.bf16.mxu0 0
    %1791 = vmatpush1.bf16.msra.mxu0 %v1239
    %1792 = vmatprep.subr.bf16.mxu0 0
    %1793 = vmatpush1.bf16.msra.mxu0 %v1240
    %1794 = vmatprep.subr.bf16.mxu0 0
    %1795 = vmatpush1.bf16.msra.mxu0 %v1241
    %1796 = vmatprep.subr.bf16.mxu0 0
    %1797 = vmatpush1.bf16.msra.mxu0 0
    %1798 = vmatprep.subr.bf16.mxu0 0
    %1799 = vmatpush1.bf16.msra.mxu0 0
    %1800 = vmatprep.subr.bf16.mxu0 0
    %1801 = vmatpush1.bf16.msra.mxu0 0
    %1802 = vmatprep.subr.bf16.mxu0 0
    %1803 = vmatpush1.bf16.msra.mxu0 0
    %1804 = vmatprep.subr.bf16.mxu0 0
    %1805 = vmatpush1.bf16.msra.mxu0 0
    %1806 = vmatprep.subr.bf16.mxu0 0
    %1807 = vmatpush1.bf16.msra.mxu0 0
    %1808 = vmatprep.subr.bf16.mxu0 0
    %1809 = vmatpush1.bf16.msra.mxu0 0
    %1810 = vmatprep.subr.bf16.mxu0 0
    %1811 = vmatpush1.bf16.msra.mxu0 0
    %1812 = vmatprep.mubr.bf16.mxu0 0
    %1813 = vmatmul.mubr.bf16.gmra.mrb[0].mxu0 %v1779
    %v1814 = vpop.f32.mrb[0].mxu0
    %v1815 = vadd.f32 0.0, %v1814
    %v1816 = vpop.f32.mrb[0].mxu0
    %v1817 = vpop.f32.mrb[0].mxu0
    %v1818 = vpop.f32.mrb[0].mxu0
    %1819 = vdwg.mxu0
    %v1820 = vadd.f32 %v1778, %v1815
    %v1821 = vmax.f32 %v1777, 0.0
    %v1822 = vmax.f32 %v1820, 0.0
    %v1823 = vld [vmem:[%s885] sm:$0xff]
    %v1824 = vpack.c.bf16 %v1821, %v1821
    %1825 = vmatprep.subr.bf16.mxu0 0
    %1826 = vmatpush1.bf16.msra.mxu0 %v1234
    %1827 = vmatprep.subr.bf16.mxu0 0
    %1828 = vmatpush1.bf16.msra.mxu0 %v1235
    %1829 = vmatprep.subr.bf16.mxu0 0
    %1830 = vmatpush1.bf16.msra.mxu0 %v1236
    %1831 = vmatprep.subr.bf16.mxu0 0
    %1832 = vmatpush1.bf16.msra.mxu0 %v1237
    %1833 = vmatprep.subr.bf16.mxu0 0
    %1834 = vmatpush1.bf16.msra.mxu0 %v1238
    %1835 = vmatprep.subr.bf16.mxu0 0
    %1836 = vmatpush1.bf16.msra.mxu0 %v1239
    %1837 = vmatprep.subr.bf16.mxu0 0
    %1838 = vmatpush1.bf16.msra.mxu0 %v1240
    %1839 = vmatprep.subr.bf16.mxu0 0
    %1840 = vmatpush1.bf16.msra.mxu0 %v1241
    %1841 = vmatprep.subr.bf16.mxu0 0
    %1842 = vmatpush1.bf16.msra.mxu0 0
    %1843 = vmatprep.subr.bf16.mxu0 0
    %1844 = vmatpush1.bf16.msra.mxu0 0
    %1845 = vmatprep.subr.bf16.mxu0 0
    %1846 = vmatpush1.bf16.msra.mxu0 0
    %1847 = vmatprep.subr.bf16.mxu0 0
    %1848 = vmatpush1.bf16.msra.mxu0 0
    %1849 = vmatprep.subr.bf16.mxu0 0
    %1850 = vmatpush1.bf16.msra.mxu0 0
    %1851 = vmatprep.subr.bf16.mxu0 0
    %1852 = vmatpush1.bf16.msra.mxu0 0
    %1853 = vmatprep.subr.bf16.mxu0 0
    %1854 = vmatpush1.bf16.msra.mxu0 0
    %1855 = vmatprep.subr.bf16.mxu0 0
    %1856 = vmatpush1.bf16.msra.mxu0 0
    %1857 = vmatprep.mubr.bf16.mxu0 0
    %1858 = vmatmul.mubr.bf16.gmra.mrb[0].mxu0 %v1824
    %v1859 = vpop.f32.mrb[0].mxu0
    %v1860 = vadd.f32 0.0, %v1859
    %v1861 = vpop.f32.mrb[0].mxu0
    %v1862 = vpop.f32.mrb[0].mxu0
    %v1863 = vpop.f32.mrb[0].mxu0
    %1864 = vdwg.mxu0
    %v1865 = vadd.f32 %v1823, %v1860
    %v1866 = vld [vmem:[%s929] sm:$0xff]
    %v1867 = vpack.c.bf16 %v1822, %v1822
    %1868 = vmatprep.subr.bf16.mxu0 0
    %1869 = vmatpush1.bf16.msra.mxu0 %v1234
    %1870 = vmatprep.subr.bf16.mxu0 0
    %1871 = vmatpush1.bf16.msra.mxu0 %v1235
    %1872 = vmatprep.subr.bf16.mxu0 0
    %1873 = vmatpush1.bf16.msra.mxu0 %v1236
    %1874 = vmatprep.subr.bf16.mxu0 0
    %1875 = vmatpush1.bf16.msra.mxu0 %v1237
    %1876 = vmatprep.subr.bf16.mxu0 0
    %1877 = vmatpush1.bf16.msra.mxu0 %v1238
    %1878 = vmatprep.subr.bf16.mxu0 0
    %1879 = vmatpush1.bf16.msra.mxu0 %v1239
    %1880 = vmatprep.subr.bf16.mxu0 0
    %1881 = vmatpush1.bf16.msra.mxu0 %v1240
    %1882 = vmatprep.subr.bf16.mxu0 0
    %1883 = vmatpush1.bf16.msra.mxu0 %v1241
    %1884 = vmatprep.subr.bf16.mxu0 0
    %1885 = vmatpush1.bf16.msra.mxu0 0
    %1886 = vmatprep.subr.bf16.mxu0 0
    %1887 = vmatpush1.bf16.msra.mxu0 0
    %1888 = vmatprep.subr.bf16.mxu0 0
    %1889 = vmatpush1.bf16.msra.mxu0 0
    %1890 = vmatprep.subr.bf16.mxu0 0
    %1891 = vmatpush1.bf16.msra.mxu0 0
    %1892 = vmatprep.subr.bf16.mxu0 0
    %1893 = vmatpush1.bf16.msra.mxu0 0
    %1894 = vmatprep.subr.bf16.mxu0 0
    %1895 = vmatpush1.bf16.msra.mxu0 0
    %1896 = vmatprep.subr.bf16.mxu0 0
    %1897 = vmatpush1.bf16.msra.mxu0 0
    %1898 = vmatprep.subr.bf16.mxu0 0
    %1899 = vmatpush1.bf16.msra.mxu0 0
    %1900 = vmatprep.mubr.bf16.mxu0 0
    %1901 = vmatmul.mubr.bf16.gmra.mrb[0].mxu0 %v1867
    %v1902 = vpop.f32.mrb[0].mxu0
    %v1903 = vadd.f32 0.0, %v1902
    %v1904 = vpop.f32.mrb[0].mxu0
    %v1905 = vpop.f32.mrb[0].mxu0
    %v1906 = vpop.f32.mrb[0].mxu0
    %1907 = vdwg.mxu0
    %v1908 = vadd.f32 %v1866, %v1903
    %v1909 = vmax.f32 %v1865, 0.0
    %v1910 = vmax.f32 %v1908, 0.0
    %v1911 = vld [vmem:[#allocation6] sm:$0xf]
    %v1912 = vld [vmem:[#allocation6 + $0x4] sm:$0xf]
    %v1913 = vld [vmem:[#allocation6 + $0x8] sm:$0xf]
    %v1914 = vld [vmem:[#allocation6 + $0xc] sm:$0xf]
    %v1915 = vld [vmem:[#allocation6 + $0x10] sm:$0xf]
    %v1916 = vld [vmem:[#allocation6 + $0x14] sm:$0xf]
    %v1917 = vld [vmem:[#allocation6 + $0x18] sm:$0xf]
    %v1918 = vld [vmem:[#allocation6 + $0x1c] sm:$0xf]
    %v1919 = vld [vmem:[#allocation6 + $0x20] sm:$0xf]
    %v1920 = vld [vmem:[#allocation6 + $0x24] sm:$0xf]
    %v1921 = vld [vmem:[#allocation6 + $0x28] sm:$0xf]
    %v1922 = vld [vmem:[#allocation6 + $0x2c] sm:$0xf]
    %v1923 = vld [vmem:[#allocation6 + $0x30] sm:$0xf]
    %v1924 = vld [vmem:[#allocation6 + $0x34] sm:$0xf]
    %v1925 = vld [vmem:[#allocation6 + $0x38] sm:$0xf]
    %v1926 = vld [vmem:[#allocation6 + $0x3c] sm:$0xf]
    %v1927 = vld [vmem:[%s8] sm:$0x1]
    %v1928 = vpack.c.bf16 %v1909, %v1909
    %v1930 = vlaneseq
    %v1931 = vshrl.u32 %v1930, 7
    %v1932 = vsub.s32 0, %v1931
    %v1933 = vrot.slane %v1927, %v1932
    %v1951 = vunpack.c.l.b16 %v1911
    %v1952 = vunpack.c.l.b16 %v1912
    %v1953 = vunpack.c.l.b16 %v1913
    %v1954 = vunpack.c.l.b16 %v1914
    %v1955 = vunpack.c.l.b16 %v1915
    %v1956 = vunpack.c.l.b16 %v1916
    %v1957 = vunpack.c.l.b16 %v1917
    %v1958 = vunpack.c.l.b16 %v1918
    %v1959 = vunpack.c.l.b16 %v1919
    %v1960 = vunpack.c.l.b16 %v1920
    %v1961 = vunpack.c.l.b16 %v1921
    %v1962 = vunpack.c.l.b16 %v1922
    %v1963 = vunpack.c.l.b16 %v1923
    %v1964 = vunpack.c.l.b16 %v1924
    %v1965 = vunpack.c.l.b16 %v1925
    %v1966 = vunpack.c.l.b16 %v1926
    %v1967 = vpack.c.b16 %v1952, %v1951
    %v1968 = vpack.c.b16 %v1954, %v1953
    %v1969 = vpack.c.b16 %v1956, %v1955
    %v1970 = vpack.c.b16 %v1958, %v1957
    %v1971 = vpack.c.b16 %v1960, %v1959
    %v1972 = vpack.c.b16 %v1962, %v1961
    %v1973 = vpack.c.b16 %v1964, %v1963
    %v1974 = vpack.c.b16 %v1966, %v1965
    %1983 = vmatprep.subr.bf16.mxu0 0
    %1984 = vmatpush1.bf16.msra.mxu0 %v1967
    %1985 = vmatprep.subr.bf16.mxu0 0
    %1986 = vmatpush1.bf16.msra.mxu0 %v1968
    %1987 = vmatprep.subr.bf16.mxu0 0
    %1988 = vmatpush1.bf16.msra.mxu0 %v1969
    %1989 = vmatprep.subr.bf16.mxu0 0
    %1990 = vmatpush1.bf16.msra.mxu0 %v1970
    %1991 = vmatprep.subr.bf16.mxu0 0
    %1992 = vmatpush1.bf16.msra.mxu0 %v1971
    %1993 = vmatprep.subr.bf16.mxu0 0
    %1994 = vmatpush1.bf16.msra.mxu0 %v1972
    %1995 = vmatprep.subr.bf16.mxu0 0
    %1996 = vmatpush1.bf16.msra.mxu0 %v1973
    %1997 = vmatprep.subr.bf16.mxu0 0
    %1998 = vmatpush1.bf16.msra.mxu0 %v1974
    %1999 = vmatprep.subr.bf16.mxu0 0
    %2000 = vmatpush1.bf16.msra.mxu0 0
    %2001 = vmatprep.subr.bf16.mxu0 0
    %2002 = vmatpush1.bf16.msra.mxu0 0
    %2003 = vmatprep.subr.bf16.mxu0 0
    %2004 = vmatpush1.bf16.msra.mxu0 0
    %2005 = vmatprep.subr.bf16.mxu0 0
    %2006 = vmatpush1.bf16.msra.mxu0 0
    %2007 = vmatprep.subr.bf16.mxu0 0
    %2008 = vmatpush1.bf16.msra.mxu0 0
    %2009 = vmatprep.subr.bf16.mxu0 0
    %2010 = vmatpush1.bf16.msra.mxu0 0
    %2011 = vmatprep.subr.bf16.mxu0 0
    %2012 = vmatpush1.bf16.msra.mxu0 0
    %2013 = vmatprep.subr.bf16.mxu0 0
    %2014 = vmatpush1.bf16.msra.mxu0 0
    %2015 = vmatprep.mubr.bf16.mxu0 0
    %2016 = vmatmul.mubr.bf16.gmra.mrb[0].mxu0 %v1928
    %v2017 = vpop.f32.mrb[0].mxu0
    %v2018 = vadd.f32 %v1933, %v2017
    %v2019 = vpop.f32.mrb[0].mxu0
    %v2020 = vpop.f32.mrb[0].mxu0
    %v2021 = vpop.f32.mrb[0].mxu0
    %2022 = vdwg.mxu0
    %v2023 = vmax.f32 %v2018, 0.0
    %v2024 = vlaneseq
    %v2025 = vand.u32 %v2024, 127
    %vm2026 = vcmp.lt.s32.totalorder %v2025, 4
    %v2027 = vsel %vm2026, %v2023, -1e+30
    %2028 = vmax.xlane.f32.xlu0 %v2027
    %v2029 = vpop.xlane.xlu0 %2028
    %v2030 = vsub.f32 %v2027, %v2029
    %v2031 = vmul.f32 %v2030, 1.442695
    %v2032 = vpow.pop %v2031
    %2033 = vadd.xlane.f32.xlu0 %v2032
    %v2034 = vpop.xlane.xlu0 %2033
    %v2035 = vlog2.pop %v2034
    %v2036 = vmul.f32 %v2035, 0.6931472
    %v2037 = vadd.f32 %v2029, %v2036
    %v2038 = vsub.f32 %v2027, %v2037
    %2039 = vst [vmem:[#allocation8] sm:$0xff] %v2038
    %v2040 = vpack.c.bf16 %v1910, %v1910
    %2041 = vmatprep.subr.bf16.mxu0 0
    %2042 = vmatpush1.bf16.msra.mxu0 %v1967
    %2043 = vmatprep.subr.bf16.mxu0 0
    %2044 = vmatpush1.bf16.msra.mxu0 %v1968
    %2045 = vmatprep.subr.bf16.mxu0 0
    %2046 = vmatpush1.bf16.msra.mxu0 %v1969
    %2047 = vmatprep.subr.bf16.mxu0 0
    %2048 = vmatpush1.bf16.msra.mxu0 %v1970
    %2049 = vmatprep.subr.bf16.mxu0 0
    %2050 = vmatpush1.bf16.msra.mxu0 %v1971
    %2051 = vmatprep.subr.bf16.mxu0 0
    %2052 = vmatpush1.bf16.msra.mxu0 %v1972
    %2053 = vmatprep.subr.bf16.mxu0 0
    %2054 = vmatpush1.bf16.msra.mxu0 %v1973
    %2055 = vmatprep.subr.bf16.mxu0 0
    %2056 = vmatpush1.bf16.msra.mxu0 %v1974
    %2057 = vmatprep.subr.bf16.mxu0 0
    %2058 = vmatpush1.bf16.msra.mxu0 0
    %2059 = vmatprep.subr.bf16.mxu0 0
    %2060 = vmatpush1.bf16.msra.mxu0 0
    %2061 = vmatprep.subr.bf16.mxu0 0
    %2062 = vmatpush1.bf16.msra.mxu0 0
    %2063 = vmatprep.subr.bf16.mxu0 0
    %2064 = vmatpush1.bf16.msra.mxu0 0
    %2065 = vmatprep.subr.bf16.mxu0 0
    %2066 = vmatpush1.bf16.msra.mxu0 0
    %2067 = vmatprep.subr.bf16.mxu0 0
    %2068 = vmatpush1.bf16.msra.mxu0 0
    %2069 = vmatprep.subr.bf16.mxu0 0
    %2070 = vmatpush1.bf16.msra.mxu0 0
    %2071 = vmatprep.subr.bf16.mxu0 0
    %2072 = vmatpush1.bf16.msra.mxu0 0
    %2073 = vmatprep.mubr.bf16.mxu0 0
    %2074 = vmatmul.mubr.bf16.gmra.mrb[0].mxu0 %v2040
    %v2075 = vpop.f32.mrb[0].mxu0
    %v2076 = vadd.f32 %v1933, %v2075
    %v2077 = vpop.f32.mrb[0].mxu0
    %v2078 = vpop.f32.mrb[0].mxu0
    %v2079 = vpop.f32.mrb[0].mxu0
    %2080 = vdwg.mxu0
    %v2081 = vmax.f32 %v2076, 0.0
    %v2082 = vsel %vm2026, %v2081, -1e+30
    %2083 = vmax.xlane.f32.xlu0 %v2082
    %v2084 = vpop.xlane.xlu0 %2083
    %v2085 = vsub.f32 %v2082, %v2084
    %v2086 = vmul.f32 %v2085, 1.442695
    %v2087 = vpow.pop %v2086
    %2088 = vadd.xlane.f32.xlu0 %v2087
    %v2089 = vpop.xlane.xlu0 %2088
    %v2090 = vlog2.pop %v2089
    %v2091 = vmul.f32 %v2090, 0.6931472
    %v2092 = vadd.f32 %v2084, %v2091
    %v2093 = vsub.f32 %v2082, %v2092
    %2094 = vst [vmem:[#allocation8 + $0x8] sm:$0xff] %v2093
    // Predicated region
    $region46: #{tpu_custom_call.1} parent=1 // pred_check
      _
    $region47: #{tpu_custom_call.1} parent=1 // pred_check_branch
      %2096 = sbr.rel (0) target = $region49
    $region48: #{tpu_custom_call.1} parent=1 // pred_region
      %s2098 = ssub.s32 256, 256
      %2099 = vsyncadd [#allocation5], %s2098
      %s2100 = sshll.u32 [#allocation8], 4
      %s2101 = int_to_ptr.vmem [resolvable:$true] %s2100
      %2106 = dma.vmem_to_hbm [thread:$0]  %s2101, 256, %s9, [#allocation5], 128, 128, 8
    $region49: #{tpu_custom_call.1} parent=1 // pred_fallthru
      _
    // Predicated region
    $region50: #{tpu_custom_call.1} parent=1 // pred_check
      _
    $region51: #{tpu_custom_call.1} parent=1 // pred_check_branch
      %2108 = sbr.rel (0) target = $region53
    $region52: #{tpu_custom_call.1} parent=1 // pred_region
      %2109 = dma.done [#allocation5], 256
    $region53: #{tpu_custom_call.1} parent=1 // pred_fallthru
      _
    %2110 = vsyncpa [#allocation4], 1
    %2111 = vsyncpa [#allocation7], 1
    %2112 = vsyncpa [#allocation5], 1

</llo_original>
